<compile_context>
chip_gen: v7x
topology: tpu7x:2x2x1
jax: 0.10.0
libtpu: 0.0.40
codegen_flags: <defaults>
</compile_context>

<pallas_src>
import jax
import jax.numpy as jnp
import numpy as np
from jax.experimental import pallas as pl
from jax.experimental.pallas import tpu as pltpu


def _round_up(x, m):
    return (x + m - 1) // m * m


# -----------------------------------------------------------------------------
# Fused Pallas kernel: LSTM layer 0 -> LSTM layer 1 (wavefront) -> FC head
# -----------------------------------------------------------------------------
def _fused_lstm_fc_kernel(x_ref,                       # (T*Bp, Dp)
                          wih0_ref, whh0_ref, b0_ref,  # (Dp,4H) (H,4H) (1,4H)
                          w1_ref, b1_ref,              # (2H,4H) (1,4H)
                          wfc_ref, bfc_ref,            # (H,Cp)  (1,Cp)
                          out_ref,                     # (Bp, Cp)
                          gx_ref):                     # VMEM (T*Bp, 4H) f32
    H = whh0_ref.shape[0]
    Bp = out_ref.shape[0]
    T = x_ref.shape[0] // Bp
    mm_dtype = whh0_ref.dtype

    def sigm(x):
        # sigmoid(x) == 0.5*tanh(0.5*x) + 0.5 : one EUP push per gate instead
        # of an exp + reciprocal pair on the critical recurrence chain.
        return 0.5 * jnp.tanh(0.5 * x) + 0.5

    def cell(gates, c_prev):
        # PyTorch gate order: i, f, g, o ; slices are lane-aligned (H == 128).
        i_g = sigm(gates[:, 0 * H:1 * H])
        f_g = sigm(gates[:, 1 * H:2 * H])
        g_g = jnp.tanh(gates[:, 2 * H:3 * H])
        o_g = sigm(gates[:, 3 * H:4 * H])
        c_new = f_g * c_prev + i_g * g_g
        h_new = o_g * jnp.tanh(c_new)
        return h_new, c_new

    # Layer-0 input projection hoisted out of the recurrence:
    # one (T*Bp, Dp) x (Dp, 4H) GEMM; result stays in VMEM scratch.
    gx_ref[...] = (jnp.dot(x_ref[...], wih0_ref[...],
                           preferred_element_type=jnp.float32)
                   + b0_ref[...])

    # Hoist the layer-1 bias broadcast out of the unrolled loop.
    b1_full = jnp.broadcast_to(b1_ref[...], (Bp, 4 * H))

    h0 = jnp.zeros((Bp, H), jnp.float32)
    c0 = jnp.zeros((Bp, H), jnp.float32)
    h1 = jnp.zeros((Bp, H), jnp.float32)
    c1 = jnp.zeros((Bp, H), jnp.float32)

    # Fully unrolled wavefront over time (T is static & small).
    for t in range(T):
        # ---- layer 0, step t ----
        gates0 = (gx_ref[t * Bp:(t + 1) * Bp, :]
                  + jnp.dot(h0.astype(mm_dtype), whh0_ref[...],
                            preferred_element_type=jnp.float32))
        h0, c0 = cell(gates0, c0)
        # ---- layer 1, step t (input + recurrent projection in ONE matmul) ----
        lhs1 = jnp.concatenate([h0, h1], axis=1).astype(mm_dtype)
        gates1 = (jnp.dot(lhs1, w1_ref[...],
                          preferred_element_type=jnp.float32)
                  + b1_full)
        h1, c1 = cell(gates1, c1)

    # FC head (dropout on the last hidden state is identity at inference).
    # Output is lane-dense: C padded to a multiple of 128 in the wrapper.
    out_ref[...] = (jnp.dot(h1.astype(mm_dtype), wfc_ref[...],
                            preferred_element_type=jnp.float32)
                    + bfc_ref[...])


# -----------------------------------------------------------------------------
# Wrapper around pallas_call
# -----------------------------------------------------------------------------
def _forward(x_btd, params, matmul_dtype=jnp.bfloat16):
    """x_btd: (B, T, input_size), batch_first like PyTorch. Returns (B, C)."""
    B, T, D = x_btd.shape
    H = params["w_hh0_t"].shape[0]
    C = params["w_fc_t"].shape[1]
    G = 4 * H

    Bp = _round_up(B, 8)      # fill sublanes; LSTM is batch-row independent
    Dp = _round_up(D, 8)      # sublane-aligned layer-0 projection operands
    Cp = _round_up(C, 128)    # lane-dense FC output

    # (B, T, D) -> (T, Bp, Dp) -> flat (T*Bp, Dp) so the input projection is
    # one GEMM; zero padding contributes nothing.
    x = jnp.transpose(x_btd, (1, 0, 2)).astype(jnp.float32)
    x = jnp.pad(x, ((0, 0), (0, Bp - B), (0, Dp - D)))
    x_flat = x.reshape(T * Bp, Dp).astype(matmul_dtype)

    wih0 = jnp.pad(params["w_ih0_t"], ((0, Dp - D), (0, 0)))
    # Fused layer-1 weight: [W_ih1 ; W_hh1]  ->  (2H, 4H)
    w1 = jnp.concatenate([params["w_ih1_t"], params["w_hh1_t"]], axis=0)

    wfc = params["w_fc_t"]
    bfc = params["b_fc"]
    if Cp != C:
        wfc = jnp.pad(wfc, ((0, 0), (0, Cp - C)))
        bfc = jnp.pad(bfc, ((0, 0), (0, Cp - C)))

    out = pl.pallas_call(
        _fused_lstm_fc_kernel,
        out_shape=jax.ShapeDtypeStruct((Bp, Cp), jnp.float32),
        grid_spec=pltpu.PrefetchScalarGridSpec(
            num_scalar_prefetch=0,
            grid=(1,),
            in_specs=[
                pl.BlockSpec((T * Bp, Dp), lambda i: (0, 0)),
                pl.BlockSpec((Dp, G), lambda i: (0, 0)),
                pl.BlockSpec((H, G), lambda i: (0, 0)),
                pl.BlockSpec((1, G), lambda i: (0, 0)),
                pl.BlockSpec((2 * H, G), lambda i: (0, 0)),
                pl.BlockSpec((1, G), lambda i: (0, 0)),
                pl.BlockSpec((H, Cp), lambda i: (0, 0)),
                pl.BlockSpec((1, Cp), lambda i: (0, 0)),
            ],
            out_specs=pl.BlockSpec((Bp, Cp), lambda i: (0, 0)),
            scratch_shapes=[
                pltpu.VMEM((T * Bp, G), jnp.float32),   # gate pre-activations
            ],
        ),
        compiler_params=pltpu.CompilerParams(
            dimension_semantics=("arbitrary",)),
    )(x_flat,
      wih0.astype(matmul_dtype),
      params["w_hh0_t"].astype(matmul_dtype),
      params["b0"],
      w1.astype(matmul_dtype),
      params["b1"],
      wfc.astype(matmul_dtype),
      bfc)

    return out[:B, :C]


# Default path uses bf16 MXU operands (bf16-native on v5e/v6e/v7x); gate math
# and c/h state stay f32.  Pass matmul_dtype=jnp.float32 for bit-accurate math.
lstm_model_forward = jax.jit(_forward, static_argnames=("matmul_dtype",))


# -----------------------------------------------------------------------------
# Pure-JAX reference (for correctness check)
# -----------------------------------------------------------------------------
def _lstm_layer_ref(x_tbd, w_ih_t, w_hh_t, b):
    _, B, _ = x_tbd.shape
    H = w_hh_t.shape[0]

    def step(carry, x_t):
        h, c = carry
        gates = x_t @ w_ih_t + h @ w_hh_t + b
        i = jax.nn.sigmoid(gates[:, 0 * H:1 * H])
        f = jax.nn.sigmoid(gates[:, 1 * H:2 * H])
        g = jnp.tanh(gates[:, 2 * H:3 * H])
        o = jax.nn.sigmoid(gates[:, 3 * H:4 * H])
        c = f * c + i * g
        h = o * jnp.tanh(c)
        return (h, c), h

    init = (jnp.zeros((B, H), jnp.float32), jnp.zeros((B, H), jnp.float32))
    _, ys = jax.lax.scan(step, init, x_tbd)
    return ys


def model_ref(x_btd, params):
    x = jnp.transpose(x_btd, (1, 0, 2)).astype(jnp.float32)
    y0 = _lstm_layer_ref(x, params["w_ih0_t"], params["w_hh0_t"], params["b0"])
    y1 = _lstm_layer_ref(y0, params["w_ih1_t"], params["w_hh1_t"], params["b1"])
    return y1[-1] @ params["w_fc_t"] + params["b_fc"]


# -----------------------------------------------------------------------------
# Parameter construction (deterministic, PyTorch-style uniform init)
# -----------------------------------------------------------------------------
def init_params(key, input_size=6, hidden_size=128, num_classes=26):
    H = hidden_size
    keys = jax.random.split(key, 10)
    bound = 1.0 / np.sqrt(H)

    def u(k, shape):
        return jax.random.uniform(k, shape, jnp.float32, -bound, bound)

    # PyTorch stores weight_ih_l{k}: (4H, D_in); pre-transpose to (D_in, 4H).
    w_ih0 = u(keys[0], (4 * H, input_size))
    w_hh0 = u(keys[1], (4 * H, H))
    b_ih0 = u(keys[2], (4 * H,))
    b_hh0 = u(keys[3], (4 * H,))

    w_ih1 = u(keys[4], (4 * H, H))
    w_hh1 = u(keys[5], (4 * H, H))
    b_ih1 = u(keys[6], (4 * H,))
    b_hh1 = u(keys[7], (4 * H,))

    w_fc = u(keys[8], (num_classes, H))
    b_fc = u(keys[9], (num_classes,))

    return {
        "w_ih0_t": w_ih0.T, "w_hh0_t": w_hh0.T,
        "b0": (b_ih0 + b_hh0).reshape(1, 4 * H),
        "w_ih1_t": w_ih1.T, "w_hh1_t": w_hh1.T,
        "b1": (b_ih1 + b_hh1).reshape(1, 4 * H),
        "w_fc_t": w_fc.T, "b_fc": b_fc.reshape(1, num_classes),
    }


# -----------------------------------------------------------------------------
# Main
# -----------------------------------------------------------------------------
if __name__ == "__main__":
    INPUT_SIZE = 6
    HIDDEN = 128
    NUM_CLASSES = 26
    B, T = 4, 8

    key = jax.random.PRNGKey(0)
    k_x, k_p = jax.random.split(key)
    x = jax.random.normal(k_x, (B, T, INPUT_SIZE), jnp.float32)
    params = init_params(k_p, INPUT_SIZE, HIDDEN, NUM_CLASSES)

    ref = jax.block_until_ready(model_ref(x, params))

    # 1) Exact-math path (f32 MXU operands) — tight tolerance vs f32 reference.
    logits_f32 = jax.block_until_ready(
        lstm_model_forward(x, params, matmul_dtype=jnp.float32))
    np.testing.assert_allclose(np.asarray(logits_f32), np.asarray(ref),
                               rtol=1e-3, atol=1e-3)

    # 2) Default fast path (bf16 MXU operands, f32 gate/state math) — looser
    #    tolerance to account for bf16 operand rounding.
    logits = jax.block_until_ready(lstm_model_forward(x, params))
    np.testing.assert_allclose(np.asarray(logits), np.asarray(ref),
                               rtol=3e-2, atol=3e-2)
    assert logits.shape == (B, NUM_CLASSES)

    # TODO(synk): train-mode dropout (inter-layer + pre-FC) not implemented;
    # forward here matches inference semantics (dropout == identity).

    print("KERNEL_OK")
</pallas_src>

<mosaic_0001>
module attributes {stable_mosaic.version = 11 : i64} {
  func.func @_fused_lstm_fc_kernel(%arg0: i32, %arg1: memref<64x8xf32, #tpu.memory_space<vmem>>, %arg2: memref<8x512xf32, #tpu.memory_space<vmem>>, %arg3: memref<128x512xf32, #tpu.memory_space<vmem>>, %arg4: memref<1x512xf32, #tpu.memory_space<vmem>>, %arg5: memref<256x512xf32, #tpu.memory_space<vmem>>, %arg6: memref<1x512xf32, #tpu.memory_space<vmem>>, %arg7: memref<128x128xf32, #tpu.memory_space<vmem>>, %arg8: memref<1x128xf32, #tpu.memory_space<vmem>>, %arg9: memref<8x128xf32, #tpu.memory_space<vmem>>, %arg10: memref<64x512xf32, #tpu.memory_space<vmem>>) attributes {dimension_semantics = [#tpu.dimension_semantics<arbitrary>], iteration_bounds = array<i64: 1>, scalar_prefetch = 0 : i64, scratch_operands = 1 : i64, tpu.core_type = #tpu.core_type<tc>, window_params = [{pipeline_mode = #tpu.pipeline_mode<synchronous>, transform_indices = @transform_0, window_bounds = array<i64: 64, 8>}, {pipeline_mode = #tpu.pipeline_mode<synchronous>, transform_indices = @transform_1, window_bounds = array<i64: 8, 512>}, {pipeline_mode = #tpu.pipeline_mode<synchronous>, transform_indices = @transform_2, window_bounds = array<i64: 128, 512>}, {pipeline_mode = #tpu.pipeline_mode<synchronous>, transform_indices = @transform_3, window_bounds = array<i64: 1, 512>}, {pipeline_mode = #tpu.pipeline_mode<synchronous>, transform_indices = @transform_4, window_bounds = array<i64: 256, 512>}, {pipeline_mode = #tpu.pipeline_mode<synchronous>, transform_indices = @transform_5, window_bounds = array<i64: 1, 512>}, {pipeline_mode = #tpu.pipeline_mode<synchronous>, transform_indices = @transform_6, window_bounds = array<i64: 128, 128>}, {pipeline_mode = #tpu.pipeline_mode<synchronous>, transform_indices = @transform_7, window_bounds = array<i64: 1, 128>}, {pipeline_mode = #tpu.pipeline_mode<synchronous>, transform_indices = @transform_8, window_bounds = array<i64: 8, 128>}]} {
    %c0 = arith.constant 0 : index
    %c0_0 = arith.constant 0 : index
    %0 = vector.load %arg1[%c0, %c0_0] : memref<64x8xf32, #tpu.memory_space<vmem>>, vector<64x8xf32>
    %c0_1 = arith.constant 0 : index
    %c0_2 = arith.constant 0 : index
    %1 = vector.load %arg2[%c0_1, %c0_2] : memref<8x512xf32, #tpu.memory_space<vmem>>, vector<8x512xf32>
    %cst = arith.constant dense<0.000000e+00> : vector<64x512xf32>
    %2 = tpu.matmul %0, %1, %cst {dimension_numbers = #tpu.dot_dimension_numbers<[1], [0], [0], [1], [0, 0, 1, 1], [], []>} : vector<64x8xf32>, vector<8x512xf32>, vector<64x512xf32> -> vector<64x512xf32>
    %c0_3 = arith.constant 0 : index
    %c0_4 = arith.constant 0 : index
    %3 = vector.load %arg4[%c0_3, %c0_4] : memref<1x512xf32, #tpu.memory_space<vmem>>, vector<1x512xf32>
    %4 = vector.broadcast %3 : vector<1x512xf32> to vector<64x512xf32>
    %5 = arith.addf %2, %4 : vector<64x512xf32>
    %c0_5 = arith.constant 0 : index
    %c0_6 = arith.constant 0 : index
    %6 = vector.load %arg10[%c0_5, %c0_6] : memref<64x512xf32, #tpu.memory_space<vmem>>, vector<64x512xf32>
    tpu.vector_store %arg10[%c0_5, %c0_6], %5 {strides = array<i32>} : memref<64x512xf32, #tpu.memory_space<vmem>>, vector<64x512xf32>,
    %c0_7 = arith.constant 0 : index
    %c0_8 = arith.constant 0 : index
    %7 = vector.load %arg6[%c0_7, %c0_8] : memref<1x512xf32, #tpu.memory_space<vmem>>, vector<1x512xf32>
    %8 = vector.shape_cast %7 : vector<1x512xf32> to vector<1x512xf32>
    %9 = vector.broadcast %8 : vector<1x512xf32> to vector<8x512xf32>
    %cst_9 = arith.constant 0.000000e+00 : f32
    %10 = vector.broadcast %cst_9 : f32 to vector<8x128xf32>
    %cst_10 = arith.constant 0.000000e+00 : f32
    %11 = vector.broadcast %cst_10 : f32 to vector<8x128xf32>
    %cst_11 = arith.constant 0.000000e+00 : f32
    %12 = vector.broadcast %cst_11 : f32 to vector<8x128xf32>
    %cst_12 = arith.constant 0.000000e+00 : f32
    %13 = vector.broadcast %cst_12 : f32 to vector<8x128xf32>
    %c0_13 = arith.constant 0 : index
    %c0_14 = arith.constant 0 : index
    %14 = vector.load %arg10[%c0_13, %c0_14] : memref<64x512xf32, #tpu.memory_space<vmem>>, vector<8x512xf32>
    %c0_15 = arith.constant 0 : index
    %c0_16 = arith.constant 0 : index
    %15 = vector.load %arg3[%c0_15, %c0_16] : memref<128x512xf32, #tpu.memory_space<vmem>>, vector<128x512xf32>
    %cst_17 = arith.constant dense<0.000000e+00> : vector<8x512xf32>
    %16 = tpu.matmul %10, %15, %cst_17 {dimension_numbers = #tpu.dot_dimension_numbers<[1], [0], [0], [1], [0, 0, 1, 1], [], []>} : vector<8x128xf32>, vector<128x512xf32>, vector<8x512xf32> -> vector<8x512xf32>
    %17 = arith.addf %14, %16 : vector<8x512xf32>
    %18 = vector.extract_strided_slice %17 {offsets = [0, 0], sizes = [8, 128], strides = [1, 1]} : vector<8x512xf32> to vector<8x128xf32>
    %cst_18 = arith.constant 5.000000e-01 : f32
    %19 = vector.broadcast %cst_18 : f32 to vector<8x128xf32>
    %20 = arith.mulf %19, %18 : vector<8x128xf32>
    %21 = math.tanh %20 : vector<8x128xf32>
    %cst_19 = arith.constant 5.000000e-01 : f32
    %22 = vector.broadcast %cst_19 : f32 to vector<8x128xf32>
    %23 = arith.mulf %22, %21 : vector<8x128xf32>
    %cst_20 = arith.constant 5.000000e-01 : f32
    %24 = vector.broadcast %cst_20 : f32 to vector<8x128xf32>
    %25 = arith.addf %23, %24 : vector<8x128xf32>
    %26 = vector.extract_strided_slice %17 {offsets = [0, 128], sizes = [8, 128], strides = [1, 1]} : vector<8x512xf32> to vector<8x128xf32>
    %cst_21 = arith.constant 5.000000e-01 : f32
    %27 = vector.broadcast %cst_21 : f32 to vector<8x128xf32>
    %28 = arith.mulf %27, %26 : vector<8x128xf32>
    %29 = math.tanh %28 : vector<8x128xf32>
    %cst_22 = arith.constant 5.000000e-01 : f32
    %30 = vector.broadcast %cst_22 : f32 to vector<8x128xf32>
    %31 = arith.mulf %30, %29 : vector<8x128xf32>
    %cst_23 = arith.constant 5.000000e-01 : f32
    %32 = vector.broadcast %cst_23 : f32 to vector<8x128xf32>
    %33 = arith.addf %31, %32 : vector<8x128xf32>
    %34 = vector.extract_strided_slice %17 {offsets = [0, 256], sizes = [8, 128], strides = [1, 1]} : vector<8x512xf32> to vector<8x128xf32>
    %35 = math.tanh %34 : vector<8x128xf32>
    %36 = vector.extract_strided_slice %17 {offsets = [0, 384], sizes = [8, 128], strides = [1, 1]} : vector<8x512xf32> to vector<8x128xf32>
    %cst_24 = arith.constant 5.000000e-01 : f32
    %37 = vector.broadcast %cst_24 : f32 to vector<8x128xf32>
    %38 = arith.mulf %37, %36 : vector<8x128xf32>
    %39 = math.tanh %38 : vector<8x128xf32>
    %cst_25 = arith.constant 5.000000e-01 : f32
    %40 = vector.broadcast %cst_25 : f32 to vector<8x128xf32>
    %41 = arith.mulf %40, %39 : vector<8x128xf32>
    %cst_26 = arith.constant 5.000000e-01 : f32
    %42 = vector.broadcast %cst_26 : f32 to vector<8x128xf32>
    %43 = arith.addf %41, %42 : vector<8x128xf32>
    %44 = arith.mulf %33, %11 : vector<8x128xf32>
    %45 = arith.mulf %25, %35 : vector<8x128xf32>
    %46 = arith.addf %44, %45 : vector<8x128xf32>
    %47 = math.tanh %46 : vector<8x128xf32>
    %48 = arith.mulf %43, %47 : vector<8x128xf32>
    %49 = tpu.concatenate %48, %12 in 1 : vector<8x128xf32>, vector<8x128xf32> -> vector<8x256xf32>
    %c0_27 = arith.constant 0 : index
    %c0_28 = arith.constant 0 : index
    %50 = vector.load %arg5[%c0_27, %c0_28] : memref<256x512xf32, #tpu.memory_space<vmem>>, vector<256x512xf32>
    %cst_29 = arith.constant dense<0.000000e+00> : vector<8x512xf32>
    %51 = tpu.matmul %49, %50, %cst_29 {dimension_numbers = #tpu.dot_dimension_numbers<[1], [0], [0], [1], [0, 0, 1, 1], [], []>} : vector<8x256xf32>, vector<256x512xf32>, vector<8x512xf32> -> vector<8x512xf32>
    %52 = arith.addf %51, %9 : vector<8x512xf32>
    %53 = vector.extract_strided_slice %52 {offsets = [0, 0], sizes = [8, 128], strides = [1, 1]} : vector<8x512xf32> to vector<8x128xf32>
    %cst_30 = arith.constant 5.000000e-01 : f32
    %54 = vector.broadcast %cst_30 : f32 to vector<8x128xf32>
    %55 = arith.mulf %54, %53 : vector<8x128xf32>
    %56 = math.tanh %55 : vector<8x128xf32>
    %cst_31 = arith.constant 5.000000e-01 : f32
    %57 = vector.broadcast %cst_31 : f32 to vector<8x128xf32>
    %58 = arith.mulf %57, %56 : vector<8x128xf32>
    %cst_32 = arith.constant 5.000000e-01 : f32
    %59 = vector.broadcast %cst_32 : f32 to vector<8x128xf32>
    %60 = arith.addf %58, %59 : vector<8x128xf32>
    %61 = vector.extract_strided_slice %52 {offsets = [0, 128], sizes = [8, 128], strides = [1, 1]} : vector<8x512xf32> to vector<8x128xf32>
    %cst_33 = arith.constant 5.000000e-01 : f32
    %62 = vector.broadcast %cst_33 : f32 to vector<8x128xf32>
    %63 = arith.mulf %62, %61 : vector<8x128xf32>
    %64 = math.tanh %63 : vector<8x128xf32>
    %cst_34 = arith.constant 5.000000e-01 : f32
    %65 = vector.broadcast %cst_34 : f32 to vector<8x128xf32>
    %66 = arith.mulf %65, %64 : vector<8x128xf32>
    %cst_35 = arith.constant 5.000000e-01 : f32
    %67 = vector.broadcast %cst_35 : f32 to vector<8x128xf32>
    %68 = arith.addf %66, %67 : vector<8x128xf32>
    %69 = vector.extract_strided_slice %52 {offsets = [0, 256], sizes = [8, 128], strides = [1, 1]} : vector<8x512xf32> to vector<8x128xf32>
    %70 = math.tanh %69 : vector<8x128xf32>
    %71 = vector.extract_strided_slice %52 {offsets = [0, 384], sizes = [8, 128], strides = [1, 1]} : vector<8x512xf32> to vector<8x128xf32>
    %cst_36 = arith.constant 5.000000e-01 : f32
    %72 = vector.broadcast %cst_36 : f32 to vector<8x128xf32>
    %73 = arith.mulf %72, %71 : vector<8x128xf32>
    %74 = math.tanh %73 : vector<8x128xf32>
    %cst_37 = arith.constant 5.000000e-01 : f32
    %75 = vector.broadcast %cst_37 : f32 to vector<8x128xf32>
    %76 = arith.mulf %75, %74 : vector<8x128xf32>
    %cst_38 = arith.constant 5.000000e-01 : f32
    %77 = vector.broadcast %cst_38 : f32 to vector<8x128xf32>
    %78 = arith.addf %76, %77 : vector<8x128xf32>
    %79 = arith.mulf %68, %13 : vector<8x128xf32>
    %80 = arith.mulf %60, %70 : vector<8x128xf32>
    %81 = arith.addf %79, %80 : vector<8x128xf32>
    %82 = math.tanh %81 : vector<8x128xf32>
    %83 = arith.mulf %78, %82 : vector<8x128xf32>
    %c8 = arith.constant 8 : index
    %c0_39 = arith.constant 0 : index
    %84 = vector.load %arg10[%c8, %c0_39] : memref<64x512xf32, #tpu.memory_space<vmem>>, vector<8x512xf32>
    %c0_40 = arith.constant 0 : index
    %c0_41 = arith.constant 0 : index
    %85 = vector.load %arg3[%c0_40, %c0_41] : memref<128x512xf32, #tpu.memory_space<vmem>>, vector<128x512xf32>
    %cst_42 = arith.constant dense<0.000000e+00> : vector<8x512xf32>
    %86 = tpu.matmul %48, %85, %cst_42 {dimension_numbers = #tpu.dot_dimension_numbers<[1], [0], [0], [1], [0, 0, 1, 1], [], []>} : vector<8x128xf32>, vector<128x512xf32>, vector<8x512xf32> -> vector<8x512xf32>
    %87 = arith.addf %84, %86 : vector<8x512xf32>
    %88 = vector.extract_strided_slice %87 {offsets = [0, 0], sizes = [8, 128], strides = [1, 1]} : vector<8x512xf32> to vector<8x128xf32>
    %cst_43 = arith.constant 5.000000e-01 : f32
    %89 = vector.broadcast %cst_43 : f32 to vector<8x128xf32>
    %90 = arith.mulf %89, %88 : vector<8x128xf32>
    %91 = math.tanh %90 : vector<8x128xf32>
    %cst_44 = arith.constant 5.000000e-01 : f32
    %92 = vector.broadcast %cst_44 : f32 to vector<8x128xf32>
    %93 = arith.mulf %92, %91 : vector<8x128xf32>
    %cst_45 = arith.constant 5.000000e-01 : f32
    %94 = vector.broadcast %cst_45 : f32 to vector<8x128xf32>
    %95 = arith.addf %93, %94 : vector<8x128xf32>
    %96 = vector.extract_strided_slice %87 {offsets = [0, 128], sizes = [8, 128], strides = [1, 1]} : vector<8x512xf32> to vector<8x128xf32>
    %cst_46 = arith.constant 5.000000e-01 : f32
    %97 = vector.broadcast %cst_46 : f32 to vector<8x128xf32>
    %98 = arith.mulf %97, %96 : vector<8x128xf32>
    %99 = math.tanh %98 : vector<8x128xf32>
    %cst_47 = arith.constant 5.000000e-01 : f32
    %100 = vector.broadcast %cst_47 : f32 to vector<8x128xf32>
    %101 = arith.mulf %100, %99 : vector<8x128xf32>
    %cst_48 = arith.constant 5.000000e-01 : f32
    %102 = vector.broadcast %cst_48 : f32 to vector<8x128xf32>
    %103 = arith.addf %101, %102 : vector<8x128xf32>
    %104 = vector.extract_strided_slice %87 {offsets = [0, 256], sizes = [8, 128], strides = [1, 1]} : vector<8x512xf32> to vector<8x128xf32>
    %105 = math.tanh %104 : vector<8x128xf32>
    %106 = vector.extract_strided_slice %87 {offsets = [0, 384], sizes = [8, 128], strides = [1, 1]} : vector<8x512xf32> to vector<8x128xf32>
    %cst_49 = arith.constant 5.000000e-01 : f32
    %107 = vector.broadcast %cst_49 : f32 to vector<8x128xf32>
    %108 = arith.mulf %107, %106 : vector<8x128xf32>
    %109 = math.tanh %108 : vector<8x128xf32>
    %cst_50 = arith.constant 5.000000e-01 : f32
    %110 = vector.broadcast %cst_50 : f32 to vector<8x128xf32>
    %111 = arith.mulf %110, %109 : vector<8x128xf32>
    %cst_51 = arith.constant 5.000000e-01 : f32
    %112 = vector.broadcast %cst_51 : f32 to vector<8x128xf32>
    %113 = arith.addf %111, %112 : vector<8x128xf32>
    %114 = arith.mulf %103, %46 : vector<8x128xf32>
    %115 = arith.mulf %95, %105 : vector<8x128xf32>
    %116 = arith.addf %114, %115 : vector<8x128xf32>
    %117 = math.tanh %116 : vector<8x128xf32>
    %118 = arith.mulf %113, %117 : vector<8x128xf32>
    %119 = tpu.concatenate %118, %83 in 1 : vector<8x128xf32>, vector<8x128xf32> -> vector<8x256xf32>
    %c0_52 = arith.constant 0 : index
    %c0_53 = arith.constant 0 : index
    %120 = vector.load %arg5[%c0_52, %c0_53] : memref<256x512xf32, #tpu.memory_space<vmem>>, vector<256x512xf32>
    %cst_54 = arith.constant dense<0.000000e+00> : vector<8x512xf32>
    %121 = tpu.matmul %119, %120, %cst_54 {dimension_numbers = #tpu.dot_dimension_numbers<[1], [0], [0], [1], [0, 0, 1, 1], [], []>} : vector<8x256xf32>, vector<256x512xf32>, vector<8x512xf32> -> vector<8x512xf32>
    %122 = arith.addf %121, %9 : vector<8x512xf32>
    %123 = vector.extract_strided_slice %122 {offsets = [0, 0], sizes = [8, 128], strides = [1, 1]} : vector<8x512xf32> to vector<8x128xf32>
    %cst_55 = arith.constant 5.000000e-01 : f32
    %124 = vector.broadcast %cst_55 : f32 to vector<8x128xf32>
    %125 = arith.mulf %124, %123 : vector<8x128xf32>
    %126 = math.tanh %125 : vector<8x128xf32>
    %cst_56 = arith.constant 5.000000e-01 : f32
    %127 = vector.broadcast %cst_56 : f32 to vector<8x128xf32>
    %128 = arith.mulf %127, %126 : vector<8x128xf32>
    %cst_57 = arith.constant 5.000000e-01 : f32
    %129 = vector.broadcast %cst_57 : f32 to vector<8x128xf32>
    %130 = arith.addf %128, %129 : vector<8x128xf32>
    %131 = vector.extract_strided_slice %122 {offsets = [0, 128], sizes = [8, 128], strides = [1, 1]} : vector<8x512xf32> to vector<8x128xf32>
    %cst_58 = arith.constant 5.000000e-01 : f32
    %132 = vector.broadcast %cst_58 : f32 to vector<8x128xf32>
    %133 = arith.mulf %132, %131 : vector<8x128xf32>
    %134 = math.tanh %133 : vector<8x128xf32>
    %cst_59 = arith.constant 5.000000e-01 : f32
    %135 = vector.broadcast %cst_59 : f32 to vector<8x128xf32>
    %136 = arith.mulf %135, %134 : vector<8x128xf32>
    %cst_60 = arith.constant 5.000000e-01 : f32
    %137 = vector.broadcast %cst_60 : f32 to vector<8x128xf32>
    %138 = arith.addf %136, %137 : vector<8x128xf32>
    %139 = vector.extract_strided_slice %122 {offsets = [0, 256], sizes = [8, 128], strides = [1, 1]} : vector<8x512xf32> to vector<8x128xf32>
    %140 = math.tanh %139 : vector<8x128xf32>
    %141 = vector.extract_strided_slice %122 {offsets = [0, 384], sizes = [8, 128], strides = [1, 1]} : vector<8x512xf32> to vector<8x128xf32>
    %cst_61 = arith.constant 5.000000e-01 : f32
    %142 = vector.broadcast %cst_61 : f32 to vector<8x128xf32>
    %143 = arith.mulf %142, %141 : vector<8x128xf32>
    %144 = math.tanh %143 : vector<8x128xf32>
    %cst_62 = arith.constant 5.000000e-01 : f32
    %145 = vector.broadcast %cst_62 : f32 to vector<8x128xf32>
    %146 = arith.mulf %145, %144 : vector<8x128xf32>
    %cst_63 = arith.constant 5.000000e-01 : f32
    %147 = vector.broadcast %cst_63 : f32 to vector<8x128xf32>
    %148 = arith.addf %146, %147 : vector<8x128xf32>
    %149 = arith.mulf %138, %81 : vector<8x128xf32>
    %150 = arith.mulf %130, %140 : vector<8x128xf32>
    %151 = arith.addf %149, %150 : vector<8x128xf32>
    %152 = math.tanh %151 : vector<8x128xf32>
    %153 = arith.mulf %148, %152 : vector<8x128xf32>
    %c16 = arith.constant 16 : index
    %c0_64 = arith.constant 0 : index
    %154 = vector.load %arg10[%c16, %c0_64] : memref<64x512xf32, #tpu.memory_space<vmem>>, vector<8x512xf32>
    %c0_65 = arith.constant 0 : index
    %c0_66 = arith.constant 0 : index
    %155 = vector.load %arg3[%c0_65, %c0_66] : memref<128x512xf32, #tpu.memory_space<vmem>>, vector<128x512xf32>
    %cst_67 = arith.constant dense<0.000000e+00> : vector<8x512xf32>
    %156 = tpu.matmul %118, %155, %cst_67 {dimension_numbers = #tpu.dot_dimension_numbers<[1], [0], [0], [1], [0, 0, 1, 1], [], []>} : vector<8x128xf32>, vector<128x512xf32>, vector<8x512xf32> -> vector<8x512xf32>
    %157 = arith.addf %154, %156 : vector<8x512xf32>
    %158 = vector.extract_strided_slice %157 {offsets = [0, 0], sizes = [8, 128], strides = [1, 1]} : vector<8x512xf32> to vector<8x128xf32>
    %cst_68 = arith.constant 5.000000e-01 : f32
    %159 = vector.broadcast %cst_68 : f32 to vector<8x128xf32>
    %160 = arith.mulf %159, %158 : vector<8x128xf32>
    %161 = math.tanh %160 : vector<8x128xf32>
    %cst_69 = arith.constant 5.000000e-01 : f32
    %162 = vector.broadcast %cst_69 : f32 to vector<8x128xf32>
    %163 = arith.mulf %162, %161 : vector<8x128xf32>
    %cst_70 = arith.constant 5.000000e-01 : f32
    %164 = vector.broadcast %cst_70 : f32 to vector<8x128xf32>
    %165 = arith.addf %163, %164 : vector<8x128xf32>
    %166 = vector.extract_strided_slice %157 {offsets = [0, 128], sizes = [8, 128], strides = [1, 1]} : vector<8x512xf32> to vector<8x128xf32>
    %cst_71 = arith.constant 5.000000e-01 : f32
    %167 = vector.broadcast %cst_71 : f32 to vector<8x128xf32>
    %168 = arith.mulf %167, %166 : vector<8x128xf32>
    %169 = math.tanh %168 : vector<8x128xf32>
    %cst_72 = arith.constant 5.000000e-01 : f32
    %170 = vector.broadcast %cst_72 : f32 to vector<8x128xf32>
    %171 = arith.mulf %170, %169 : vector<8x128xf32>
    %cst_73 = arith.constant 5.000000e-01 : f32
    %172 = vector.broadcast %cst_73 : f32 to vector<8x128xf32>
    %173 = arith.addf %171, %172 : vector<8x128xf32>
    %174 = vector.extract_strided_slice %157 {offsets = [0, 256], sizes = [8, 128], strides = [1, 1]} : vector<8x512xf32> to vector<8x128xf32>
    %175 = math.tanh %174 : vector<8x128xf32>
    %176 = vector.extract_strided_slice %157 {offsets = [0, 384], sizes = [8, 128], strides = [1, 1]} : vector<8x512xf32> to vector<8x128xf32>
    %cst_74 = arith.constant 5.000000e-01 : f32
    %177 = vector.broadcast %cst_74 : f32 to vector<8x128xf32>
    %178 = arith.mulf %177, %176 : vector<8x128xf32>
    %179 = math.tanh %178 : vector<8x128xf32>
    %cst_75 = arith.constant 5.000000e-01 : f32
    %180 = vector.broadcast %cst_75 : f32 to vector<8x128xf32>
    %181 = arith.mulf %180, %179 : vector<8x128xf32>
    %cst_76 = arith.constant 5.000000e-01 : f32
    %182 = vector.broadcast %cst_76 : f32 to vector<8x128xf32>
    %183 = arith.addf %181, %182 : vector<8x128xf32>
    %184 = arith.mulf %173, %116 : vector<8x128xf32>
    %185 = arith.mulf %165, %175 : vector<8x128xf32>
    %186 = arith.addf %184, %185 : vector<8x128xf32>
    %187 = math.tanh %186 : vector<8x128xf32>
    %188 = arith.mulf %183, %187 : vector<8x128xf32>
    %189 = tpu.concatenate %188, %153 in 1 : vector<8x128xf32>, vector<8x128xf32> -> vector<8x256xf32>
    %c0_77 = arith.constant 0 : index
    %c0_78 = arith.constant 0 : index
    %190 = vector.load %arg5[%c0_77, %c0_78] : memref<256x512xf32, #tpu.memory_space<vmem>>, vector<256x512xf32>
    %cst_79 = arith.constant dense<0.000000e+00> : vector<8x512xf32>
    %191 = tpu.matmul %189, %190, %cst_79 {dimension_numbers = #tpu.dot_dimension_numbers<[1], [0], [0], [1], [0, 0, 1, 1], [], []>} : vector<8x256xf32>, vector<256x512xf32>, vector<8x512xf32> -> vector<8x512xf32>
    %192 = arith.addf %191, %9 : vector<8x512xf32>
    %193 = vector.extract_strided_slice %192 {offsets = [0, 0], sizes = [8, 128], strides = [1, 1]} : vector<8x512xf32> to vector<8x128xf32>
    %cst_80 = arith.constant 5.000000e-01 : f32
    %194 = vector.broadcast %cst_80 : f32 to vector<8x128xf32>
    %195 = arith.mulf %194, %193 : vector<8x128xf32>
    %196 = math.tanh %195 : vector<8x128xf32>
    %cst_81 = arith.constant 5.000000e-01 : f32
    %197 = vector.broadcast %cst_81 : f32 to vector<8x128xf32>
    %198 = arith.mulf %197, %196 : vector<8x128xf32>
    %cst_82 = arith.constant 5.000000e-01 : f32
    %199 = vector.broadcast %cst_82 : f32 to vector<8x128xf32>
    %200 = arith.addf %198, %199 : vector<8x128xf32>
    %201 = vector.extract_strided_slice %192 {offsets = [0, 128], sizes = [8, 128], strides = [1, 1]} : vector<8x512xf32> to vector<8x128xf32>
    %cst_83 = arith.constant 5.000000e-01 : f32
    %202 = vector.broadcast %cst_83 : f32 to vector<8x128xf32>
    %203 = arith.mulf %202, %201 : vector<8x128xf32>
    %204 = math.tanh %203 : vector<8x128xf32>
    %cst_84 = arith.constant 5.000000e-01 : f32
    %205 = vector.broadcast %cst_84 : f32 to vector<8x128xf32>
    %206 = arith.mulf %205, %204 : vector<8x128xf32>
    %cst_85 = arith.constant 5.000000e-01 : f32
    %207 = vector.broadcast %cst_85 : f32 to vector<8x128xf32>
    %208 = arith.addf %206, %207 : vector<8x128xf32>
    %209 = vector.extract_strided_slice %192 {offsets = [0, 256], sizes = [8, 128], strides = [1, 1]} : vector<8x512xf32> to vector<8x128xf32>
    %210 = math.tanh %209 : vector<8x128xf32>
    %211 = vector.extract_strided_slice %192 {offsets = [0, 384], sizes = [8, 128], strides = [1, 1]} : vector<8x512xf32> to vector<8x128xf32>
    %cst_86 = arith.constant 5.000000e-01 : f32
    %212 = vector.broadcast %cst_86 : f32 to vector<8x128xf32>
    %213 = arith.mulf %212, %211 : vector<8x128xf32>
    %214 = math.tanh %213 : vector<8x128xf32>
    %cst_87 = arith.constant 5.000000e-01 : f32
    %215 = vector.broadcast %cst_87 : f32 to vector<8x128xf32>
    %216 = arith.mulf %215, %214 : vector<8x128xf32>
    %cst_88 = arith.constant 5.000000e-01 : f32
    %217 = vector.broadcast %cst_88 : f32 to vector<8x128xf32>
    %218 = arith.addf %216, %217 : vector<8x128xf32>
    %219 = arith.mulf %208, %151 : vector<8x128xf32>
    %220 = arith.mulf %200, %210 : vector<8x128xf32>
    %221 = arith.addf %219, %220 : vector<8x128xf32>
    %222 = math.tanh %221 : vector<8x128xf32>
    %223 = arith.mulf %218, %222 : vector<8x128xf32>
    %c24 = arith.constant 24 : index
    %c0_89 = arith.constant 0 : index
    %224 = vector.load %arg10[%c24, %c0_89] : memref<64x512xf32, #tpu.memory_space<vmem>>, vector<8x512xf32>
    %c0_90 = arith.constant 0 : index
    %c0_91 = arith.constant 0 : index
    %225 = vector.load %arg3[%c0_90, %c0_91] : memref<128x512xf32, #tpu.memory_space<vmem>>, vector<128x512xf32>
    %cst_92 = arith.constant dense<0.000000e+00> : vector<8x512xf32>
    %226 = tpu.matmul %188, %225, %cst_92 {dimension_numbers = #tpu.dot_dimension_numbers<[1], [0], [0], [1], [0, 0, 1, 1], [], []>} : vector<8x128xf32>, vector<128x512xf32>, vector<8x512xf32> -> vector<8x512xf32>
    %227 = arith.addf %224, %226 : vector<8x512xf32>
    %228 = vector.extract_strided_slice %227 {offsets = [0, 0], sizes = [8, 128], strides = [1, 1]} : vector<8x512xf32> to vector<8x128xf32>
    %cst_93 = arith.constant 5.000000e-01 : f32
    %229 = vector.broadcast %cst_93 : f32 to vector<8x128xf32>
    %230 = arith.mulf %229, %228 : vector<8x128xf32>
    %231 = math.tanh %230 : vector<8x128xf32>
    %cst_94 = arith.constant 5.000000e-01 : f32
    %232 = vector.broadcast %cst_94 : f32 to vector<8x128xf32>
    %233 = arith.mulf %232, %231 : vector<8x128xf32>
    %cst_95 = arith.constant 5.000000e-01 : f32
    %234 = vector.broadcast %cst_95 : f32 to vector<8x128xf32>
    %235 = arith.addf %233, %234 : vector<8x128xf32>
    %236 = vector.extract_strided_slice %227 {offsets = [0, 128], sizes = [8, 128], strides = [1, 1]} : vector<8x512xf32> to vector<8x128xf32>
    %cst_96 = arith.constant 5.000000e-01 : f32
    %237 = vector.broadcast %cst_96 : f32 to vector<8x128xf32>
    %238 = arith.mulf %237, %236 : vector<8x128xf32>
    %239 = math.tanh %238 : vector<8x128xf32>
    %cst_97 = arith.constant 5.000000e-01 : f32
    %240 = vector.broadcast %cst_97 : f32 to vector<8x128xf32>
    %241 = arith.mulf %240, %239 : vector<8x128xf32>
    %cst_98 = arith.constant 5.000000e-01 : f32
    %242 = vector.broadcast %cst_98 : f32 to vector<8x128xf32>
    %243 = arith.addf %241, %242 : vector<8x128xf32>
    %244 = vector.extract_strided_slice %227 {offsets = [0, 256], sizes = [8, 128], strides = [1, 1]} : vector<8x512xf32> to vector<8x128xf32>
    %245 = math.tanh %244 : vector<8x128xf32>
    %246 = vector.extract_strided_slice %227 {offsets = [0, 384], sizes = [8, 128], strides = [1, 1]} : vector<8x512xf32> to vector<8x128xf32>
    %cst_99 = arith.constant 5.000000e-01 : f32
    %247 = vector.broadcast %cst_99 : f32 to vector<8x128xf32>
    %248 = arith.mulf %247, %246 : vector<8x128xf32>
    %249 = math.tanh %248 : vector<8x128xf32>
    %cst_100 = arith.constant 5.000000e-01 : f32
    %250 = vector.broadcast %cst_100 : f32 to vector<8x128xf32>
    %251 = arith.mulf %250, %249 : vector<8x128xf32>
    %cst_101 = arith.constant 5.000000e-01 : f32
    %252 = vector.broadcast %cst_101 : f32 to vector<8x128xf32>
    %253 = arith.addf %251, %252 : vector<8x128xf32>
    %254 = arith.mulf %243, %186 : vector<8x128xf32>
    %255 = arith.mulf %235, %245 : vector<8x128xf32>
    %256 = arith.addf %254, %255 : vector<8x128xf32>
    %257 = math.tanh %256 : vector<8x128xf32>
    %258 = arith.mulf %253, %257 : vector<8x128xf32>
    %259 = tpu.concatenate %258, %223 in 1 : vector<8x128xf32>, vector<8x128xf32> -> vector<8x256xf32>
    %c0_102 = arith.constant 0 : index
    %c0_103 = arith.constant 0 : index
    %260 = vector.load %arg5[%c0_102, %c0_103] : memref<256x512xf32, #tpu.memory_space<vmem>>, vector<256x512xf32>
    %cst_104 = arith.constant dense<0.000000e+00> : vector<8x512xf32>
    %261 = tpu.matmul %259, %260, %cst_104 {dimension_numbers = #tpu.dot_dimension_numbers<[1], [0], [0], [1], [0, 0, 1, 1], [], []>} : vector<8x256xf32>, vector<256x512xf32>, vector<8x512xf32> -> vector<8x512xf32>
    %262 = arith.addf %261, %9 : vector<8x512xf32>
    %263 = vector.extract_strided_slice %262 {offsets = [0, 0], sizes = [8, 128], strides = [1, 1]} : vector<8x512xf32> to vector<8x128xf32>
    %cst_105 = arith.constant 5.000000e-01 : f32
    %264 = vector.broadcast %cst_105 : f32 to vector<8x128xf32>
    %265 = arith.mulf %264, %263 : vector<8x128xf32>
    %266 = math.tanh %265 : vector<8x128xf32>
    %cst_106 = arith.constant 5.000000e-01 : f32
    %267 = vector.broadcast %cst_106 : f32 to vector<8x128xf32>
    %268 = arith.mulf %267, %266 : vector<8x128xf32>
    %cst_107 = arith.constant 5.000000e-01 : f32
    %269 = vector.broadcast %cst_107 : f32 to vector<8x128xf32>
    %270 = arith.addf %268, %269 : vector<8x128xf32>
    %271 = vector.extract_strided_slice %262 {offsets = [0, 128], sizes = [8, 128], strides = [1, 1]} : vector<8x512xf32> to vector<8x128xf32>
    %cst_108 = arith.constant 5.000000e-01 : f32
    %272 = vector.broadcast %cst_108 : f32 to vector<8x128xf32>
    %273 = arith.mulf %272, %271 : vector<8x128xf32>
    %274 = math.tanh %273 : vector<8x128xf32>
    %cst_109 = arith.constant 5.000000e-01 : f32
    %275 = vector.broadcast %cst_109 : f32 to vector<8x128xf32>
    %276 = arith.mulf %275, %274 : vector<8x128xf32>
    %cst_110 = arith.constant 5.000000e-01 : f32
    %277 = vector.broadcast %cst_110 : f32 to vector<8x128xf32>
    %278 = arith.addf %276, %277 : vector<8x128xf32>
    %279 = vector.extract_strided_slice %262 {offsets = [0, 256], sizes = [8, 128], strides = [1, 1]} : vector<8x512xf32> to vector<8x128xf32>
    %280 = math.tanh %279 : vector<8x128xf32>
    %281 = vector.extract_strided_slice %262 {offsets = [0, 384], sizes = [8, 128], strides = [1, 1]} : vector<8x512xf32> to vector<8x128xf32>
    %cst_111 = arith.constant 5.000000e-01 : f32
    %282 = vector.broadcast %cst_111 : f32 to vector<8x128xf32>
    %283 = arith.mulf %282, %281 : vector<8x128xf32>
    %284 = math.tanh %283 : vector<8x128xf32>
    %cst_112 = arith.constant 5.000000e-01 : f32
    %285 = vector.broadcast %cst_112 : f32 to vector<8x128xf32>
    %286 = arith.mulf %285, %284 : vector<8x128xf32>
    %cst_113 = arith.constant 5.000000e-01 : f32
    %287 = vector.broadcast %cst_113 : f32 to vector<8x128xf32>
    %288 = arith.addf %286, %287 : vector<8x128xf32>
    %289 = arith.mulf %278, %221 : vector<8x128xf32>
    %290 = arith.mulf %270, %280 : vector<8x128xf32>
    %291 = arith.addf %289, %290 : vector<8x128xf32>
    %292 = math.tanh %291 : vector<8x128xf32>
    %293 = arith.mulf %288, %292 : vector<8x128xf32>
    %c32 = arith.constant 32 : index
    %c0_114 = arith.constant 0 : index
    %294 = vector.load %arg10[%c32, %c0_114] : memref<64x512xf32, #tpu.memory_space<vmem>>, vector<8x512xf32>
    %c0_115 = arith.constant 0 : index
    %c0_116 = arith.constant 0 : index
    %295 = vector.load %arg3[%c0_115, %c0_116] : memref<128x512xf32, #tpu.memory_space<vmem>>, vector<128x512xf32>
    %cst_117 = arith.constant dense<0.000000e+00> : vector<8x512xf32>
    %296 = tpu.matmul %258, %295, %cst_117 {dimension_numbers = #tpu.dot_dimension_numbers<[1], [0], [0], [1], [0, 0, 1, 1], [], []>} : vector<8x128xf32>, vector<128x512xf32>, vector<8x512xf32> -> vector<8x512xf32>
    %297 = arith.addf %294, %296 : vector<8x512xf32>
    %298 = vector.extract_strided_slice %297 {offsets = [0, 0], sizes = [8, 128], strides = [1, 1]} : vector<8x512xf32> to vector<8x128xf32>
    %cst_118 = arith.constant 5.000000e-01 : f32
    %299 = vector.broadcast %cst_118 : f32 to vector<8x128xf32>
    %300 = arith.mulf %299, %298 : vector<8x128xf32>
    %301 = math.tanh %300 : vector<8x128xf32>
    %cst_119 = arith.constant 5.000000e-01 : f32
    %302 = vector.broadcast %cst_119 : f32 to vector<8x128xf32>
    %303 = arith.mulf %302, %301 : vector<8x128xf32>
    %cst_120 = arith.constant 5.000000e-01 : f32
    %304 = vector.broadcast %cst_120 : f32 to vector<8x128xf32>
    %305 = arith.addf %303, %304 : vector<8x128xf32>
    %306 = vector.extract_strided_slice %297 {offsets = [0, 128], sizes = [8, 128], strides = [1, 1]} : vector<8x512xf32> to vector<8x128xf32>
    %cst_121 = arith.constant 5.000000e-01 : f32
    %307 = vector.broadcast %cst_121 : f32 to vector<8x128xf32>
    %308 = arith.mulf %307, %306 : vector<8x128xf32>
    %309 = math.tanh %308 : vector<8x128xf32>
    %cst_122 = arith.constant 5.000000e-01 : f32
    %310 = vector.broadcast %cst_122 : f32 to vector<8x128xf32>
    %311 = arith.mulf %310, %309 : vector<8x128xf32>
    %cst_123 = arith.constant 5.000000e-01 : f32
    %312 = vector.broadcast %cst_123 : f32 to vector<8x128xf32>
    %313 = arith.addf %311, %312 : vector<8x128xf32>
    %314 = vector.extract_strided_slice %297 {offsets = [0, 256], sizes = [8, 128], strides = [1, 1]} : vector<8x512xf32> to vector<8x128xf32>
    %315 = math.tanh %314 : vector<8x128xf32>
    %316 = vector.extract_strided_slice %297 {offsets = [0, 384], sizes = [8, 128], strides = [1, 1]} : vector<8x512xf32> to vector<8x128xf32>
    %cst_124 = arith.constant 5.000000e-01 : f32
    %317 = vector.broadcast %cst_124 : f32 to vector<8x128xf32>
    %318 = arith.mulf %317, %316 : vector<8x128xf32>
    %319 = math.tanh %318 : vector<8x128xf32>
    %cst_125 = arith.constant 5.000000e-01 : f32
    %320 = vector.broadcast %cst_125 : f32 to vector<8x128xf32>
    %321 = arith.mulf %320, %319 : vector<8x128xf32>
    %cst_126 = arith.constant 5.000000e-01 : f32
    %322 = vector.broadcast %cst_126 : f32 to vector<8x128xf32>
    %323 = arith.addf %321, %322 : vector<8x128xf32>
    %324 = arith.mulf %313, %256 : vector<8x128xf32>
    %325 = arith.mulf %305, %315 : vector<8x128xf32>
    %326 = arith.addf %324, %325 : vector<8x128xf32>
    %327 = math.tanh %326 : vector<8x128xf32>
    %328 = arith.mulf %323, %327 : vector<8x128xf32>
    %329 = tpu.concatenate %328, %293 in 1 : vector<8x128xf32>, vector<8x128xf32> -> vector<8x256xf32>
    %c0_127 = arith.constant 0 : index
    %c0_128 = arith.constant 0 : index
    %330 = vector.load %arg5[%c0_127, %c0_128] : memref<256x512xf32, #tpu.memory_space<vmem>>, vector<256x512xf32>
    %cst_129 = arith.constant dense<0.000000e+00> : vector<8x512xf32>
    %331 = tpu.matmul %329, %330, %cst_129 {dimension_numbers = #tpu.dot_dimension_numbers<[1], [0], [0], [1], [0, 0, 1, 1], [], []>} : vector<8x256xf32>, vector<256x512xf32>, vector<8x512xf32> -> vector<8x512xf32>
    %332 = arith.addf %331, %9 : vector<8x512xf32>
    %333 = vector.extract_strided_slice %332 {offsets = [0, 0], sizes = [8, 128], strides = [1, 1]} : vector<8x512xf32> to vector<8x128xf32>
    %cst_130 = arith.constant 5.000000e-01 : f32
    %334 = vector.broadcast %cst_130 : f32 to vector<8x128xf32>
    %335 = arith.mulf %334, %333 : vector<8x128xf32>
    %336 = math.tanh %335 : vector<8x128xf32>
    %cst_131 = arith.constant 5.000000e-01 : f32
    %337 = vector.broadcast %cst_131 : f32 to vector<8x128xf32>
    %338 = arith.mulf %337, %336 : vector<8x128xf32>
    %cst_132 = arith.constant 5.000000e-01 : f32
    %339 = vector.broadcast %cst_132 : f32 to vector<8x128xf32>
    %340 = arith.addf %338, %339 : vector<8x128xf32>
    %341 = vector.extract_strided_slice %332 {offsets = [0, 128], sizes = [8, 128], strides = [1, 1]} : vector<8x512xf32> to vector<8x128xf32>
    %cst_133 = arith.constant 5.000000e-01 : f32
    %342 = vector.broadcast %cst_133 : f32 to vector<8x128xf32>
    %343 = arith.mulf %342, %341 : vector<8x128xf32>
    %344 = math.tanh %343 : vector<8x128xf32>
    %cst_134 = arith.constant 5.000000e-01 : f32
    %345 = vector.broadcast %cst_134 : f32 to vector<8x128xf32>
    %346 = arith.mulf %345, %344 : vector<8x128xf32>
    %cst_135 = arith.constant 5.000000e-01 : f32
    %347 = vector.broadcast %cst_135 : f32 to vector<8x128xf32>
    %348 = arith.addf %346, %347 : vector<8x128xf32>
    %349 = vector.extract_strided_slice %332 {offsets = [0, 256], sizes = [8, 128], strides = [1, 1]} : vector<8x512xf32> to vector<8x128xf32>
    %350 = math.tanh %349 : vector<8x128xf32>
    %351 = vector.extract_strided_slice %332 {offsets = [0, 384], sizes = [8, 128], strides = [1, 1]} : vector<8x512xf32> to vector<8x128xf32>
    %cst_136 = arith.constant 5.000000e-01 : f32
    %352 = vector.broadcast %cst_136 : f32 to vector<8x128xf32>
    %353 = arith.mulf %352, %351 : vector<8x128xf32>
    %354 = math.tanh %353 : vector<8x128xf32>
    %cst_137 = arith.constant 5.000000e-01 : f32
    %355 = vector.broadcast %cst_137 : f32 to vector<8x128xf32>
    %356 = arith.mulf %355, %354 : vector<8x128xf32>
    %cst_138 = arith.constant 5.000000e-01 : f32
    %357 = vector.broadcast %cst_138 : f32 to vector<8x128xf32>
    %358 = arith.addf %356, %357 : vector<8x128xf32>
    %359 = arith.mulf %348, %291 : vector<8x128xf32>
    %360 = arith.mulf %340, %350 : vector<8x128xf32>
    %361 = arith.addf %359, %360 : vector<8x128xf32>
    %362 = math.tanh %361 : vector<8x128xf32>
    %363 = arith.mulf %358, %362 : vector<8x128xf32>
    %c40 = arith.constant 40 : index
    %c0_139 = arith.constant 0 : index
    %364 = vector.load %arg10[%c40, %c0_139] : memref<64x512xf32, #tpu.memory_space<vmem>>, vector<8x512xf32>
    %c0_140 = arith.constant 0 : index
    %c0_141 = arith.constant 0 : index
    %365 = vector.load %arg3[%c0_140, %c0_141] : memref<128x512xf32, #tpu.memory_space<vmem>>, vector<128x512xf32>
    %cst_142 = arith.constant dense<0.000000e+00> : vector<8x512xf32>
    %366 = tpu.matmul %328, %365, %cst_142 {dimension_numbers = #tpu.dot_dimension_numbers<[1], [0], [0], [1], [0, 0, 1, 1], [], []>} : vector<8x128xf32>, vector<128x512xf32>, vector<8x512xf32> -> vector<8x512xf32>
    %367 = arith.addf %364, %366 : vector<8x512xf32>
    %368 = vector.extract_strided_slice %367 {offsets = [0, 0], sizes = [8, 128], strides = [1, 1]} : vector<8x512xf32> to vector<8x128xf32>
    %cst_143 = arith.constant 5.000000e-01 : f32
    %369 = vector.broadcast %cst_143 : f32 to vector<8x128xf32>
    %370 = arith.mulf %369, %368 : vector<8x128xf32>
    %371 = math.tanh %370 : vector<8x128xf32>
    %cst_144 = arith.constant 5.000000e-01 : f32
    %372 = vector.broadcast %cst_144 : f32 to vector<8x128xf32>
    %373 = arith.mulf %372, %371 : vector<8x128xf32>
    %cst_145 = arith.constant 5.000000e-01 : f32
    %374 = vector.broadcast %cst_145 : f32 to vector<8x128xf32>
    %375 = arith.addf %373, %374 : vector<8x128xf32>
    %376 = vector.extract_strided_slice %367 {offsets = [0, 128], sizes = [8, 128], strides = [1, 1]} : vector<8x512xf32> to vector<8x128xf32>
    %cst_146 = arith.constant 5.000000e-01 : f32
    %377 = vector.broadcast %cst_146 : f32 to vector<8x128xf32>
    %378 = arith.mulf %377, %376 : vector<8x128xf32>
    %379 = math.tanh %378 : vector<8x128xf32>
    %cst_147 = arith.constant 5.000000e-01 : f32
    %380 = vector.broadcast %cst_147 : f32 to vector<8x128xf32>
    %381 = arith.mulf %380, %379 : vector<8x128xf32>
    %cst_148 = arith.constant 5.000000e-01 : f32
    %382 = vector.broadcast %cst_148 : f32 to vector<8x128xf32>
    %383 = arith.addf %381, %382 : vector<8x128xf32>
    %384 = vector.extract_strided_slice %367 {offsets = [0, 256], sizes = [8, 128], strides = [1, 1]} : vector<8x512xf32> to vector<8x128xf32>
    %385 = math.tanh %384 : vector<8x128xf32>
    %386 = vector.extract_strided_slice %367 {offsets = [0, 384], sizes = [8, 128], strides = [1, 1]} : vector<8x512xf32> to vector<8x128xf32>
    %cst_149 = arith.constant 5.000000e-01 : f32
    %387 = vector.broadcast %cst_149 : f32 to vector<8x128xf32>
    %388 = arith.mulf %387, %386 : vector<8x128xf32>
    %389 = math.tanh %388 : vector<8x128xf32>
    %cst_150 = arith.constant 5.000000e-01 : f32
    %390 = vector.broadcast %cst_150 : f32 to vector<8x128xf32>
    %391 = arith.mulf %390, %389 : vector<8x128xf32>
    %cst_151 = arith.constant 5.000000e-01 : f32
    %392 = vector.broadcast %cst_151 : f32 to vector<8x128xf32>
    %393 = arith.addf %391, %392 : vector<8x128xf32>
    %394 = arith.mulf %383, %326 : vector<8x128xf32>
    %395 = arith.mulf %375, %385 : vector<8x128xf32>
    %396 = arith.addf %394, %395 : vector<8x128xf32>
    %397 = math.tanh %396 : vector<8x128xf32>
    %398 = arith.mulf %393, %397 : vector<8x128xf32>
    %399 = tpu.concatenate %398, %363 in 1 : vector<8x128xf32>, vector<8x128xf32> -> vector<8x256xf32>
    %c0_152 = arith.constant 0 : index
    %c0_153 = arith.constant 0 : index
    %400 = vector.load %arg5[%c0_152, %c0_153] : memref<256x512xf32, #tpu.memory_space<vmem>>, vector<256x512xf32>
    %cst_154 = arith.constant dense<0.000000e+00> : vector<8x512xf32>
    %401 = tpu.matmul %399, %400, %cst_154 {dimension_numbers = #tpu.dot_dimension_numbers<[1], [0], [0], [1], [0, 0, 1, 1], [], []>} : vector<8x256xf32>, vector<256x512xf32>, vector<8x512xf32> -> vector<8x512xf32>
    %402 = arith.addf %401, %9 : vector<8x512xf32>
    %403 = vector.extract_strided_slice %402 {offsets = [0, 0], sizes = [8, 128], strides = [1, 1]} : vector<8x512xf32> to vector<8x128xf32>
    %cst_155 = arith.constant 5.000000e-01 : f32
    %404 = vector.broadcast %cst_155 : f32 to vector<8x128xf32>
    %405 = arith.mulf %404, %403 : vector<8x128xf32>
    %406 = math.tanh %405 : vector<8x128xf32>
    %cst_156 = arith.constant 5.000000e-01 : f32
    %407 = vector.broadcast %cst_156 : f32 to vector<8x128xf32>
    %408 = arith.mulf %407, %406 : vector<8x128xf32>
    %cst_157 = arith.constant 5.000000e-01 : f32
    %409 = vector.broadcast %cst_157 : f32 to vector<8x128xf32>
    %410 = arith.addf %408, %409 : vector<8x128xf32>
    %411 = vector.extract_strided_slice %402 {offsets = [0, 128], sizes = [8, 128], strides = [1, 1]} : vector<8x512xf32> to vector<8x128xf32>
    %cst_158 = arith.constant 5.000000e-01 : f32
    %412 = vector.broadcast %cst_158 : f32 to vector<8x128xf32>
    %413 = arith.mulf %412, %411 : vector<8x128xf32>
    %414 = math.tanh %413 : vector<8x128xf32>
    %cst_159 = arith.constant 5.000000e-01 : f32
    %415 = vector.broadcast %cst_159 : f32 to vector<8x128xf32>
    %416 = arith.mulf %415, %414 : vector<8x128xf32>
    %cst_160 = arith.constant 5.000000e-01 : f32
    %417 = vector.broadcast %cst_160 : f32 to vector<8x128xf32>
    %418 = arith.addf %416, %417 : vector<8x128xf32>
    %419 = vector.extract_strided_slice %402 {offsets = [0, 256], sizes = [8, 128], strides = [1, 1]} : vector<8x512xf32> to vector<8x128xf32>
    %420 = math.tanh %419 : vector<8x128xf32>
    %421 = vector.extract_strided_slice %402 {offsets = [0, 384], sizes = [8, 128], strides = [1, 1]} : vector<8x512xf32> to vector<8x128xf32>
    %cst_161 = arith.constant 5.000000e-01 : f32
    %422 = vector.broadcast %cst_161 : f32 to vector<8x128xf32>
    %423 = arith.mulf %422, %421 : vector<8x128xf32>
    %424 = math.tanh %423 : vector<8x128xf32>
    %cst_162 = arith.constant 5.000000e-01 : f32
    %425 = vector.broadcast %cst_162 : f32 to vector<8x128xf32>
    %426 = arith.mulf %425, %424 : vector<8x128xf32>
    %cst_163 = arith.constant 5.000000e-01 : f32
    %427 = vector.broadcast %cst_163 : f32 to vector<8x128xf32>
    %428 = arith.addf %426, %427 : vector<8x128xf32>
    %429 = arith.mulf %418, %361 : vector<8x128xf32>
    %430 = arith.mulf %410, %420 : vector<8x128xf32>
    %431 = arith.addf %429, %430 : vector<8x128xf32>
    %432 = math.tanh %431 : vector<8x128xf32>
    %433 = arith.mulf %428, %432 : vector<8x128xf32>
    %c48 = arith.constant 48 : index
    %c0_164 = arith.constant 0 : index
    %434 = vector.load %arg10[%c48, %c0_164] : memref<64x512xf32, #tpu.memory_space<vmem>>, vector<8x512xf32>
    %c0_165 = arith.constant 0 : index
    %c0_166 = arith.constant 0 : index
    %435 = vector.load %arg3[%c0_165, %c0_166] : memref<128x512xf32, #tpu.memory_space<vmem>>, vector<128x512xf32>
    %cst_167 = arith.constant dense<0.000000e+00> : vector<8x512xf32>
    %436 = tpu.matmul %398, %435, %cst_167 {dimension_numbers = #tpu.dot_dimension_numbers<[1], [0], [0], [1], [0, 0, 1, 1], [], []>} : vector<8x128xf32>, vector<128x512xf32>, vector<8x512xf32> -> vector<8x512xf32>
    %437 = arith.addf %434, %436 : vector<8x512xf32>
    %438 = vector.extract_strided_slice %437 {offsets = [0, 0], sizes = [8, 128], strides = [1, 1]} : vector<8x512xf32> to vector<8x128xf32>
    %cst_168 = arith.constant 5.000000e-01 : f32
    %439 = vector.broadcast %cst_168 : f32 to vector<8x128xf32>
    %440 = arith.mulf %439, %438 : vector<8x128xf32>
    %441 = math.tanh %440 : vector<8x128xf32>
    %cst_169 = arith.constant 5.000000e-01 : f32
    %442 = vector.broadcast %cst_169 : f32 to vector<8x128xf32>
    %443 = arith.mulf %442, %441 : vector<8x128xf32>
    %cst_170 = arith.constant 5.000000e-01 : f32
    %444 = vector.broadcast %cst_170 : f32 to vector<8x128xf32>
    %445 = arith.addf %443, %444 : vector<8x128xf32>
    %446 = vector.extract_strided_slice %437 {offsets = [0, 128], sizes = [8, 128], strides = [1, 1]} : vector<8x512xf32> to vector<8x128xf32>
    %cst_171 = arith.constant 5.000000e-01 : f32
    %447 = vector.broadcast %cst_171 : f32 to vector<8x128xf32>
    %448 = arith.mulf %447, %446 : vector<8x128xf32>
    %449 = math.tanh %448 : vector<8x128xf32>
    %cst_172 = arith.constant 5.000000e-01 : f32
    %450 = vector.broadcast %cst_172 : f32 to vector<8x128xf32>
    %451 = arith.mulf %450, %449 : vector<8x128xf32>
    %cst_173 = arith.constant 5.000000e-01 : f32
    %452 = vector.broadcast %cst_173 : f32 to vector<8x128xf32>
    %453 = arith.addf %451, %452 : vector<8x128xf32>
    %454 = vector.extract_strided_slice %437 {offsets = [0, 256], sizes = [8, 128], strides = [1, 1]} : vector<8x512xf32> to vector<8x128xf32>
    %455 = math.tanh %454 : vector<8x128xf32>
    %456 = vector.extract_strided_slice %437 {offsets = [0, 384], sizes = [8, 128], strides = [1, 1]} : vector<8x512xf32> to vector<8x128xf32>
    %cst_174 = arith.constant 5.000000e-01 : f32
    %457 = vector.broadcast %cst_174 : f32 to vector<8x128xf32>
    %458 = arith.mulf %457, %456 : vector<8x128xf32>
    %459 = math.tanh %458 : vector<8x128xf32>
    %cst_175 = arith.constant 5.000000e-01 : f32
    %460 = vector.broadcast %cst_175 : f32 to vector<8x128xf32>
    %461 = arith.mulf %460, %459 : vector<8x128xf32>
    %cst_176 = arith.constant 5.000000e-01 : f32
    %462 = vector.broadcast %cst_176 : f32 to vector<8x128xf32>
    %463 = arith.addf %461, %462 : vector<8x128xf32>
    %464 = arith.mulf %453, %396 : vector<8x128xf32>
    %465 = arith.mulf %445, %455 : vector<8x128xf32>
    %466 = arith.addf %464, %465 : vector<8x128xf32>
    %467 = math.tanh %466 : vector<8x128xf32>
    %468 = arith.mulf %463, %467 : vector<8x128xf32>
    %469 = tpu.concatenate %468, %433 in 1 : vector<8x128xf32>, vector<8x128xf32> -> vector<8x256xf32>
    %c0_177 = arith.constant 0 : index
    %c0_178 = arith.constant 0 : index
    %470 = vector.load %arg5[%c0_177, %c0_178] : memref<256x512xf32, #tpu.memory_space<vmem>>, vector<256x512xf32>
    %cst_179 = arith.constant dense<0.000000e+00> : vector<8x512xf32>
    %471 = tpu.matmul %469, %470, %cst_179 {dimension_numbers = #tpu.dot_dimension_numbers<[1], [0], [0], [1], [0, 0, 1, 1], [], []>} : vector<8x256xf32>, vector<256x512xf32>, vector<8x512xf32> -> vector<8x512xf32>
    %472 = arith.addf %471, %9 : vector<8x512xf32>
    %473 = vector.extract_strided_slice %472 {offsets = [0, 0], sizes = [8, 128], strides = [1, 1]} : vector<8x512xf32> to vector<8x128xf32>
    %cst_180 = arith.constant 5.000000e-01 : f32
    %474 = vector.broadcast %cst_180 : f32 to vector<8x128xf32>
    %475 = arith.mulf %474, %473 : vector<8x128xf32>
    %476 = math.tanh %475 : vector<8x128xf32>
    %cst_181 = arith.constant 5.000000e-01 : f32
    %477 = vector.broadcast %cst_181 : f32 to vector<8x128xf32>
    %478 = arith.mulf %477, %476 : vector<8x128xf32>
    %cst_182 = arith.constant 5.000000e-01 : f32
    %479 = vector.broadcast %cst_182 : f32 to vector<8x128xf32>
    %480 = arith.addf %478, %479 : vector<8x128xf32>
    %481 = vector.extract_strided_slice %472 {offsets = [0, 128], sizes = [8, 128], strides = [1, 1]} : vector<8x512xf32> to vector<8x128xf32>
    %cst_183 = arith.constant 5.000000e-01 : f32
    %482 = vector.broadcast %cst_183 : f32 to vector<8x128xf32>
    %483 = arith.mulf %482, %481 : vector<8x128xf32>
    %484 = math.tanh %483 : vector<8x128xf32>
    %cst_184 = arith.constant 5.000000e-01 : f32
    %485 = vector.broadcast %cst_184 : f32 to vector<8x128xf32>
    %486 = arith.mulf %485, %484 : vector<8x128xf32>
    %cst_185 = arith.constant 5.000000e-01 : f32
    %487 = vector.broadcast %cst_185 : f32 to vector<8x128xf32>
    %488 = arith.addf %486, %487 : vector<8x128xf32>
    %489 = vector.extract_strided_slice %472 {offsets = [0, 256], sizes = [8, 128], strides = [1, 1]} : vector<8x512xf32> to vector<8x128xf32>
    %490 = math.tanh %489 : vector<8x128xf32>
    %491 = vector.extract_strided_slice %472 {offsets = [0, 384], sizes = [8, 128], strides = [1, 1]} : vector<8x512xf32> to vector<8x128xf32>
    %cst_186 = arith.constant 5.000000e-01 : f32
    %492 = vector.broadcast %cst_186 : f32 to vector<8x128xf32>
    %493 = arith.mulf %492, %491 : vector<8x128xf32>
    %494 = math.tanh %493 : vector<8x128xf32>
    %cst_187 = arith.constant 5.000000e-01 : f32
    %495 = vector.broadcast %cst_187 : f32 to vector<8x128xf32>
    %496 = arith.mulf %495, %494 : vector<8x128xf32>
    %cst_188 = arith.constant 5.000000e-01 : f32
    %497 = vector.broadcast %cst_188 : f32 to vector<8x128xf32>
    %498 = arith.addf %496, %497 : vector<8x128xf32>
    %499 = arith.mulf %488, %431 : vector<8x128xf32>
    %500 = arith.mulf %480, %490 : vector<8x128xf32>
    %501 = arith.addf %499, %500 : vector<8x128xf32>
    %502 = math.tanh %501 : vector<8x128xf32>
    %503 = arith.mulf %498, %502 : vector<8x128xf32>
    %c56 = arith.constant 56 : index
    %c0_189 = arith.constant 0 : index
    %504 = vector.load %arg10[%c56, %c0_189] : memref<64x512xf32, #tpu.memory_space<vmem>>, vector<8x512xf32>
    %c0_190 = arith.constant 0 : index
    %c0_191 = arith.constant 0 : index
    %505 = vector.load %arg3[%c0_190, %c0_191] : memref<128x512xf32, #tpu.memory_space<vmem>>, vector<128x512xf32>
    %cst_192 = arith.constant dense<0.000000e+00> : vector<8x512xf32>
    %506 = tpu.matmul %468, %505, %cst_192 {dimension_numbers = #tpu.dot_dimension_numbers<[1], [0], [0], [1], [0, 0, 1, 1], [], []>} : vector<8x128xf32>, vector<128x512xf32>, vector<8x512xf32> -> vector<8x512xf32>
    %507 = arith.addf %504, %506 : vector<8x512xf32>
    %508 = vector.extract_strided_slice %507 {offsets = [0, 0], sizes = [8, 128], strides = [1, 1]} : vector<8x512xf32> to vector<8x128xf32>
    %cst_193 = arith.constant 5.000000e-01 : f32
    %509 = vector.broadcast %cst_193 : f32 to vector<8x128xf32>
    %510 = arith.mulf %509, %508 : vector<8x128xf32>
    %511 = math.tanh %510 : vector<8x128xf32>
    %cst_194 = arith.constant 5.000000e-01 : f32
    %512 = vector.broadcast %cst_194 : f32 to vector<8x128xf32>
    %513 = arith.mulf %512, %511 : vector<8x128xf32>
    %cst_195 = arith.constant 5.000000e-01 : f32
    %514 = vector.broadcast %cst_195 : f32 to vector<8x128xf32>
    %515 = arith.addf %513, %514 : vector<8x128xf32>
    %516 = vector.extract_strided_slice %507 {offsets = [0, 128], sizes = [8, 128], strides = [1, 1]} : vector<8x512xf32> to vector<8x128xf32>
    %cst_196 = arith.constant 5.000000e-01 : f32
    %517 = vector.broadcast %cst_196 : f32 to vector<8x128xf32>
    %518 = arith.mulf %517, %516 : vector<8x128xf32>
    %519 = math.tanh %518 : vector<8x128xf32>
    %cst_197 = arith.constant 5.000000e-01 : f32
    %520 = vector.broadcast %cst_197 : f32 to vector<8x128xf32>
    %521 = arith.mulf %520, %519 : vector<8x128xf32>
    %cst_198 = arith.constant 5.000000e-01 : f32
    %522 = vector.broadcast %cst_198 : f32 to vector<8x128xf32>
    %523 = arith.addf %521, %522 : vector<8x128xf32>
    %524 = vector.extract_strided_slice %507 {offsets = [0, 256], sizes = [8, 128], strides = [1, 1]} : vector<8x512xf32> to vector<8x128xf32>
    %525 = math.tanh %524 : vector<8x128xf32>
    %526 = vector.extract_strided_slice %507 {offsets = [0, 384], sizes = [8, 128], strides = [1, 1]} : vector<8x512xf32> to vector<8x128xf32>
    %cst_199 = arith.constant 5.000000e-01 : f32
    %527 = vector.broadcast %cst_199 : f32 to vector<8x128xf32>
    %528 = arith.mulf %527, %526 : vector<8x128xf32>
    %529 = math.tanh %528 : vector<8x128xf32>
    %cst_200 = arith.constant 5.000000e-01 : f32
    %530 = vector.broadcast %cst_200 : f32 to vector<8x128xf32>
    %531 = arith.mulf %530, %529 : vector<8x128xf32>
    %cst_201 = arith.constant 5.000000e-01 : f32
    %532 = vector.broadcast %cst_201 : f32 to vector<8x128xf32>
    %533 = arith.addf %531, %532 : vector<8x128xf32>
    %534 = arith.mulf %523, %466 : vector<8x128xf32>
    %535 = arith.mulf %515, %525 : vector<8x128xf32>
    %536 = arith.addf %534, %535 : vector<8x128xf32>
    %537 = math.tanh %536 : vector<8x128xf32>
    %538 = arith.mulf %533, %537 : vector<8x128xf32>
    %539 = tpu.concatenate %538, %503 in 1 : vector<8x128xf32>, vector<8x128xf32> -> vector<8x256xf32>
    %c0_202 = arith.constant 0 : index
    %c0_203 = arith.constant 0 : index
    %540 = vector.load %arg5[%c0_202, %c0_203] : memref<256x512xf32, #tpu.memory_space<vmem>>, vector<256x512xf32>
    %cst_204 = arith.constant dense<0.000000e+00> : vector<8x512xf32>
    %541 = tpu.matmul %539, %540, %cst_204 {dimension_numbers = #tpu.dot_dimension_numbers<[1], [0], [0], [1], [0, 0, 1, 1], [], []>} : vector<8x256xf32>, vector<256x512xf32>, vector<8x512xf32> -> vector<8x512xf32>
    %542 = arith.addf %541, %9 : vector<8x512xf32>
    %543 = vector.extract_strided_slice %542 {offsets = [0, 0], sizes = [8, 128], strides = [1, 1]} : vector<8x512xf32> to vector<8x128xf32>
    %cst_205 = arith.constant 5.000000e-01 : f32
    %544 = vector.broadcast %cst_205 : f32 to vector<8x128xf32>
    %545 = arith.mulf %544, %543 : vector<8x128xf32>
    %546 = math.tanh %545 : vector<8x128xf32>
    %cst_206 = arith.constant 5.000000e-01 : f32
    %547 = vector.broadcast %cst_206 : f32 to vector<8x128xf32>
    %548 = arith.mulf %547, %546 : vector<8x128xf32>
    %cst_207 = arith.constant 5.000000e-01 : f32
    %549 = vector.broadcast %cst_207 : f32 to vector<8x128xf32>
    %550 = arith.addf %548, %549 : vector<8x128xf32>
    %551 = vector.extract_strided_slice %542 {offsets = [0, 128], sizes = [8, 128], strides = [1, 1]} : vector<8x512xf32> to vector<8x128xf32>
    %cst_208 = arith.constant 5.000000e-01 : f32
    %552 = vector.broadcast %cst_208 : f32 to vector<8x128xf32>
    %553 = arith.mulf %552, %551 : vector<8x128xf32>
    %554 = math.tanh %553 : vector<8x128xf32>
    %cst_209 = arith.constant 5.000000e-01 : f32
    %555 = vector.broadcast %cst_209 : f32 to vector<8x128xf32>
    %556 = arith.mulf %555, %554 : vector<8x128xf32>
    %cst_210 = arith.constant 5.000000e-01 : f32
    %557 = vector.broadcast %cst_210 : f32 to vector<8x128xf32>
    %558 = arith.addf %556, %557 : vector<8x128xf32>
    %559 = vector.extract_strided_slice %542 {offsets = [0, 256], sizes = [8, 128], strides = [1, 1]} : vector<8x512xf32> to vector<8x128xf32>
    %560 = math.tanh %559 : vector<8x128xf32>
    %561 = vector.extract_strided_slice %542 {offsets = [0, 384], sizes = [8, 128], strides = [1, 1]} : vector<8x512xf32> to vector<8x128xf32>
    %cst_211 = arith.constant 5.000000e-01 : f32
    %562 = vector.broadcast %cst_211 : f32 to vector<8x128xf32>
    %563 = arith.mulf %562, %561 : vector<8x128xf32>
    %564 = math.tanh %563 : vector<8x128xf32>
    %cst_212 = arith.constant 5.000000e-01 : f32
    %565 = vector.broadcast %cst_212 : f32 to vector<8x128xf32>
    %566 = arith.mulf %565, %564 : vector<8x128xf32>
    %cst_213 = arith.constant 5.000000e-01 : f32
    %567 = vector.broadcast %cst_213 : f32 to vector<8x128xf32>
    %568 = arith.addf %566, %567 : vector<8x128xf32>
    %569 = arith.mulf %558, %501 : vector<8x128xf32>
    %570 = arith.mulf %550, %560 : vector<8x128xf32>
    %571 = arith.addf %569, %570 : vector<8x128xf32>
    %572 = math.tanh %571 : vector<8x128xf32>
    %573 = arith.mulf %568, %572 : vector<8x128xf32>
    %c0_214 = arith.constant 0 : index
    %c0_215 = arith.constant 0 : index
    %574 = vector.load %arg7[%c0_214, %c0_215] : memref<128x128xf32, #tpu.memory_space<vmem>>, vector<128x128xf32>
    %cst_216 = arith.constant dense<0.000000e+00> : vector<8x128xf32>
    %575 = tpu.matmul %573, %574, %cst_216 {dimension_numbers = #tpu.dot_dimension_numbers<[1], [0], [0], [1], [0, 0, 1, 1], [], []>} : vector<8x128xf32>, vector<128x128xf32>, vector<8x128xf32> -> vector<8x128xf32>
    %c0_217 = arith.constant 0 : index
    %c0_218 = arith.constant 0 : index
    %576 = vector.load %arg8[%c0_217, %c0_218] : memref<1x128xf32, #tpu.memory_space<vmem>>, vector<1x128xf32>
    %577 = vector.broadcast %576 : vector<1x128xf32> to vector<8x128xf32>
    %578 = arith.addf %575, %577 : vector<8x128xf32>
    %c0_219 = arith.constant 0 : index
    %c0_220 = arith.constant 0 : index
    %579 = vector.load %arg9[%c0_219, %c0_220] : memref<8x128xf32, #tpu.memory_space<vmem>>, vector<8x128xf32>
    tpu.vector_store %arg9[%c0_219, %c0_220], %578 {strides = array<i32>} : memref<8x128xf32, #tpu.memory_space<vmem>>, vector<8x128xf32>,
    return
  }
  func.func @transform_0(%arg0: i32) -> (i32, i32) {
    %c0_i32 = arith.constant 0 : i32
    %c0_i32_0 = arith.constant 0 : i32
    %c0_i32_1 = arith.constant 0 : i32
    return %c0_i32, %c0_i32_0 : i32, i32
  }
  func.func @transform_1(%arg0: i32) -> (i32, i32) {
    %c0_i32 = arith.constant 0 : i32
    %c0_i32_0 = arith.constant 0 : i32
    %c0_i32_1 = arith.constant 0 : i32
    return %c0_i32, %c0_i32_0 : i32, i32
  }
  func.func @transform_2(%arg0: i32) -> (i32, i32) {
    %c0_i32 = arith.constant 0 : i32
    %c0_i32_0 = arith.constant 0 : i32
    %c0_i32_1 = arith.constant 0 : i32
    return %c0_i32, %c0_i32_0 : i32, i32
  }
  func.func @transform_3(%arg0: i32) -> (i32, i32) {
    %c0_i32 = arith.constant 0 : i32
    %c0_i32_0 = arith.constant 0 : i32
    %c0_i32_1 = arith.constant 0 : i32
    return %c0_i32, %c0_i32_0 : i32, i32
  }
  func.func @transform_4(%arg0: i32) -> (i32, i32) {
    %c0_i32 = arith.constant 0 : i32
    %c0_i32_0 = arith.constant 0 : i32
    %c0_i32_1 = arith.constant 0 : i32
    return %c0_i32, %c0_i32_0 : i32, i32
  }
  func.func @transform_5(%arg0: i32) -> (i32, i32) {
    %c0_i32 = arith.constant 0 : i32
    %c0_i32_0 = arith.constant 0 : i32
    %c0_i32_1 = arith.constant 0 : i32
    return %c0_i32, %c0_i32_0 : i32, i32
  }
  func.func @transform_6(%arg0: i32) -> (i32, i32) {
    %c0_i32 = arith.constant 0 : i32
    %c0_i32_0 = arith.constant 0 : i32
    %c0_i32_1 = arith.constant 0 : i32
    return %c0_i32, %c0_i32_0 : i32, i32
  }
  func.func @transform_7(%arg0: i32) -> (i32, i32) {
    %c0_i32 = arith.constant 0 : i32
    %c0_i32_0 = arith.constant 0 : i32
    %c0_i32_1 = arith.constant 0 : i32
    return %c0_i32, %c0_i32_0 : i32, i32
  }
  func.func @transform_8(%arg0: i32) -> (i32, i32) {
    %c0_i32 = arith.constant 0 : i32
    %c0_i32_0 = arith.constant 0 : i32
    %c0_i32_1 = arith.constant 0 : i32
    return %c0_i32, %c0_i32_0 : i32, i32
  }
}

</mosaic_0001>

<llo_original>
// kernel: _forward.1
$region0: #{_forward.1}
  #allocation0 [shape = 'u32[]', space=smem, size = 0x4, offset = 0x4, fixed_abs, tag = 'smem constant byte address 0x4 - core index']
  #allocation1 [shape = 'u32[144,128]{1,0:T(1,128)}', space=vmem, size = 0x12000, scoped, tag = 'internal scratch']
  #allocation2 [shape = 'f32[64,512]{1,0:T(8,128)}', space=vmem, size = 0x20000, scoped, tag = 'scratch operand']
  %s0 = inlined_call_operand.vmem [shape: f32[64,8], index: 0, kind: input, shape index: {}]
  %s1 = inlined_call_operand.vmem [shape: f32[8,512], index: 1, kind: input, shape index: {}]
  %s2 = inlined_call_operand.vmem [shape: f32[128,512], index: 2, kind: input, shape index: {}]
  %s3 = inlined_call_operand.vmem [shape: f32[1,512], index: 3, kind: input, shape index: {}]
  %s4 = inlined_call_operand.vmem [shape: f32[256,512], index: 4, kind: input, shape index: {}]
  %s5 = inlined_call_operand.vmem [shape: f32[1,512], index: 5, kind: input, shape index: {}]
  %s6 = inlined_call_operand.vmem [shape: f32[128,128], index: 6, kind: input, shape index: {}]
  %s7 = inlined_call_operand.vmem [shape: f32[1,128], index: 7, kind: input, shape index: {}]
  %s8 = inlined_call_operand.vmem [shape: f32[8,128], index: 8, kind: output, shape index: {}]
  %s9 = sld [smem:[#allocation0]]
  $region42: #{_forward.1} parent=0
    _
  %s11 = ssub.s32 1, %s9
  %s12 = scalar_select 0, %s11, %s9
  // Predicated region
  $region2: #{_forward.1} parent=0 // pred_check
    _
  $region3: #{_forward.1} parent=0 // pred_check_branch
    %14 = sbr.rel (0) target = $region5
  $region4: #{_forward.1} parent=0 // pred_region
    _
  $region5: #{_forward.1} parent=0 // pred_fallthru
    _
  // Predicated region
  $region6: #{_forward.1} parent=0 // pred_check
    _
  $region7: #{_forward.1} parent=0 // pred_check_branch
    %16 = sbr.rel (0) target = $region9
  $region8: #{_forward.1} parent=0 // pred_region
    _
  $region9: #{_forward.1} parent=0 // pred_fallthru
    _
  // Predicated region
  $region10: #{_forward.1} parent=0 // pred_check
    _
  $region11: #{_forward.1} parent=0 // pred_check_branch
    %18 = sbr.rel (0) target = $region13
  $region12: #{_forward.1} parent=0 // pred_region
    _
  $region13: #{_forward.1} parent=0 // pred_fallthru
    _
  // Predicated region
  $region14: #{_forward.1} parent=0 // pred_check
    _
  $region15: #{_forward.1} parent=0 // pred_check_branch
    %20 = sbr.rel (0) target = $region17
  $region16: #{_forward.1} parent=0 // pred_region
    _
  $region17: #{_forward.1} parent=0 // pred_fallthru
    _
  // Predicated region
  $region18: #{_forward.1} parent=0 // pred_check
    _
  $region19: #{_forward.1} parent=0 // pred_check_branch
    %22 = sbr.rel (0) target = $region21
  $region20: #{_forward.1} parent=0 // pred_region
    _
  $region21: #{_forward.1} parent=0 // pred_fallthru
    _
  // Predicated region
  $region22: #{_forward.1} parent=0 // pred_check
    _
  $region23: #{_forward.1} parent=0 // pred_check_branch
    %24 = sbr.rel (0) target = $region25
  $region24: #{_forward.1} parent=0 // pred_region
    _
  $region25: #{_forward.1} parent=0 // pred_fallthru
    _
  // Predicated region
  $region26: #{_forward.1} parent=0 // pred_check
    _
  $region27: #{_forward.1} parent=0 // pred_check_branch
    %26 = sbr.rel (0) target = $region29
  $region28: #{_forward.1} parent=0 // pred_region
    _
  $region29: #{_forward.1} parent=0 // pred_fallthru
    _
  // Predicated region
  $region30: #{_forward.1} parent=0 // pred_check
    _
  $region31: #{_forward.1} parent=0 // pred_check_branch
    %28 = sbr.rel (0) target = $region33
  $region32: #{_forward.1} parent=0 // pred_region
    _
  $region33: #{_forward.1} parent=0 // pred_fallthru
    _
  %v29 = vld [vmem:[%s0] sm:$0xff]
  %v30 = vld [vmem:[%s0 + $0x8] sm:$0xff]
  %v31 = vld [vmem:[%s0 + $0x10] sm:$0xff]
  %v32 = vld [vmem:[%s0 + $0x18] sm:$0xff]
  %v33 = vld [vmem:[%s0 + $0x20] sm:$0xff]
  %v34 = vld [vmem:[%s0 + $0x28] sm:$0xff]
  %v35 = vld [vmem:[%s0 + $0x30] sm:$0xff]
  %v36 = vld [vmem:[%s0 + $0x38] sm:$0xff]
  %v37 = vld [vmem:[%s1] sm:$0xff]
  %v38 = vld [vmem:[%s1 + $0x8] sm:$0xff]
  %v39 = vld [vmem:[%s1 + $0x10] sm:$0xff]
  %v40 = vld [vmem:[%s1 + $0x18] sm:$0xff]
  %v41 = vld [vmem:[%s3] sm:$0xf]
  %v43 = vlaneseq
  %v44 = vshrl.u32 %v43, 7
  %v45 = vsub.s32 0, %v44
  %v46 = vrot.slane %v41, %v45
  %v47 = vlaneseq
  %v48 = vshrl.u32 %v47, 7
  %v49 = vsub.s32 1, %v48
  %v50 = vrot.slane %v41, %v49
  %v51 = vlaneseq
  %v52 = vshrl.u32 %v51, 7
  %v53 = vsub.s32 2, %v52
  %v54 = vrot.slane %v41, %v53
  %v55 = vlaneseq
  %v56 = vshrl.u32 %v55, 7
  %v57 = vsub.s32 3, %v56
  %v58 = vrot.slane %v41, %v57
  %vm63 = vcmask 64512
  %v65 = vsel %vm63, %v29, 0
  %v68 = vsel %vm63, %v30, 0
  %v71 = vsel %vm63, %v31, 0
  %v74 = vsel %vm63, %v32, 0
  %v77 = vsel %vm63, %v33, 0
  %v80 = vsel %vm63, %v34, 0
  %v83 = vsel %vm63, %v35, 0
  %v86 = vsel %vm63, %v36, 0
  %88 = vmatprep.subr.mxu0 %v38
  %89 = vmatpush1.msra.mxu0 %v37
  %90 = vmatprep.subr.mxu0 0.0
  %91 = vmatpush1.msra.mxu0 0.0
  %92 = vmatprep.subr.mxu0 0.0
  %93 = vmatpush1.msra.mxu0 0.0
  %94 = vmatprep.subr.mxu0 0.0
  %95 = vmatpush1.msra.mxu0 0.0
  %96 = vmatprep.subr.mxu0 0.0
  %97 = vmatpush1.msra.mxu0 0.0
  %98 = vmatprep.subr.mxu0 0.0
  %99 = vmatpush1.msra.mxu0 0.0
  %100 = vmatprep.subr.mxu0 0.0
  %101 = vmatpush1.msra.mxu0 0.0
  %102 = vmatprep.subr.mxu0 0.0
  %103 = vmatpush1.msra.mxu0 0.0
  %104 = vmatprep.subr.mxu0 0.0
  %105 = vmatpush1.msra.mxu0 0.0
  %106 = vmatprep.subr.mxu0 0.0
  %107 = vmatpush1.msra.mxu0 0.0
  %108 = vmatprep.subr.mxu0 0.0
  %109 = vmatpush1.msra.mxu0 0.0
  %110 = vmatprep.subr.mxu0 0.0
  %111 = vmatpush1.msra.mxu0 0.0
  %112 = vmatprep.subr.mxu0 0.0
  %113 = vmatpush1.msra.mxu0 0.0
  %114 = vmatprep.subr.mxu0 0.0
  %115 = vmatpush1.msra.mxu0 0.0
  %116 = vmatprep.subr.mxu0 0.0
  %117 = vmatpush1.msra.mxu0 0.0
  %118 = vmatprep.subr.mxu0 0.0
  %119 = vmatpush1.msra.mxu0 0.0
  %120 = vmatprep.subr.mxu0 0.0
  %121 = vmatpush1.msra.mxu0 0.0
  %122 = vmatprep.subr.mxu0 0.0
  %123 = vmatpush1.msra.mxu0 0.0
  %124 = vmatprep.subr.mxu0 0.0
  %125 = vmatpush1.msra.mxu0 0.0
  %126 = vmatprep.subr.mxu0 0.0
  %127 = vmatpush1.msra.mxu0 0.0
  %128 = vmatprep.subr.mxu0 0.0
  %129 = vmatpush1.msra.mxu0 0.0
  %130 = vmatprep.subr.mxu0 0.0
  %131 = vmatpush1.msra.mxu0 0.0
  %132 = vmatprep.subr.mxu0 0.0
  %133 = vmatpush1.msra.mxu0 0.0
  %134 = vmatprep.subr.mxu0 0.0
  %135 = vmatpush1.msra.mxu0 0.0
  %136 = vmatprep.subr.mxu0 0.0
  %137 = vmatpush1.msra.mxu0 0.0
  %138 = vmatprep.subr.mxu0 0.0
  %139 = vmatpush1.msra.mxu0 0.0
  %140 = vmatprep.subr.mxu0 0.0
  %141 = vmatpush1.msra.mxu0 0.0
  %142 = vmatprep.subr.mxu0 0.0
  %143 = vmatpush1.msra.mxu0 0.0
  %144 = vmatprep.subr.mxu0 0.0
  %145 = vmatpush1.msra.mxu0 0.0
  %146 = vmatprep.subr.mxu0 0.0
  %147 = vmatpush1.msra.mxu0 0.0
  %148 = vmatprep.subr.mxu0 0.0
  %149 = vmatpush1.msra.mxu0 0.0
  %150 = vmatprep.subr.mxu0 0.0
  %151 = vmatpush1.msra.mxu0 0.0
  %152 = vmatprep.mubr.f32.mxu0 0.0
  %153 = vmatmul.mubr.f32.gmra.mrb[0].mxu0 %v65
  %v154 = vpop.f32.mrb[0].mxu0
  %v155 = vadd.f32 %v46, %v154
  %v156 = vpop.f32.mrb[0].mxu0
  %v157 = vadd.f32 %v50, %v156
  %158 = vmatprep.mubr.f32.mxu0 0.0
  %159 = vmatmul.mubr.f32.gmra.mrb[0].mxu0 %v68
  %v160 = vpop.f32.mrb[0].mxu0
  %v161 = vadd.f32 %v46, %v160
  %v162 = vpop.f32.mrb[0].mxu0
  %v163 = vadd.f32 %v50, %v162
  %164 = vmatprep.mubr.f32.mxu0 0.0
  %165 = vmatmul.mubr.f32.gmra.mrb[0].mxu0 %v71
  %v166 = vpop.f32.mrb[0].mxu0
  %v167 = vadd.f32 %v46, %v166
  %v168 = vpop.f32.mrb[0].mxu0
  %v169 = vadd.f32 %v50, %v168
  %170 = vmatprep.mubr.f32.mxu0 0.0
  %171 = vmatmul.mubr.f32.gmra.mrb[0].mxu0 %v74
  %v172 = vpop.f32.mrb[0].mxu0
  %v173 = vadd.f32 %v46, %v172
  %v174 = vpop.f32.mrb[0].mxu0
  %v175 = vadd.f32 %v50, %v174
  %176 = vmatprep.mubr.f32.mxu0 0.0
  %177 = vmatmul.mubr.f32.gmra.mrb[0].mxu0 %v77
  %v178 = vpop.f32.mrb[0].mxu0
  %v179 = vadd.f32 %v46, %v178
  %v180 = vpop.f32.mrb[0].mxu0
  %v181 = vadd.f32 %v50, %v180
  %182 = vmatprep.mubr.f32.mxu0 0.0
  %183 = vmatmul.mubr.f32.gmra.mrb[0].mxu0 %v80
  %v184 = vpop.f32.mrb[0].mxu0
  %v185 = vadd.f32 %v46, %v184
  %v186 = vpop.f32.mrb[0].mxu0
  %v187 = vadd.f32 %v50, %v186
  %188 = vmatprep.mubr.f32.mxu0 0.0
  %189 = vmatmul.mubr.f32.gmra.mrb[0].mxu0 %v83
  %v190 = vpop.f32.mrb[0].mxu0
  %v191 = vadd.f32 %v46, %v190
  %v192 = vpop.f32.mrb[0].mxu0
  %v193 = vadd.f32 %v50, %v192
  %194 = vmatprep.mubr.f32.mxu0 0.0
  %195 = vmatmul.mubr.f32.gmra.mrb[0].mxu0 %v86
  %v196 = vpop.f32.mrb[0].mxu0
  %v197 = vadd.f32 %v46, %v196
  %v198 = vpop.f32.mrb[0].mxu0
  %v199 = vadd.f32 %v50, %v198
  %200 = vdwg.mxu0
  %201 = vmatprep.subr.mxu0 %v40
  %202 = vmatpush1.msra.mxu0 %v39
  %203 = vmatprep.subr.mxu0 0.0
  %204 = vmatpush1.msra.mxu0 0.0
  %205 = vmatprep.subr.mxu0 0.0
  %206 = vmatpush1.msra.mxu0 0.0
  %207 = vmatprep.subr.mxu0 0.0
  %208 = vmatpush1.msra.mxu0 0.0
  %209 = vmatprep.subr.mxu0 0.0
  %210 = vmatpush1.msra.mxu0 0.0
  %211 = vmatprep.subr.mxu0 0.0
  %212 = vmatpush1.msra.mxu0 0.0
  %213 = vmatprep.subr.mxu0 0.0
  %214 = vmatpush1.msra.mxu0 0.0
  %215 = vmatprep.subr.mxu0 0.0
  %216 = vmatpush1.msra.mxu0 0.0
  %217 = vmatprep.subr.mxu0 0.0
  %218 = vmatpush1.msra.mxu0 0.0
  %219 = vmatprep.subr.mxu0 0.0
  %220 = vmatpush1.msra.mxu0 0.0
  %221 = vmatprep.subr.mxu0 0.0
  %222 = vmatpush1.msra.mxu0 0.0
  %223 = vmatprep.subr.mxu0 0.0
  %224 = vmatpush1.msra.mxu0 0.0
  %225 = vmatprep.subr.mxu0 0.0
  %226 = vmatpush1.msra.mxu0 0.0
  %227 = vmatprep.subr.mxu0 0.0
  %228 = vmatpush1.msra.mxu0 0.0
  %229 = vmatprep.subr.mxu0 0.0
  %230 = vmatpush1.msra.mxu0 0.0
  %231 = vmatprep.subr.mxu0 0.0
  %232 = vmatpush1.msra.mxu0 0.0
  %233 = vmatprep.subr.mxu0 0.0
  %234 = vmatpush1.msra.mxu0 0.0
  %235 = vmatprep.subr.mxu0 0.0
  %236 = vmatpush1.msra.mxu0 0.0
  %237 = vmatprep.subr.mxu0 0.0
  %238 = vmatpush1.msra.mxu0 0.0
  %239 = vmatprep.subr.mxu0 0.0
  %240 = vmatpush1.msra.mxu0 0.0
  %241 = vmatprep.subr.mxu0 0.0
  %242 = vmatpush1.msra.mxu0 0.0
  %243 = vmatprep.subr.mxu0 0.0
  %244 = vmatpush1.msra.mxu0 0.0
  %245 = vmatprep.subr.mxu0 0.0
  %246 = vmatpush1.msra.mxu0 0.0
  %247 = vmatprep.subr.mxu0 0.0
  %248 = vmatpush1.msra.mxu0 0.0
  %249 = vmatprep.subr.mxu0 0.0
  %250 = vmatpush1.msra.mxu0 0.0
  %251 = vmatprep.subr.mxu0 0.0
  %252 = vmatpush1.msra.mxu0 0.0
  %253 = vmatprep.subr.mxu0 0.0
  %254 = vmatpush1.msra.mxu0 0.0
  %255 = vmatprep.subr.mxu0 0.0
  %256 = vmatpush1.msra.mxu0 0.0
  %257 = vmatprep.subr.mxu0 0.0
  %258 = vmatpush1.msra.mxu0 0.0
  %259 = vmatprep.subr.mxu0 0.0
  %260 = vmatpush1.msra.mxu0 0.0
  %261 = vmatprep.subr.mxu0 0.0
  %262 = vmatpush1.msra.mxu0 0.0
  %263 = vmatprep.subr.mxu0 0.0
  %264 = vmatpush1.msra.mxu0 0.0
  %265 = vmatprep.mubr.f32.mxu0 0.0
  %266 = vmatmul.mubr.f32.gmra.mrb[0].mxu0 %v65
  %v267 = vpop.f32.mrb[0].mxu0
  %v268 = vadd.f32 %v54, %v267
  %v269 = vpop.f32.mrb[0].mxu0
  %v270 = vadd.f32 %v58, %v269
  %271 = vmatprep.mubr.f32.mxu0 0.0
  %272 = vmatmul.mubr.f32.gmra.mrb[0].mxu0 %v68
  %v273 = vpop.f32.mrb[0].mxu0
  %v274 = vadd.f32 %v54, %v273
  %v275 = vpop.f32.mrb[0].mxu0
  %v276 = vadd.f32 %v58, %v275
  %277 = vmatprep.mubr.f32.mxu0 0.0
  %278 = vmatmul.mubr.f32.gmra.mrb[0].mxu0 %v71
  %v279 = vpop.f32.mrb[0].mxu0
  %v280 = vadd.f32 %v54, %v279
  %v281 = vpop.f32.mrb[0].mxu0
  %v282 = vadd.f32 %v58, %v281
  %283 = vmatprep.mubr.f32.mxu0 0.0
  %284 = vmatmul.mubr.f32.gmra.mrb[0].mxu0 %v74
  %v285 = vpop.f32.mrb[0].mxu0
  %v286 = vadd.f32 %v54, %v285
  %v287 = vpop.f32.mrb[0].mxu0
  %v288 = vadd.f32 %v58, %v287
  %289 = vmatprep.mubr.f32.mxu0 0.0
  %290 = vmatmul.mubr.f32.gmra.mrb[0].mxu0 %v77
  %v291 = vpop.f32.mrb[0].mxu0
  %v292 = vadd.f32 %v54, %v291
  %v293 = vpop.f32.mrb[0].mxu0
  %v294 = vadd.f32 %v58, %v293
  %295 = vmatprep.mubr.f32.mxu0 0.0
  %296 = vmatmul.mubr.f32.gmra.mrb[0].mxu0 %v80
  %v297 = vpop.f32.mrb[0].mxu0
  %v298 = vadd.f32 %v54, %v297
  %v299 = vpop.f32.mrb[0].mxu0
  %v300 = vadd.f32 %v58, %v299
  %301 = vmatprep.mubr.f32.mxu0 0.0
  %302 = vmatmul.mubr.f32.gmra.mrb[0].mxu0 %v83
  %v303 = vpop.f32.mrb[0].mxu0
  %v304 = vadd.f32 %v54, %v303
  %v305 = vpop.f32.mrb[0].mxu0
  %v306 = vadd.f32 %v58, %v305
  %307 = vmatprep.mubr.f32.mxu0 0.0
  %308 = vmatmul.mubr.f32.gmra.mrb[0].mxu0 %v86
  %v309 = vpop.f32.mrb[0].mxu0
  %v310 = vadd.f32 %v54, %v309
  %v311 = vpop.f32.mrb[0].mxu0
  %v312 = vadd.f32 %v58, %v311
  %313 = vdwg.mxu0
  %314 = vst [vmem:[#allocation2] sm:$0xff] %v155
  %315 = vst [vmem:[#allocation2 + $0x8] sm:$0xff] %v157
  %316 = vst [vmem:[#allocation2 + $0x10] sm:$0xff] %v268
  %317 = vst [vmem:[#allocation2 + $0x18] sm:$0xff] %v270
  %318 = vst [vmem:[#allocation2 + $0x20] sm:$0xff] %v161
  %319 = vst [vmem:[#allocation2 + $0x28] sm:$0xff] %v163
  %320 = vst [vmem:[#allocation2 + $0x30] sm:$0xff] %v274
  %321 = vst [vmem:[#allocation2 + $0x38] sm:$0xff] %v276
  %322 = vst [vmem:[#allocation2 + $0x40] sm:$0xff] %v167
  %323 = vst [vmem:[#allocation2 + $0x48] sm:$0xff] %v169
  %324 = vst [vmem:[#allocation2 + $0x50] sm:$0xff] %v280
  %325 = vst [vmem:[#allocation2 + $0x58] sm:$0xff] %v282
  %326 = vst [vmem:[#allocation2 + $0x60] sm:$0xff] %v173
  %327 = vst [vmem:[#allocation2 + $0x68] sm:$0xff] %v175
  %328 = vst [vmem:[#allocation2 + $0x70] sm:$0xff] %v286
  %329 = vst [vmem:[#allocation2 + $0x78] sm:$0xff] %v288
  %330 = vst [vmem:[#allocation2 + $0x80] sm:$0xff] %v179
  %331 = vst [vmem:[#allocation2 + $0x88] sm:$0xff] %v181
  %332 = vst [vmem:[#allocation2 + $0x90] sm:$0xff] %v292
  %333 = vst [vmem:[#allocation2 + $0x98] sm:$0xff] %v294
  %334 = vst [vmem:[#allocation2 + $0xa0] sm:$0xff] %v185
  %335 = vst [vmem:[#allocation2 + $0xa8] sm:$0xff] %v187
  %336 = vst [vmem:[#allocation2 + $0xb0] sm:$0xff] %v298
  %337 = vst [vmem:[#allocation2 + $0xb8] sm:$0xff] %v300
  %338 = vst [vmem:[#allocation2 + $0xc0] sm:$0xff] %v191
  %339 = vst [vmem:[#allocation2 + $0xc8] sm:$0xff] %v193
  %340 = vst [vmem:[#allocation2 + $0xd0] sm:$0xff] %v304
  %341 = vst [vmem:[#allocation2 + $0xd8] sm:$0xff] %v306
  %342 = vst [vmem:[#allocation2 + $0xe0] sm:$0xff] %v197
  %343 = vst [vmem:[#allocation2 + $0xe8] sm:$0xff] %v199
  %344 = vst [vmem:[#allocation2 + $0xf0] sm:$0xff] %v310
  %345 = vst [vmem:[#allocation2 + $0xf8] sm:$0xff] %v312
  %v346 = vld [vmem:[%s5] sm:$0xf]
  %v348 = vlaneseq
  %v349 = vshrl.u32 %v348, 7
  %v350 = vsub.s32 0, %v349
  %v351 = vrot.slane %v346, %v350
  %v352 = vlaneseq
  %v353 = vshrl.u32 %v352, 7
  %v354 = vsub.s32 1, %v353
  %v355 = vrot.slane %v346, %v354
  %v356 = vlaneseq
  %v357 = vshrl.u32 %v356, 7
  %v358 = vsub.s32 2, %v357
  %v359 = vrot.slane %v346, %v358
  %v360 = vlaneseq
  %v361 = vshrl.u32 %v360, 7
  %v362 = vsub.s32 3, %v361
  %v363 = vrot.slane %v346, %v362
  %v368 = vld [vmem:[#allocation2] sm:$0xff]
  %v369 = vld [vmem:[#allocation2 + $0x8] sm:$0xff]
  %v370 = vld [vmem:[#allocation2 + $0x10] sm:$0xff]
  %v371 = vld [vmem:[#allocation2 + $0x18] sm:$0xff]
  %v372 = vld [vmem:[%s2] sm:$0xff]
  %v373 = vld [vmem:[%s2 + $0x8] sm:$0xff]
  %v374 = vld [vmem:[%s2 + $0x10] sm:$0xff]
  %v375 = vld [vmem:[%s2 + $0x18] sm:$0xff]
  %v376 = vld [vmem:[%s2 + $0x20] sm:$0xff]
  %v377 = vld [vmem:[%s2 + $0x28] sm:$0xff]
  %v378 = vld [vmem:[%s2 + $0x30] sm:$0xff]
  %v379 = vld [vmem:[%s2 + $0x38] sm:$0xff]
  %v380 = vld [vmem:[%s2 + $0x40] sm:$0xff]
  %v381 = vld [vmem:[%s2 + $0x48] sm:$0xff]
  %v382 = vld [vmem:[%s2 + $0x50] sm:$0xff]
  %v383 = vld [vmem:[%s2 + $0x58] sm:$0xff]
  %v384 = vld [vmem:[%s2 + $0x60] sm:$0xff]
  %v385 = vld [vmem:[%s2 + $0x68] sm:$0xff]
  %v386 = vld [vmem:[%s2 + $0x70] sm:$0xff]
  %v387 = vld [vmem:[%s2 + $0x78] sm:$0xff]
  %v388 = vld [vmem:[%s2 + $0x80] sm:$0xff]
  %v389 = vld [vmem:[%s2 + $0x88] sm:$0xff]
  %v390 = vld [vmem:[%s2 + $0x90] sm:$0xff]
  %v391 = vld [vmem:[%s2 + $0x98] sm:$0xff]
  %v392 = vld [vmem:[%s2 + $0xa0] sm:$0xff]
  %v393 = vld [vmem:[%s2 + $0xa8] sm:$0xff]
  %v394 = vld [vmem:[%s2 + $0xb0] sm:$0xff]
  %v395 = vld [vmem:[%s2 + $0xb8] sm:$0xff]
  %v396 = vld [vmem:[%s2 + $0xc0] sm:$0xff]
  %v397 = vld [vmem:[%s2 + $0xc8] sm:$0xff]
  %v398 = vld [vmem:[%s2 + $0xd0] sm:$0xff]
  %v399 = vld [vmem:[%s2 + $0xd8] sm:$0xff]
  %v400 = vld [vmem:[%s2 + $0xe0] sm:$0xff]
  %v401 = vld [vmem:[%s2 + $0xe8] sm:$0xff]
  %v402 = vld [vmem:[%s2 + $0xf0] sm:$0xff]
  %v403 = vld [vmem:[%s2 + $0xf8] sm:$0xff]
  %v404 = vld [vmem:[%s2 + $0x100] sm:$0xff]
  %v405 = vld [vmem:[%s2 + $0x108] sm:$0xff]
  %v406 = vld [vmem:[%s2 + $0x110] sm:$0xff]
  %v407 = vld [vmem:[%s2 + $0x118] sm:$0xff]
  %v408 = vld [vmem:[%s2 + $0x120] sm:$0xff]
  %v409 = vld [vmem:[%s2 + $0x128] sm:$0xff]
  %v410 = vld [vmem:[%s2 + $0x130] sm:$0xff]
  %v411 = vld [vmem:[%s2 + $0x138] sm:$0xff]
  %v412 = vld [vmem:[%s2 + $0x140] sm:$0xff]
  %v413 = vld [vmem:[%s2 + $0x148] sm:$0xff]
  %v414 = vld [vmem:[%s2 + $0x150] sm:$0xff]
  %v415 = vld [vmem:[%s2 + $0x158] sm:$0xff]
  %v416 = vld [vmem:[%s2 + $0x160] sm:$0xff]
  %v417 = vld [vmem:[%s2 + $0x168] sm:$0xff]
  %v418 = vld [vmem:[%s2 + $0x170] sm:$0xff]
  %v419 = vld [vmem:[%s2 + $0x178] sm:$0xff]
  %v420 = vld [vmem:[%s2 + $0x180] sm:$0xff]
  %v421 = vld [vmem:[%s2 + $0x188] sm:$0xff]
  %v422 = vld [vmem:[%s2 + $0x190] sm:$0xff]
  %v423 = vld [vmem:[%s2 + $0x198] sm:$0xff]
  %v424 = vld [vmem:[%s2 + $0x1a0] sm:$0xff]
  %v425 = vld [vmem:[%s2 + $0x1a8] sm:$0xff]
  %v426 = vld [vmem:[%s2 + $0x1b0] sm:$0xff]
  %v427 = vld [vmem:[%s2 + $0x1b8] sm:$0xff]
  %v428 = vld [vmem:[%s2 + $0x1c0] sm:$0xff]
  %v429 = vld [vmem:[%s2 + $0x1c8] sm:$0xff]
  %v430 = vld [vmem:[%s2 + $0x1d0] sm:$0xff]
  %v431 = vld [vmem:[%s2 + $0x1d8] sm:$0xff]
  %v432 = vld [vmem:[%s2 + $0x1e0] sm:$0xff]
  %v433 = vld [vmem:[%s2 + $0x1e8] sm:$0xff]
  %v434 = vld [vmem:[%s2 + $0x1f0] sm:$0xff]
  %v435 = vld [vmem:[%s2 + $0x1f8] sm:$0xff]
  %436 = vmatprep.subr.mxu0 %v373
  %437 = vmatpush1.msra.mxu0 %v372
  %438 = vmatprep.subr.mxu0 %v377
  %439 = vmatpush1.msra.mxu0 %v376
  %440 = vmatprep.subr.mxu0 %v381
  %441 = vmatpush1.msra.mxu0 %v380
  %442 = vmatprep.subr.mxu0 %v385
  %443 = vmatpush1.msra.mxu0 %v384
  %444 = vmatprep.subr.mxu0 %v389
  %445 = vmatpush1.msra.mxu0 %v388
  %446 = vmatprep.subr.mxu0 %v393
  %447 = vmatpush1.msra.mxu0 %v392
  %448 = vmatprep.subr.mxu0 %v397
  %449 = vmatpush1.msra.mxu0 %v396
  %450 = vmatprep.subr.mxu0 %v401
  %451 = vmatpush1.msra.mxu0 %v400
  %452 = vmatprep.subr.mxu0 %v405
  %453 = vmatpush1.msra.mxu0 %v404
  %454 = vmatprep.subr.mxu0 %v409
  %455 = vmatpush1.msra.mxu0 %v408
  %456 = vmatprep.subr.mxu0 %v413
  %457 = vmatpush1.msra.mxu0 %v412
  %458 = vmatprep.subr.mxu0 %v417
  %459 = vmatpush1.msra.mxu0 %v416
  %460 = vmatprep.subr.mxu0 %v421
  %461 = vmatpush1.msra.mxu0 %v420
  %462 = vmatprep.subr.mxu0 %v425
  %463 = vmatpush1.msra.mxu0 %v424
  %464 = vmatprep.subr.mxu0 %v429
  %465 = vmatpush1.msra.mxu0 %v428
  %466 = vmatprep.subr.mxu0 %v433
  %467 = vmatpush1.msra.mxu0 %v432
  %468 = vmatprep.subr.mxu0 0.0
  %469 = vmatpush1.msra.mxu0 0.0
  %470 = vmatprep.subr.mxu0 0.0
  %471 = vmatpush1.msra.mxu0 0.0
  %472 = vmatprep.subr.mxu0 0.0
  %473 = vmatpush1.msra.mxu0 0.0
  %474 = vmatprep.subr.mxu0 0.0
  %475 = vmatpush1.msra.mxu0 0.0
  %476 = vmatprep.subr.mxu0 0.0
  %477 = vmatpush1.msra.mxu0 0.0
  %478 = vmatprep.subr.mxu0 0.0
  %479 = vmatpush1.msra.mxu0 0.0
  %480 = vmatprep.subr.mxu0 0.0
  %481 = vmatpush1.msra.mxu0 0.0
  %482 = vmatprep.subr.mxu0 0.0
  %483 = vmatpush1.msra.mxu0 0.0
  %484 = vmatprep.subr.mxu0 0.0
  %485 = vmatpush1.msra.mxu0 0.0
  %486 = vmatprep.subr.mxu0 0.0
  %487 = vmatpush1.msra.mxu0 0.0
  %488 = vmatprep.subr.mxu0 0.0
  %489 = vmatpush1.msra.mxu0 0.0
  %490 = vmatprep.subr.mxu0 0.0
  %491 = vmatpush1.msra.mxu0 0.0
  %492 = vmatprep.subr.mxu0 0.0
  %493 = vmatpush1.msra.mxu0 0.0
  %494 = vmatprep.subr.mxu0 0.0
  %495 = vmatpush1.msra.mxu0 0.0
  %496 = vmatprep.subr.mxu0 0.0
  %497 = vmatpush1.msra.mxu0 0.0
  %498 = vmatprep.subr.mxu0 0.0
  %499 = vmatpush1.msra.mxu0 0.0
  %500 = vmatprep.mubr.f32.mxu0 0.0
  %501 = vmatmul.mubr.f32.gmra.mrb[0].mxu0 0.0
  %v502 = vpop.f32.mrb[0].mxu0
  %v503 = vadd.f32 0.0, %v502
  %v504 = vpop.f32.mrb[0].mxu0
  %v505 = vadd.f32 0.0, %v504
  %506 = vdwg.mxu0
  %507 = vmatprep.subr.mxu0 %v375
  %508 = vmatpush1.msra.mxu0 %v374
  %509 = vmatprep.subr.mxu0 %v379
  %510 = vmatpush1.msra.mxu0 %v378
  %511 = vmatprep.subr.mxu0 %v383
  %512 = vmatpush1.msra.mxu0 %v382
  %513 = vmatprep.subr.mxu0 %v387
  %514 = vmatpush1.msra.mxu0 %v386
  %515 = vmatprep.subr.mxu0 %v391
  %516 = vmatpush1.msra.mxu0 %v390
  %517 = vmatprep.subr.mxu0 %v395
  %518 = vmatpush1.msra.mxu0 %v394
  %519 = vmatprep.subr.mxu0 %v399
  %520 = vmatpush1.msra.mxu0 %v398
  %521 = vmatprep.subr.mxu0 %v403
  %522 = vmatpush1.msra.mxu0 %v402
  %523 = vmatprep.subr.mxu0 %v407
  %524 = vmatpush1.msra.mxu0 %v406
  %525 = vmatprep.subr.mxu0 %v411
  %526 = vmatpush1.msra.mxu0 %v410
  %527 = vmatprep.subr.mxu0 %v415
  %528 = vmatpush1.msra.mxu0 %v414
  %529 = vmatprep.subr.mxu0 %v419
  %530 = vmatpush1.msra.mxu0 %v418
  %531 = vmatprep.subr.mxu0 %v423
  %532 = vmatpush1.msra.mxu0 %v422
  %533 = vmatprep.subr.mxu0 %v427
  %534 = vmatpush1.msra.mxu0 %v426
  %535 = vmatprep.subr.mxu0 %v431
  %536 = vmatpush1.msra.mxu0 %v430
  %537 = vmatprep.subr.mxu0 %v435
  %538 = vmatpush1.msra.mxu0 %v434
  %539 = vmatprep.subr.mxu0 0.0
  %540 = vmatpush1.msra.mxu0 0.0
  %541 = vmatprep.subr.mxu0 0.0
  %542 = vmatpush1.msra.mxu0 0.0
  %543 = vmatprep.subr.mxu0 0.0
  %544 = vmatpush1.msra.mxu0 0.0
  %545 = vmatprep.subr.mxu0 0.0
  %546 = vmatpush1.msra.mxu0 0.0
  %547 = vmatprep.subr.mxu0 0.0
  %548 = vmatpush1.msra.mxu0 0.0
  %549 = vmatprep.subr.mxu0 0.0
  %550 = vmatpush1.msra.mxu0 0.0
  %551 = vmatprep.subr.mxu0 0.0
  %552 = vmatpush1.msra.mxu0 0.0
  %553 = vmatprep.subr.mxu0 0.0
  %554 = vmatpush1.msra.mxu0 0.0
  %555 = vmatprep.subr.mxu0 0.0
  %556 = vmatpush1.msra.mxu0 0.0
  %557 = vmatprep.subr.mxu0 0.0
  %558 = vmatpush1.msra.mxu0 0.0
  %559 = vmatprep.subr.mxu0 0.0
  %560 = vmatpush1.msra.mxu0 0.0
  %561 = vmatprep.subr.mxu0 0.0
  %562 = vmatpush1.msra.mxu0 0.0
  %563 = vmatprep.subr.mxu0 0.0
  %564 = vmatpush1.msra.mxu0 0.0
  %565 = vmatprep.subr.mxu0 0.0
  %566 = vmatpush1.msra.mxu0 0.0
  %567 = vmatprep.subr.mxu0 0.0
  %568 = vmatpush1.msra.mxu0 0.0
  %569 = vmatprep.subr.mxu0 0.0
  %570 = vmatpush1.msra.mxu0 0.0
  %571 = vmatprep.mubr.f32.mxu0 0.0
  %572 = vmatmul.mubr.f32.gmra.mrb[0].mxu0 0.0
  %v573 = vpop.f32.mrb[0].mxu0
  %v574 = vadd.f32 0.0, %v573
  %v575 = vpop.f32.mrb[0].mxu0
  %v576 = vadd.f32 0.0, %v575
  %577 = vdwg.mxu0
  %v578 = vadd.f32 %v368, %v503
  %v579 = vadd.f32 %v369, %v505
  %v580 = vadd.f32 %v370, %v574
  %v581 = vadd.f32 %v371, %v576
  %v582 = vmul.f32 %v578, 0.5
  %v583 = vtanh.pop %v582
  %v584 = vmul.f32 %v583, 0.5
  %v585 = vadd.f32 %v584, 0.5
  %v586 = vmul.f32 %v579, 0.5
  %v587 = vtanh.pop %v586
  %v588 = vmul.f32 %v587, 0.5
  %v589 = vadd.f32 %v588, 0.5
  %v590 = vtanh.pop %v580
  %v591 = vmul.f32 %v581, 0.5
  %v592 = vtanh.pop %v591
  %v593 = vmul.f32 %v592, 0.5
  %v594 = vadd.f32 %v593, 0.5
  %v595 = vmul.f32 %v589, 0.0
  %v596 = vmul.f32 %v585, %v590
  %v597 = vadd.f32 %v595, %v596
  %v598 = vtanh.pop %v597
  %v599 = vmul.f32 %v594, %v598
  %v600 = vld [vmem:[%s4] sm:$0xff]
  %v601 = vld [vmem:[%s4 + $0x8] sm:$0xff]
  %v602 = vld [vmem:[%s4 + $0x10] sm:$0xff]
  %v603 = vld [vmem:[%s4 + $0x18] sm:$0xff]
  %v604 = vld [vmem:[%s4 + $0x20] sm:$0xff]
  %v605 = vld [vmem:[%s4 + $0x28] sm:$0xff]
  %v606 = vld [vmem:[%s4 + $0x30] sm:$0xff]
  %v607 = vld [vmem:[%s4 + $0x38] sm:$0xff]
  %v608 = vld [vmem:[%s4 + $0x40] sm:$0xff]
  %v609 = vld [vmem:[%s4 + $0x48] sm:$0xff]
  %v610 = vld [vmem:[%s4 + $0x50] sm:$0xff]
  %v611 = vld [vmem:[%s4 + $0x58] sm:$0xff]
  %v612 = vld [vmem:[%s4 + $0x60] sm:$0xff]
  %v613 = vld [vmem:[%s4 + $0x68] sm:$0xff]
  %v614 = vld [vmem:[%s4 + $0x70] sm:$0xff]
  %v615 = vld [vmem:[%s4 + $0x78] sm:$0xff]
  %v616 = vld [vmem:[%s4 + $0x80] sm:$0xff]
  %v617 = vld [vmem:[%s4 + $0x88] sm:$0xff]
  %v618 = vld [vmem:[%s4 + $0x90] sm:$0xff]
  %v619 = vld [vmem:[%s4 + $0x98] sm:$0xff]
  %v620 = vld [vmem:[%s4 + $0xa0] sm:$0xff]
  %v621 = vld [vmem:[%s4 + $0xa8] sm:$0xff]
  %v622 = vld [vmem:[%s4 + $0xb0] sm:$0xff]
  %v623 = vld [vmem:[%s4 + $0xb8] sm:$0xff]
  %v624 = vld [vmem:[%s4 + $0xc0] sm:$0xff]
  %v625 = vld [vmem:[%s4 + $0xc8] sm:$0xff]
  %v626 = vld [vmem:[%s4 + $0xd0] sm:$0xff]
  %v627 = vld [vmem:[%s4 + $0xd8] sm:$0xff]
  %v628 = vld [vmem:[%s4 + $0xe0] sm:$0xff]
  %v629 = vld [vmem:[%s4 + $0xe8] sm:$0xff]
  %v630 = vld [vmem:[%s4 + $0xf0] sm:$0xff]
  %v631 = vld [vmem:[%s4 + $0xf8] sm:$0xff]
  %v632 = vld [vmem:[%s4 + $0x100] sm:$0xff]
  %v633 = vld [vmem:[%s4 + $0x108] sm:$0xff]
  %v634 = vld [vmem:[%s4 + $0x110] sm:$0xff]
  %v635 = vld [vmem:[%s4 + $0x118] sm:$0xff]
  %v636 = vld [vmem:[%s4 + $0x120] sm:$0xff]
  %v637 = vld [vmem:[%s4 + $0x128] sm:$0xff]
  %v638 = vld [vmem:[%s4 + $0x130] sm:$0xff]
  %v639 = vld [vmem:[%s4 + $0x138] sm:$0xff]
  %v640 = vld [vmem:[%s4 + $0x140] sm:$0xff]
  %v641 = vld [vmem:[%s4 + $0x148] sm:$0xff]
  %v642 = vld [vmem:[%s4 + $0x150] sm:$0xff]
  %v643 = vld [vmem:[%s4 + $0x158] sm:$0xff]
  %v644 = vld [vmem:[%s4 + $0x160] sm:$0xff]
  %v645 = vld [vmem:[%s4 + $0x168] sm:$0xff]
  %v646 = vld [vmem:[%s4 + $0x170] sm:$0xff]
  %v647 = vld [vmem:[%s4 + $0x178] sm:$0xff]
  %v648 = vld [vmem:[%s4 + $0x180] sm:$0xff]
  %v649 = vld [vmem:[%s4 + $0x188] sm:$0xff]
  %v650 = vld [vmem:[%s4 + $0x190] sm:$0xff]
  %v651 = vld [vmem:[%s4 + $0x198] sm:$0xff]
  %v652 = vld [vmem:[%s4 + $0x1a0] sm:$0xff]
  %v653 = vld [vmem:[%s4 + $0x1a8] sm:$0xff]
  %v654 = vld [vmem:[%s4 + $0x1b0] sm:$0xff]
  %v655 = vld [vmem:[%s4 + $0x1b8] sm:$0xff]
  %v656 = vld [vmem:[%s4 + $0x1c0] sm:$0xff]
  %v657 = vld [vmem:[%s4 + $0x1c8] sm:$0xff]
  %v658 = vld [vmem:[%s4 + $0x1d0] sm:$0xff]
  %v659 = vld [vmem:[%s4 + $0x1d8] sm:$0xff]
  %v660 = vld [vmem:[%s4 + $0x1e0] sm:$0xff]
  %v661 = vld [vmem:[%s4 + $0x1e8] sm:$0xff]
  %v662 = vld [vmem:[%s4 + $0x1f0] sm:$0xff]
  %v663 = vld [vmem:[%s4 + $0x1f8] sm:$0xff]
  %v664 = vld [vmem:[%s4 + $0x200] sm:$0xff]
  %v665 = vld [vmem:[%s4 + $0x208] sm:$0xff]
  %v666 = vld [vmem:[%s4 + $0x210] sm:$0xff]
  %v667 = vld [vmem:[%s4 + $0x218] sm:$0xff]
  %v668 = vld [vmem:[%s4 + $0x220] sm:$0xff]
  %v669 = vld [vmem:[%s4 + $0x228] sm:$0xff]
  %v670 = vld [vmem:[%s4 + $0x230] sm:$0xff]
  %v671 = vld [vmem:[%s4 + $0x238] sm:$0xff]
  %v672 = vld [vmem:[%s4 + $0x240] sm:$0xff]
  %v673 = vld [vmem:[%s4 + $0x248] sm:$0xff]
  %v674 = vld [vmem:[%s4 + $0x250] sm:$0xff]
  %v675 = vld [vmem:[%s4 + $0x258] sm:$0xff]
  %v676 = vld [vmem:[%s4 + $0x260] sm:$0xff]
  %v677 = vld [vmem:[%s4 + $0x268] sm:$0xff]
  %v678 = vld [vmem:[%s4 + $0x270] sm:$0xff]
  %v679 = vld [vmem:[%s4 + $0x278] sm:$0xff]
  %v680 = vld [vmem:[%s4 + $0x280] sm:$0xff]
  %v681 = vld [vmem:[%s4 + $0x288] sm:$0xff]
  %v682 = vld [vmem:[%s4 + $0x290] sm:$0xff]
  %v683 = vld [vmem:[%s4 + $0x298] sm:$0xff]
  %v684 = vld [vmem:[%s4 + $0x2a0] sm:$0xff]
  %v685 = vld [vmem:[%s4 + $0x2a8] sm:$0xff]
  %v686 = vld [vmem:[%s4 + $0x2b0] sm:$0xff]
  %v687 = vld [vmem:[%s4 + $0x2b8] sm:$0xff]
  %v688 = vld [vmem:[%s4 + $0x2c0] sm:$0xff]
  %v689 = vld [vmem:[%s4 + $0x2c8] sm:$0xff]
  %v690 = vld [vmem:[%s4 + $0x2d0] sm:$0xff]
  %v691 = vld [vmem:[%s4 + $0x2d8] sm:$0xff]
  %v692 = vld [vmem:[%s4 + $0x2e0] sm:$0xff]
  %v693 = vld [vmem:[%s4 + $0x2e8] sm:$0xff]
  %v694 = vld [vmem:[%s4 + $0x2f0] sm:$0xff]
  %v695 = vld [vmem:[%s4 + $0x2f8] sm:$0xff]
  %v696 = vld [vmem:[%s4 + $0x300] sm:$0xff]
  %v697 = vld [vmem:[%s4 + $0x308] sm:$0xff]
  %v698 = vld [vmem:[%s4 + $0x310] sm:$0xff]
  %v699 = vld [vmem:[%s4 + $0x318] sm:$0xff]
  %v700 = vld [vmem:[%s4 + $0x320] sm:$0xff]
  %v701 = vld [vmem:[%s4 + $0x328] sm:$0xff]
  %v702 = vld [vmem:[%s4 + $0x330] sm:$0xff]
  %v703 = vld [vmem:[%s4 + $0x338] sm:$0xff]
  %v704 = vld [vmem:[%s4 + $0x340] sm:$0xff]
  %v705 = vld [vmem:[%s4 + $0x348] sm:$0xff]
  %v706 = vld [vmem:[%s4 + $0x350] sm:$0xff]
  %v707 = vld [vmem:[%s4 + $0x358] sm:$0xff]
  %v708 = vld [vmem:[%s4 + $0x360] sm:$0xff]
  %v709 = vld [vmem:[%s4 + $0x368] sm:$0xff]
  %v710 = vld [vmem:[%s4 + $0x370] sm:$0xff]
  %v711 = vld [vmem:[%s4 + $0x378] sm:$0xff]
  %v712 = vld [vmem:[%s4 + $0x380] sm:$0xff]
  %v713 = vld [vmem:[%s4 + $0x388] sm:$0xff]
  %v714 = vld [vmem:[%s4 + $0x390] sm:$0xff]
  %v715 = vld [vmem:[%s4 + $0x398] sm:$0xff]
  %v716 = vld [vmem:[%s4 + $0x3a0] sm:$0xff]
  %v717 = vld [vmem:[%s4 + $0x3a8] sm:$0xff]
  %v718 = vld [vmem:[%s4 + $0x3b0] sm:$0xff]
  %v719 = vld [vmem:[%s4 + $0x3b8] sm:$0xff]
  %v720 = vld [vmem:[%s4 + $0x3c0] sm:$0xff]
  %v721 = vld [vmem:[%s4 + $0x3c8] sm:$0xff]
  %v722 = vld [vmem:[%s4 + $0x3d0] sm:$0xff]
  %v723 = vld [vmem:[%s4 + $0x3d8] sm:$0xff]
  %v724 = vld [vmem:[%s4 + $0x3e0] sm:$0xff]
  %v725 = vld [vmem:[%s4 + $0x3e8] sm:$0xff]
  %v726 = vld [vmem:[%s4 + $0x3f0] sm:$0xff]
  %v727 = vld [vmem:[%s4 + $0x3f8] sm:$0xff]
  %728 = vmatprep.subr.mxu0 %v601
  %729 = vmatpush1.msra.mxu0 %v600
  %730 = vmatprep.subr.mxu0 %v605
  %731 = vmatpush1.msra.mxu0 %v604
  %732 = vmatprep.subr.mxu0 %v609
  %733 = vmatpush1.msra.mxu0 %v608
  %734 = vmatprep.subr.mxu0 %v613
  %735 = vmatpush1.msra.mxu0 %v612
  %736 = vmatprep.subr.mxu0 %v617
  %737 = vmatpush1.msra.mxu0 %v616
  %738 = vmatprep.subr.mxu0 %v621
  %739 = vmatpush1.msra.mxu0 %v620
  %740 = vmatprep.subr.mxu0 %v625
  %741 = vmatpush1.msra.mxu0 %v624
  %742 = vmatprep.subr.mxu0 %v629
  %743 = vmatpush1.msra.mxu0 %v628
  %744 = vmatprep.subr.mxu0 %v633
  %745 = vmatpush1.msra.mxu0 %v632
  %746 = vmatprep.subr.mxu0 %v637
  %747 = vmatpush1.msra.mxu0 %v636
  %748 = vmatprep.subr.mxu0 %v641
  %749 = vmatpush1.msra.mxu0 %v640
  %750 = vmatprep.subr.mxu0 %v645
  %751 = vmatpush1.msra.mxu0 %v644
  %752 = vmatprep.subr.mxu0 %v649
  %753 = vmatpush1.msra.mxu0 %v648
  %754 = vmatprep.subr.mxu0 %v653
  %755 = vmatpush1.msra.mxu0 %v652
  %756 = vmatprep.subr.mxu0 %v657
  %757 = vmatpush1.msra.mxu0 %v656
  %758 = vmatprep.subr.mxu0 %v661
  %759 = vmatpush1.msra.mxu0 %v660
  %760 = vmatprep.subr.mxu0 %v665
  %761 = vmatpush1.msra.mxu0 %v664
  %762 = vmatprep.subr.mxu0 %v669
  %763 = vmatpush1.msra.mxu0 %v668
  %764 = vmatprep.subr.mxu0 %v673
  %765 = vmatpush1.msra.mxu0 %v672
  %766 = vmatprep.subr.mxu0 %v677
  %767 = vmatpush1.msra.mxu0 %v676
  %768 = vmatprep.subr.mxu0 %v681
  %769 = vmatpush1.msra.mxu0 %v680
  %770 = vmatprep.subr.mxu0 %v685
  %771 = vmatpush1.msra.mxu0 %v684
  %772 = vmatprep.subr.mxu0 %v689
  %773 = vmatpush1.msra.mxu0 %v688
  %774 = vmatprep.subr.mxu0 %v693
  %775 = vmatpush1.msra.mxu0 %v692
  %776 = vmatprep.subr.mxu0 %v697
  %777 = vmatpush1.msra.mxu0 %v696
  %778 = vmatprep.subr.mxu0 %v701
  %779 = vmatpush1.msra.mxu0 %v700
  %780 = vmatprep.subr.mxu0 %v705
  %781 = vmatpush1.msra.mxu0 %v704
  %782 = vmatprep.subr.mxu0 %v709
  %783 = vmatpush1.msra.mxu0 %v708
  %784 = vmatprep.subr.mxu0 %v713
  %785 = vmatpush1.msra.mxu0 %v712
  %786 = vmatprep.subr.mxu0 %v717
  %787 = vmatpush1.msra.mxu0 %v716
  %788 = vmatprep.subr.mxu0 %v721
  %789 = vmatpush1.msra.mxu0 %v720
  %790 = vmatprep.subr.mxu0 %v725
  %791 = vmatpush1.msra.mxu0 %v724
  %792 = vmatprep.mubr.f32.mxu0 0.0
  %793 = vmatmul.mubr.f32.gmra.mrb[0].mxu0 %v599
  %v794 = vpop.f32.mrb[0].mxu0
  %v795 = vadd.f32 %v351, %v794
  %v796 = vpop.f32.mrb[0].mxu0
  %v797 = vadd.f32 %v355, %v796
  %798 = vdwg.mxu0
  %799 = vmatprep.subr.mxu0 %v603
  %800 = vmatpush1.msra.mxu0 %v602
  %801 = vmatprep.subr.mxu0 %v607
  %802 = vmatpush1.msra.mxu0 %v606
  %803 = vmatprep.subr.mxu0 %v611
  %804 = vmatpush1.msra.mxu0 %v610
  %805 = vmatprep.subr.mxu0 %v615
  %806 = vmatpush1.msra.mxu0 %v614
  %807 = vmatprep.subr.mxu0 %v619
  %808 = vmatpush1.msra.mxu0 %v618
  %809 = vmatprep.subr.mxu0 %v623
  %810 = vmatpush1.msra.mxu0 %v622
  %811 = vmatprep.subr.mxu0 %v627
  %812 = vmatpush1.msra.mxu0 %v626
  %813 = vmatprep.subr.mxu0 %v631
  %814 = vmatpush1.msra.mxu0 %v630
  %815 = vmatprep.subr.mxu0 %v635
  %816 = vmatpush1.msra.mxu0 %v634
  %817 = vmatprep.subr.mxu0 %v639
  %818 = vmatpush1.msra.mxu0 %v638
  %819 = vmatprep.subr.mxu0 %v643
  %820 = vmatpush1.msra.mxu0 %v642
  %821 = vmatprep.subr.mxu0 %v647
  %822 = vmatpush1.msra.mxu0 %v646
  %823 = vmatprep.subr.mxu0 %v651
  %824 = vmatpush1.msra.mxu0 %v650
  %825 = vmatprep.subr.mxu0 %v655
  %826 = vmatpush1.msra.mxu0 %v654
  %827 = vmatprep.subr.mxu0 %v659
  %828 = vmatpush1.msra.mxu0 %v658
  %829 = vmatprep.subr.mxu0 %v663
  %830 = vmatpush1.msra.mxu0 %v662
  %831 = vmatprep.subr.mxu0 %v667
  %832 = vmatpush1.msra.mxu0 %v666
  %833 = vmatprep.subr.mxu0 %v671
  %834 = vmatpush1.msra.mxu0 %v670
  %835 = vmatprep.subr.mxu0 %v675
  %836 = vmatpush1.msra.mxu0 %v674
  %837 = vmatprep.subr.mxu0 %v679
  %838 = vmatpush1.msra.mxu0 %v678
  %839 = vmatprep.subr.mxu0 %v683
  %840 = vmatpush1.msra.mxu0 %v682
  %841 = vmatprep.subr.mxu0 %v687
  %842 = vmatpush1.msra.mxu0 %v686
  %843 = vmatprep.subr.mxu0 %v691
  %844 = vmatpush1.msra.mxu0 %v690
  %845 = vmatprep.subr.mxu0 %v695
  %846 = vmatpush1.msra.mxu0 %v694
  %847 = vmatprep.subr.mxu0 %v699
  %848 = vmatpush1.msra.mxu0 %v698
  %849 = vmatprep.subr.mxu0 %v703
  %850 = vmatpush1.msra.mxu0 %v702
  %851 = vmatprep.subr.mxu0 %v707
  %852 = vmatpush1.msra.mxu0 %v706
  %853 = vmatprep.subr.mxu0 %v711
  %854 = vmatpush1.msra.mxu0 %v710
  %855 = vmatprep.subr.mxu0 %v715
  %856 = vmatpush1.msra.mxu0 %v714
  %857 = vmatprep.subr.mxu0 %v719
  %858 = vmatpush1.msra.mxu0 %v718
  %859 = vmatprep.subr.mxu0 %v723
  %860 = vmatpush1.msra.mxu0 %v722
  %861 = vmatprep.subr.mxu0 %v727
  %862 = vmatpush1.msra.mxu0 %v726
  %863 = vmatprep.mubr.f32.mxu0 0.0
  %864 = vmatmul.mubr.f32.gmra.mrb[0].mxu0 %v599
  %v865 = vpop.f32.mrb[0].mxu0
  %v866 = vadd.f32 %v359, %v865
  %v867 = vpop.f32.mrb[0].mxu0
  %v868 = vadd.f32 %v363, %v867
  %869 = vdwg.mxu0
  %v870 = vmul.f32 %v795, 0.5
  %v871 = vtanh.pop %v870
  %v872 = vmul.f32 %v871, 0.5
  %v873 = vadd.f32 %v872, 0.5
  %v874 = vmul.f32 %v797, 0.5
  %v875 = vtanh.pop %v874
  %v876 = vmul.f32 %v875, 0.5
  %v877 = vadd.f32 %v876, 0.5
  %v878 = vtanh.pop %v866
  %v879 = vmul.f32 %v868, 0.5
  %v880 = vtanh.pop %v879
  %v881 = vmul.f32 %v880, 0.5
  %v882 = vadd.f32 %v881, 0.5
  %v883 = vmul.f32 %v877, 0.0
  %v884 = vmul.f32 %v873, %v878
  %v885 = vadd.f32 %v883, %v884
  %v886 = vtanh.pop %v885
  %v887 = vmul.f32 %v882, %v886
  %v888 = vld [vmem:[#allocation2 + $0x20] sm:$0xff]
  %v889 = vld [vmem:[#allocation2 + $0x28] sm:$0xff]
  %v890 = vld [vmem:[#allocation2 + $0x30] sm:$0xff]
  %v891 = vld [vmem:[#allocation2 + $0x38] sm:$0xff]
  %892 = vmatprep.subr.mxu0 %v373
  %893 = vmatpush1.msra.mxu0 %v372
  %894 = vmatprep.subr.mxu0 %v377
  %895 = vmatpush1.msra.mxu0 %v376
  %896 = vmatprep.subr.mxu0 %v381
  %897 = vmatpush1.msra.mxu0 %v380
  %898 = vmatprep.subr.mxu0 %v385
  %899 = vmatpush1.msra.mxu0 %v384
  %900 = vmatprep.subr.mxu0 %v389
  %901 = vmatpush1.msra.mxu0 %v388
  %902 = vmatprep.subr.mxu0 %v393
  %903 = vmatpush1.msra.mxu0 %v392
  %904 = vmatprep.subr.mxu0 %v397
  %905 = vmatpush1.msra.mxu0 %v396
  %906 = vmatprep.subr.mxu0 %v401
  %907 = vmatpush1.msra.mxu0 %v400
  %908 = vmatprep.subr.mxu0 %v405
  %909 = vmatpush1.msra.mxu0 %v404
  %910 = vmatprep.subr.mxu0 %v409
  %911 = vmatpush1.msra.mxu0 %v408
  %912 = vmatprep.subr.mxu0 %v413
  %913 = vmatpush1.msra.mxu0 %v412
  %914 = vmatprep.subr.mxu0 %v417
  %915 = vmatpush1.msra.mxu0 %v416
  %916 = vmatprep.subr.mxu0 %v421
  %917 = vmatpush1.msra.mxu0 %v420
  %918 = vmatprep.subr.mxu0 %v425
  %919 = vmatpush1.msra.mxu0 %v424
  %920 = vmatprep.subr.mxu0 %v429
  %921 = vmatpush1.msra.mxu0 %v428
  %922 = vmatprep.subr.mxu0 %v433
  %923 = vmatpush1.msra.mxu0 %v432
  %924 = vmatprep.subr.mxu0 0.0
  %925 = vmatpush1.msra.mxu0 0.0
  %926 = vmatprep.subr.mxu0 0.0
  %927 = vmatpush1.msra.mxu0 0.0
  %928 = vmatprep.subr.mxu0 0.0
  %929 = vmatpush1.msra.mxu0 0.0
  %930 = vmatprep.subr.mxu0 0.0
  %931 = vmatpush1.msra.mxu0 0.0
  %932 = vmatprep.subr.mxu0 0.0
  %933 = vmatpush1.msra.mxu0 0.0
  %934 = vmatprep.subr.mxu0 0.0
  %935 = vmatpush1.msra.mxu0 0.0
  %936 = vmatprep.subr.mxu0 0.0
  %937 = vmatpush1.msra.mxu0 0.0
  %938 = vmatprep.subr.mxu0 0.0
  %939 = vmatpush1.msra.mxu0 0.0
  %940 = vmatprep.subr.mxu0 0.0
  %941 = vmatpush1.msra.mxu0 0.0
  %942 = vmatprep.subr.mxu0 0.0
  %943 = vmatpush1.msra.mxu0 0.0
  %944 = vmatprep.subr.mxu0 0.0
  %945 = vmatpush1.msra.mxu0 0.0
  %946 = vmatprep.subr.mxu0 0.0
  %947 = vmatpush1.msra.mxu0 0.0
  %948 = vmatprep.subr.mxu0 0.0
  %949 = vmatpush1.msra.mxu0 0.0
  %950 = vmatprep.subr.mxu0 0.0
  %951 = vmatpush1.msra.mxu0 0.0
  %952 = vmatprep.subr.mxu0 0.0
  %953 = vmatpush1.msra.mxu0 0.0
  %954 = vmatprep.subr.mxu0 0.0
  %955 = vmatpush1.msra.mxu0 0.0
  %956 = vmatprep.mubr.f32.mxu0 0.0
  %957 = vmatmul.mubr.f32.gmra.mrb[0].mxu0 %v599
  %v958 = vpop.f32.mrb[0].mxu0
  %v959 = vadd.f32 0.0, %v958
  %v960 = vpop.f32.mrb[0].mxu0
  %v961 = vadd.f32 0.0, %v960
  %962 = vdwg.mxu0
  %963 = vmatprep.subr.mxu0 %v375
  %964 = vmatpush1.msra.mxu0 %v374
  %965 = vmatprep.subr.mxu0 %v379
  %966 = vmatpush1.msra.mxu0 %v378
  %967 = vmatprep.subr.mxu0 %v383
  %968 = vmatpush1.msra.mxu0 %v382
  %969 = vmatprep.subr.mxu0 %v387
  %970 = vmatpush1.msra.mxu0 %v386
  %971 = vmatprep.subr.mxu0 %v391
  %972 = vmatpush1.msra.mxu0 %v390
  %973 = vmatprep.subr.mxu0 %v395
  %974 = vmatpush1.msra.mxu0 %v394
  %975 = vmatprep.subr.mxu0 %v399
  %976 = vmatpush1.msra.mxu0 %v398
  %977 = vmatprep.subr.mxu0 %v403
  %978 = vmatpush1.msra.mxu0 %v402
  %979 = vmatprep.subr.mxu0 %v407
  %980 = vmatpush1.msra.mxu0 %v406
  %981 = vmatprep.subr.mxu0 %v411
  %982 = vmatpush1.msra.mxu0 %v410
  %983 = vmatprep.subr.mxu0 %v415
  %984 = vmatpush1.msra.mxu0 %v414
  %985 = vmatprep.subr.mxu0 %v419
  %986 = vmatpush1.msra.mxu0 %v418
  %987 = vmatprep.subr.mxu0 %v423
  %988 = vmatpush1.msra.mxu0 %v422
  %989 = vmatprep.subr.mxu0 %v427
  %990 = vmatpush1.msra.mxu0 %v426
  %991 = vmatprep.subr.mxu0 %v431
  %992 = vmatpush1.msra.mxu0 %v430
  %993 = vmatprep.subr.mxu0 %v435
  %994 = vmatpush1.msra.mxu0 %v434
  %995 = vmatprep.subr.mxu0 0.0
  %996 = vmatpush1.msra.mxu0 0.0
  %997 = vmatprep.subr.mxu0 0.0
  %998 = vmatpush1.msra.mxu0 0.0
  %999 = vmatprep.subr.mxu0 0.0
  %1000 = vmatpush1.msra.mxu0 0.0
  %1001 = vmatprep.subr.mxu0 0.0
  %1002 = vmatpush1.msra.mxu0 0.0
  %1003 = vmatprep.subr.mxu0 0.0
  %1004 = vmatpush1.msra.mxu0 0.0
  %1005 = vmatprep.subr.mxu0 0.0
  %1006 = vmatpush1.msra.mxu0 0.0
  %1007 = vmatprep.subr.mxu0 0.0
  %1008 = vmatpush1.msra.mxu0 0.0
  %1009 = vmatprep.subr.mxu0 0.0
  %1010 = vmatpush1.msra.mxu0 0.0
  %1011 = vmatprep.subr.mxu0 0.0
  %1012 = vmatpush1.msra.mxu0 0.0
  %1013 = vmatprep.subr.mxu0 0.0
  %1014 = vmatpush1.msra.mxu0 0.0
  %1015 = vmatprep.subr.mxu0 0.0
  %1016 = vmatpush1.msra.mxu0 0.0
  %1017 = vmatprep.subr.mxu0 0.0
  %1018 = vmatpush1.msra.mxu0 0.0
  %1019 = vmatprep.subr.mxu0 0.0
  %1020 = vmatpush1.msra.mxu0 0.0
  %1021 = vmatprep.subr.mxu0 0.0
  %1022 = vmatpush1.msra.mxu0 0.0
  %1023 = vmatprep.subr.mxu0 0.0
  %1024 = vmatpush1.msra.mxu0 0.0
  %1025 = vmatprep.subr.mxu0 0.0
  %1026 = vmatpush1.msra.mxu0 0.0
  %1027 = vmatprep.mubr.f32.mxu0 0.0
  %1028 = vmatmul.mubr.f32.gmra.mrb[0].mxu0 %v599
  %v1029 = vpop.f32.mrb[0].mxu0
  %v1030 = vadd.f32 0.0, %v1029
  %v1031 = vpop.f32.mrb[0].mxu0
  %v1032 = vadd.f32 0.0, %v1031
  %1033 = vdwg.mxu0
  %v1034 = vadd.f32 %v888, %v959
  %v1035 = vadd.f32 %v889, %v961
  %v1036 = vadd.f32 %v890, %v1030
  %v1037 = vadd.f32 %v891, %v1032
  %v1038 = vmul.f32 %v1034, 0.5
  %v1039 = vtanh.pop %v1038
  %v1040 = vmul.f32 %v1039, 0.5
  %v1041 = vadd.f32 %v1040, 0.5
  %v1042 = vmul.f32 %v1035, 0.5
  %v1043 = vtanh.pop %v1042
  %v1044 = vmul.f32 %v1043, 0.5
  %v1045 = vadd.f32 %v1044, 0.5
  %v1046 = vtanh.pop %v1036
  %v1047 = vmul.f32 %v1037, 0.5
  %v1048 = vtanh.pop %v1047
  %v1049 = vmul.f32 %v1048, 0.5
  %v1050 = vadd.f32 %v1049, 0.5
  %v1051 = vmul.f32 %v1045, %v597
  %v1052 = vmul.f32 %v1041, %v1046
  %v1053 = vadd.f32 %v1051, %v1052
  %v1054 = vtanh.pop %v1053
  %v1055 = vmul.f32 %v1050, %v1054
  %1056 = vmatprep.subr.mxu0 %v601
  %1057 = vmatpush1.msra.mxu0 %v600
  %1058 = vmatprep.subr.mxu0 %v605
  %1059 = vmatpush1.msra.mxu0 %v604
  %1060 = vmatprep.subr.mxu0 %v609
  %1061 = vmatpush1.msra.mxu0 %v608
  %1062 = vmatprep.subr.mxu0 %v613
  %1063 = vmatpush1.msra.mxu0 %v612
  %1064 = vmatprep.subr.mxu0 %v617
  %1065 = vmatpush1.msra.mxu0 %v616
  %1066 = vmatprep.subr.mxu0 %v621
  %1067 = vmatpush1.msra.mxu0 %v620
  %1068 = vmatprep.subr.mxu0 %v625
  %1069 = vmatpush1.msra.mxu0 %v624
  %1070 = vmatprep.subr.mxu0 %v629
  %1071 = vmatpush1.msra.mxu0 %v628
  %1072 = vmatprep.subr.mxu0 %v633
  %1073 = vmatpush1.msra.mxu0 %v632
  %1074 = vmatprep.subr.mxu0 %v637
  %1075 = vmatpush1.msra.mxu0 %v636
  %1076 = vmatprep.subr.mxu0 %v641
  %1077 = vmatpush1.msra.mxu0 %v640
  %1078 = vmatprep.subr.mxu0 %v645
  %1079 = vmatpush1.msra.mxu0 %v644
  %1080 = vmatprep.subr.mxu0 %v649
  %1081 = vmatpush1.msra.mxu0 %v648
  %1082 = vmatprep.subr.mxu0 %v653
  %1083 = vmatpush1.msra.mxu0 %v652
  %1084 = vmatprep.subr.mxu0 %v657
  %1085 = vmatpush1.msra.mxu0 %v656
  %1086 = vmatprep.subr.mxu0 %v661
  %1087 = vmatpush1.msra.mxu0 %v660
  %1088 = vmatprep.subr.mxu0 %v665
  %1089 = vmatpush1.msra.mxu0 %v664
  %1090 = vmatprep.subr.mxu0 %v669
  %1091 = vmatpush1.msra.mxu0 %v668
  %1092 = vmatprep.subr.mxu0 %v673
  %1093 = vmatpush1.msra.mxu0 %v672
  %1094 = vmatprep.subr.mxu0 %v677
  %1095 = vmatpush1.msra.mxu0 %v676
  %1096 = vmatprep.subr.mxu0 %v681
  %1097 = vmatpush1.msra.mxu0 %v680
  %1098 = vmatprep.subr.mxu0 %v685
  %1099 = vmatpush1.msra.mxu0 %v684
  %1100 = vmatprep.subr.mxu0 %v689
  %1101 = vmatpush1.msra.mxu0 %v688
  %1102 = vmatprep.subr.mxu0 %v693
  %1103 = vmatpush1.msra.mxu0 %v692
  %1104 = vmatprep.subr.mxu0 %v697
  %1105 = vmatpush1.msra.mxu0 %v696
  %1106 = vmatprep.subr.mxu0 %v701
  %1107 = vmatpush1.msra.mxu0 %v700
  %1108 = vmatprep.subr.mxu0 %v705
  %1109 = vmatpush1.msra.mxu0 %v704
  %1110 = vmatprep.subr.mxu0 %v709
  %1111 = vmatpush1.msra.mxu0 %v708
  %1112 = vmatprep.subr.mxu0 %v713
  %1113 = vmatpush1.msra.mxu0 %v712
  %1114 = vmatprep.subr.mxu0 %v717
  %1115 = vmatpush1.msra.mxu0 %v716
  %1116 = vmatprep.subr.mxu0 %v721
  %1117 = vmatpush1.msra.mxu0 %v720
  %1118 = vmatprep.subr.mxu0 %v725
  %1119 = vmatpush1.msra.mxu0 %v724
  %1120 = vmatprep.mubr.f32.mxu0 %v887
  %1121 = vmatmul.mubr.f32.gmra.mrb[0].mxu0 %v1055
  %v1122 = vpop.f32.mrb[0].mxu0
  %v1123 = vadd.f32 %v351, %v1122
  %v1124 = vpop.f32.mrb[0].mxu0
  %v1125 = vadd.f32 %v355, %v1124
  %1126 = vdwg.mxu0
  %1127 = vmatprep.subr.mxu0 %v603
  %1128 = vmatpush1.msra.mxu0 %v602
  %1129 = vmatprep.subr.mxu0 %v607
  %1130 = vmatpush1.msra.mxu0 %v606
  %1131 = vmatprep.subr.mxu0 %v611
  %1132 = vmatpush1.msra.mxu0 %v610
  %1133 = vmatprep.subr.mxu0 %v615
  %1134 = vmatpush1.msra.mxu0 %v614
  %1135 = vmatprep.subr.mxu0 %v619
  %1136 = vmatpush1.msra.mxu0 %v618
  %1137 = vmatprep.subr.mxu0 %v623
  %1138 = vmatpush1.msra.mxu0 %v622
  %1139 = vmatprep.subr.mxu0 %v627
  %1140 = vmatpush1.msra.mxu0 %v626
  %1141 = vmatprep.subr.mxu0 %v631
  %1142 = vmatpush1.msra.mxu0 %v630
  %1143 = vmatprep.subr.mxu0 %v635
  %1144 = vmatpush1.msra.mxu0 %v634
  %1145 = vmatprep.subr.mxu0 %v639
  %1146 = vmatpush1.msra.mxu0 %v638
  %1147 = vmatprep.subr.mxu0 %v643
  %1148 = vmatpush1.msra.mxu0 %v642
  %1149 = vmatprep.subr.mxu0 %v647
  %1150 = vmatpush1.msra.mxu0 %v646
  %1151 = vmatprep.subr.mxu0 %v651
  %1152 = vmatpush1.msra.mxu0 %v650
  %1153 = vmatprep.subr.mxu0 %v655
  %1154 = vmatpush1.msra.mxu0 %v654
  %1155 = vmatprep.subr.mxu0 %v659
  %1156 = vmatpush1.msra.mxu0 %v658
  %1157 = vmatprep.subr.mxu0 %v663
  %1158 = vmatpush1.msra.mxu0 %v662
  %1159 = vmatprep.subr.mxu0 %v667
  %1160 = vmatpush1.msra.mxu0 %v666
  %1161 = vmatprep.subr.mxu0 %v671
  %1162 = vmatpush1.msra.mxu0 %v670
  %1163 = vmatprep.subr.mxu0 %v675
  %1164 = vmatpush1.msra.mxu0 %v674
  %1165 = vmatprep.subr.mxu0 %v679
  %1166 = vmatpush1.msra.mxu0 %v678
  %1167 = vmatprep.subr.mxu0 %v683
  %1168 = vmatpush1.msra.mxu0 %v682
  %1169 = vmatprep.subr.mxu0 %v687
  %1170 = vmatpush1.msra.mxu0 %v686
  %1171 = vmatprep.subr.mxu0 %v691
  %1172 = vmatpush1.msra.mxu0 %v690
  %1173 = vmatprep.subr.mxu0 %v695
  %1174 = vmatpush1.msra.mxu0 %v694
  %1175 = vmatprep.subr.mxu0 %v699
  %1176 = vmatpush1.msra.mxu0 %v698
  %1177 = vmatprep.subr.mxu0 %v703
  %1178 = vmatpush1.msra.mxu0 %v702
  %1179 = vmatprep.subr.mxu0 %v707
  %1180 = vmatpush1.msra.mxu0 %v706
  %1181 = vmatprep.subr.mxu0 %v711
  %1182 = vmatpush1.msra.mxu0 %v710
  %1183 = vmatprep.subr.mxu0 %v715
  %1184 = vmatpush1.msra.mxu0 %v714
  %1185 = vmatprep.subr.mxu0 %v719
  %1186 = vmatpush1.msra.mxu0 %v718
  %1187 = vmatprep.subr.mxu0 %v723
  %1188 = vmatpush1.msra.mxu0 %v722
  %1189 = vmatprep.subr.mxu0 %v727
  %1190 = vmatpush1.msra.mxu0 %v726
  %1191 = vmatprep.mubr.f32.mxu0 %v887
  %1192 = vmatmul.mubr.f32.gmra.mrb[0].mxu0 %v1055
  %v1193 = vpop.f32.mrb[0].mxu0
  %v1194 = vadd.f32 %v359, %v1193
  %v1195 = vpop.f32.mrb[0].mxu0
  %v1196 = vadd.f32 %v363, %v1195
  %1197 = vdwg.mxu0
  %v1198 = vmul.f32 %v1123, 0.5
  %v1199 = vtanh.pop %v1198
  %v1200 = vmul.f32 %v1199, 0.5
  %v1201 = vadd.f32 %v1200, 0.5
  %v1202 = vmul.f32 %v1125, 0.5
  %v1203 = vtanh.pop %v1202
  %v1204 = vmul.f32 %v1203, 0.5
  %v1205 = vadd.f32 %v1204, 0.5
  %v1206 = vtanh.pop %v1194
  %v1207 = vmul.f32 %v1196, 0.5
  %v1208 = vtanh.pop %v1207
  %v1209 = vmul.f32 %v1208, 0.5
  %v1210 = vadd.f32 %v1209, 0.5
  %v1211 = vmul.f32 %v1205, %v885
  %v1212 = vmul.f32 %v1201, %v1206
  %v1213 = vadd.f32 %v1211, %v1212
  %v1214 = vtanh.pop %v1213
  %v1215 = vmul.f32 %v1210, %v1214
  %v1216 = vld [vmem:[#allocation2 + $0x40] sm:$0xff]
  %v1217 = vld [vmem:[#allocation2 + $0x48] sm:$0xff]
  %v1218 = vld [vmem:[#allocation2 + $0x50] sm:$0xff]
  %v1219 = vld [vmem:[#allocation2 + $0x58] sm:$0xff]
  %1220 = vmatprep.subr.mxu0 %v373
  %1221 = vmatpush1.msra.mxu0 %v372
  %1222 = vmatprep.subr.mxu0 %v377
  %1223 = vmatpush1.msra.mxu0 %v376
  %1224 = vmatprep.subr.mxu0 %v381
  %1225 = vmatpush1.msra.mxu0 %v380
  %1226 = vmatprep.subr.mxu0 %v385
  %1227 = vmatpush1.msra.mxu0 %v384
  %1228 = vmatprep.subr.mxu0 %v389
  %1229 = vmatpush1.msra.mxu0 %v388
  %1230 = vmatprep.subr.mxu0 %v393
  %1231 = vmatpush1.msra.mxu0 %v392
  %1232 = vmatprep.subr.mxu0 %v397
  %1233 = vmatpush1.msra.mxu0 %v396
  %1234 = vmatprep.subr.mxu0 %v401
  %1235 = vmatpush1.msra.mxu0 %v400
  %1236 = vmatprep.subr.mxu0 %v405
  %1237 = vmatpush1.msra.mxu0 %v404
  %1238 = vmatprep.subr.mxu0 %v409
  %1239 = vmatpush1.msra.mxu0 %v408
  %1240 = vmatprep.subr.mxu0 %v413
  %1241 = vmatpush1.msra.mxu0 %v412
  %1242 = vmatprep.subr.mxu0 %v417
  %1243 = vmatpush1.msra.mxu0 %v416
  %1244 = vmatprep.subr.mxu0 %v421
  %1245 = vmatpush1.msra.mxu0 %v420
  %1246 = vmatprep.subr.mxu0 %v425
  %1247 = vmatpush1.msra.mxu0 %v424
  %1248 = vmatprep.subr.mxu0 %v429
  %1249 = vmatpush1.msra.mxu0 %v428
  %1250 = vmatprep.subr.mxu0 %v433
  %1251 = vmatpush1.msra.mxu0 %v432
  %1252 = vmatprep.subr.mxu0 0.0
  %1253 = vmatpush1.msra.mxu0 0.0
  %1254 = vmatprep.subr.mxu0 0.0
  %1255 = vmatpush1.msra.mxu0 0.0
  %1256 = vmatprep.subr.mxu0 0.0
  %1257 = vmatpush1.msra.mxu0 0.0
  %1258 = vmatprep.subr.mxu0 0.0
  %1259 = vmatpush1.msra.mxu0 0.0
  %1260 = vmatprep.subr.mxu0 0.0
  %1261 = vmatpush1.msra.mxu0 0.0
  %1262 = vmatprep.subr.mxu0 0.0
  %1263 = vmatpush1.msra.mxu0 0.0
  %1264 = vmatprep.subr.mxu0 0.0
  %1265 = vmatpush1.msra.mxu0 0.0
  %1266 = vmatprep.subr.mxu0 0.0
  %1267 = vmatpush1.msra.mxu0 0.0
  %1268 = vmatprep.subr.mxu0 0.0
  %1269 = vmatpush1.msra.mxu0 0.0
  %1270 = vmatprep.subr.mxu0 0.0
  %1271 = vmatpush1.msra.mxu0 0.0
  %1272 = vmatprep.subr.mxu0 0.0
  %1273 = vmatpush1.msra.mxu0 0.0
  %1274 = vmatprep.subr.mxu0 0.0
  %1275 = vmatpush1.msra.mxu0 0.0
  %1276 = vmatprep.subr.mxu0 0.0
  %1277 = vmatpush1.msra.mxu0 0.0
  %1278 = vmatprep.subr.mxu0 0.0
  %1279 = vmatpush1.msra.mxu0 0.0
  %1280 = vmatprep.subr.mxu0 0.0
  %1281 = vmatpush1.msra.mxu0 0.0
  %1282 = vmatprep.subr.mxu0 0.0
  %1283 = vmatpush1.msra.mxu0 0.0
  %1284 = vmatprep.mubr.f32.mxu0 0.0
  %1285 = vmatmul.mubr.f32.gmra.mrb[0].mxu0 %v1055
  %v1286 = vpop.f32.mrb[0].mxu0
  %v1287 = vadd.f32 0.0, %v1286
  %v1288 = vpop.f32.mrb[0].mxu0
  %v1289 = vadd.f32 0.0, %v1288
  %1290 = vdwg.mxu0
  %1291 = vmatprep.subr.mxu0 %v375
  %1292 = vmatpush1.msra.mxu0 %v374
  %1293 = vmatprep.subr.mxu0 %v379
  %1294 = vmatpush1.msra.mxu0 %v378
  %1295 = vmatprep.subr.mxu0 %v383
  %1296 = vmatpush1.msra.mxu0 %v382
  %1297 = vmatprep.subr.mxu0 %v387
  %1298 = vmatpush1.msra.mxu0 %v386
  %1299 = vmatprep.subr.mxu0 %v391
  %1300 = vmatpush1.msra.mxu0 %v390
  %1301 = vmatprep.subr.mxu0 %v395
  %1302 = vmatpush1.msra.mxu0 %v394
  %1303 = vmatprep.subr.mxu0 %v399
  %1304 = vmatpush1.msra.mxu0 %v398
  %1305 = vmatprep.subr.mxu0 %v403
  %1306 = vmatpush1.msra.mxu0 %v402
  %1307 = vmatprep.subr.mxu0 %v407
  %1308 = vmatpush1.msra.mxu0 %v406
  %1309 = vmatprep.subr.mxu0 %v411
  %1310 = vmatpush1.msra.mxu0 %v410
  %1311 = vmatprep.subr.mxu0 %v415
  %1312 = vmatpush1.msra.mxu0 %v414
  %1313 = vmatprep.subr.mxu0 %v419
  %1314 = vmatpush1.msra.mxu0 %v418
  %1315 = vmatprep.subr.mxu0 %v423
  %1316 = vmatpush1.msra.mxu0 %v422
  %1317 = vmatprep.subr.mxu0 %v427
  %1318 = vmatpush1.msra.mxu0 %v426
  %1319 = vmatprep.subr.mxu0 %v431
  %1320 = vmatpush1.msra.mxu0 %v430
  %1321 = vmatprep.subr.mxu0 %v435
  %1322 = vmatpush1.msra.mxu0 %v434
  %1323 = vmatprep.subr.mxu0 0.0
  %1324 = vmatpush1.msra.mxu0 0.0
  %1325 = vmatprep.subr.mxu0 0.0
  %1326 = vmatpush1.msra.mxu0 0.0
  %1327 = vmatprep.subr.mxu0 0.0
  %1328 = vmatpush1.msra.mxu0 0.0
  %1329 = vmatprep.subr.mxu0 0.0
  %1330 = vmatpush1.msra.mxu0 0.0
  %1331 = vmatprep.subr.mxu0 0.0
  %1332 = vmatpush1.msra.mxu0 0.0
  %1333 = vmatprep.subr.mxu0 0.0
  %1334 = vmatpush1.msra.mxu0 0.0
  %1335 = vmatprep.subr.mxu0 0.0
  %1336 = vmatpush1.msra.mxu0 0.0
  %1337 = vmatprep.subr.mxu0 0.0
  %1338 = vmatpush1.msra.mxu0 0.0
  %1339 = vmatprep.subr.mxu0 0.0
  %1340 = vmatpush1.msra.mxu0 0.0
  %1341 = vmatprep.subr.mxu0 0.0
  %1342 = vmatpush1.msra.mxu0 0.0
  %1343 = vmatprep.subr.mxu0 0.0
  %1344 = vmatpush1.msra.mxu0 0.0
  %1345 = vmatprep.subr.mxu0 0.0
  %1346 = vmatpush1.msra.mxu0 0.0
  %1347 = vmatprep.subr.mxu0 0.0
  %1348 = vmatpush1.msra.mxu0 0.0
  %1349 = vmatprep.subr.mxu0 0.0
  %1350 = vmatpush1.msra.mxu0 0.0
  %1351 = vmatprep.subr.mxu0 0.0
  %1352 = vmatpush1.msra.mxu0 0.0
  %1353 = vmatprep.subr.mxu0 0.0
  %1354 = vmatpush1.msra.mxu0 0.0
  %1355 = vmatprep.mubr.f32.mxu0 0.0
  %1356 = vmatmul.mubr.f32.gmra.mrb[0].mxu0 %v1055
  %v1357 = vpop.f32.mrb[0].mxu0
  %v1358 = vadd.f32 0.0, %v1357
  %v1359 = vpop.f32.mrb[0].mxu0
  %v1360 = vadd.f32 0.0, %v1359
  %1361 = vdwg.mxu0
  %v1362 = vadd.f32 %v1216, %v1287
  %v1363 = vadd.f32 %v1217, %v1289
  %v1364 = vadd.f32 %v1218, %v1358
  %v1365 = vadd.f32 %v1219, %v1360
  %v1366 = vmul.f32 %v1362, 0.5
  %v1367 = vtanh.pop %v1366
  %v1368 = vmul.f32 %v1367, 0.5
  %v1369 = vadd.f32 %v1368, 0.5
  %v1370 = vmul.f32 %v1363, 0.5
  %v1371 = vtanh.pop %v1370
  %v1372 = vmul.f32 %v1371, 0.5
  %v1373 = vadd.f32 %v1372, 0.5
  %v1374 = vtanh.pop %v1364
  %v1375 = vmul.f32 %v1365, 0.5
  %v1376 = vtanh.pop %v1375
  %v1377 = vmul.f32 %v1376, 0.5
  %v1378 = vadd.f32 %v1377, 0.5
  %v1379 = vmul.f32 %v1373, %v1053
  %v1380 = vmul.f32 %v1369, %v1374
  %v1381 = vadd.f32 %v1379, %v1380
  %v1382 = vtanh.pop %v1381
  %v1383 = vmul.f32 %v1378, %v1382
  %1384 = vmatprep.subr.mxu0 %v601
  %1385 = vmatpush1.msra.mxu0 %v600
  %1386 = vmatprep.subr.mxu0 %v605
  %1387 = vmatpush1.msra.mxu0 %v604
  %1388 = vmatprep.subr.mxu0 %v609
  %1389 = vmatpush1.msra.mxu0 %v608
  %1390 = vmatprep.subr.mxu0 %v613
  %1391 = vmatpush1.msra.mxu0 %v612
  %1392 = vmatprep.subr.mxu0 %v617
  %1393 = vmatpush1.msra.mxu0 %v616
  %1394 = vmatprep.subr.mxu0 %v621
  %1395 = vmatpush1.msra.mxu0 %v620
  %1396 = vmatprep.subr.mxu0 %v625
  %1397 = vmatpush1.msra.mxu0 %v624
  %1398 = vmatprep.subr.mxu0 %v629
  %1399 = vmatpush1.msra.mxu0 %v628
  %1400 = vmatprep.subr.mxu0 %v633
  %1401 = vmatpush1.msra.mxu0 %v632
  %1402 = vmatprep.subr.mxu0 %v637
  %1403 = vmatpush1.msra.mxu0 %v636
  %1404 = vmatprep.subr.mxu0 %v641
  %1405 = vmatpush1.msra.mxu0 %v640
  %1406 = vmatprep.subr.mxu0 %v645
  %1407 = vmatpush1.msra.mxu0 %v644
  %1408 = vmatprep.subr.mxu0 %v649
  %1409 = vmatpush1.msra.mxu0 %v648
  %1410 = vmatprep.subr.mxu0 %v653
  %1411 = vmatpush1.msra.mxu0 %v652
  %1412 = vmatprep.subr.mxu0 %v657
  %1413 = vmatpush1.msra.mxu0 %v656
  %1414 = vmatprep.subr.mxu0 %v661
  %1415 = vmatpush1.msra.mxu0 %v660
  %1416 = vmatprep.subr.mxu0 %v665
  %1417 = vmatpush1.msra.mxu0 %v664
  %1418 = vmatprep.subr.mxu0 %v669
  %1419 = vmatpush1.msra.mxu0 %v668
  %1420 = vmatprep.subr.mxu0 %v673
  %1421 = vmatpush1.msra.mxu0 %v672
  %1422 = vmatprep.subr.mxu0 %v677
  %1423 = vmatpush1.msra.mxu0 %v676
  %1424 = vmatprep.subr.mxu0 %v681
  %1425 = vmatpush1.msra.mxu0 %v680
  %1426 = vmatprep.subr.mxu0 %v685
  %1427 = vmatpush1.msra.mxu0 %v684
  %1428 = vmatprep.subr.mxu0 %v689
  %1429 = vmatpush1.msra.mxu0 %v688
  %1430 = vmatprep.subr.mxu0 %v693
  %1431 = vmatpush1.msra.mxu0 %v692
  %1432 = vmatprep.subr.mxu0 %v697
  %1433 = vmatpush1.msra.mxu0 %v696
  %1434 = vmatprep.subr.mxu0 %v701
  %1435 = vmatpush1.msra.mxu0 %v700
  %1436 = vmatprep.subr.mxu0 %v705
  %1437 = vmatpush1.msra.mxu0 %v704
  %1438 = vmatprep.subr.mxu0 %v709
  %1439 = vmatpush1.msra.mxu0 %v708
  %1440 = vmatprep.subr.mxu0 %v713
  %1441 = vmatpush1.msra.mxu0 %v712
  %1442 = vmatprep.subr.mxu0 %v717
  %1443 = vmatpush1.msra.mxu0 %v716
  %1444 = vmatprep.subr.mxu0 %v721
  %1445 = vmatpush1.msra.mxu0 %v720
  %1446 = vmatprep.subr.mxu0 %v725
  %1447 = vmatpush1.msra.mxu0 %v724
  %1448 = vmatprep.mubr.f32.mxu0 %v1215
  %1449 = vmatmul.mubr.f32.gmra.mrb[0].mxu0 %v1383
  %v1450 = vpop.f32.mrb[0].mxu0
  %v1451 = vadd.f32 %v351, %v1450
  %v1452 = vpop.f32.mrb[0].mxu0
  %v1453 = vadd.f32 %v355, %v1452
  %1454 = vdwg.mxu0
  %1455 = vmatprep.subr.mxu0 %v603
  %1456 = vmatpush1.msra.mxu0 %v602
  %1457 = vmatprep.subr.mxu0 %v607
  %1458 = vmatpush1.msra.mxu0 %v606
  %1459 = vmatprep.subr.mxu0 %v611
  %1460 = vmatpush1.msra.mxu0 %v610
  %1461 = vmatprep.subr.mxu0 %v615
  %1462 = vmatpush1.msra.mxu0 %v614
  %1463 = vmatprep.subr.mxu0 %v619
  %1464 = vmatpush1.msra.mxu0 %v618
  %1465 = vmatprep.subr.mxu0 %v623
  %1466 = vmatpush1.msra.mxu0 %v622
  %1467 = vmatprep.subr.mxu0 %v627
  %1468 = vmatpush1.msra.mxu0 %v626
  %1469 = vmatprep.subr.mxu0 %v631
  %1470 = vmatpush1.msra.mxu0 %v630
  %1471 = vmatprep.subr.mxu0 %v635
  %1472 = vmatpush1.msra.mxu0 %v634
  %1473 = vmatprep.subr.mxu0 %v639
  %1474 = vmatpush1.msra.mxu0 %v638
  %1475 = vmatprep.subr.mxu0 %v643
  %1476 = vmatpush1.msra.mxu0 %v642
  %1477 = vmatprep.subr.mxu0 %v647
  %1478 = vmatpush1.msra.mxu0 %v646
  %1479 = vmatprep.subr.mxu0 %v651
  %1480 = vmatpush1.msra.mxu0 %v650
  %1481 = vmatprep.subr.mxu0 %v655
  %1482 = vmatpush1.msra.mxu0 %v654
  %1483 = vmatprep.subr.mxu0 %v659
  %1484 = vmatpush1.msra.mxu0 %v658
  %1485 = vmatprep.subr.mxu0 %v663
  %1486 = vmatpush1.msra.mxu0 %v662
  %1487 = vmatprep.subr.mxu0 %v667
  %1488 = vmatpush1.msra.mxu0 %v666
  %1489 = vmatprep.subr.mxu0 %v671
  %1490 = vmatpush1.msra.mxu0 %v670
  %1491 = vmatprep.subr.mxu0 %v675
  %1492 = vmatpush1.msra.mxu0 %v674
  %1493 = vmatprep.subr.mxu0 %v679
  %1494 = vmatpush1.msra.mxu0 %v678
  %1495 = vmatprep.subr.mxu0 %v683
  %1496 = vmatpush1.msra.mxu0 %v682
  %1497 = vmatprep.subr.mxu0 %v687
  %1498 = vmatpush1.msra.mxu0 %v686
  %1499 = vmatprep.subr.mxu0 %v691
  %1500 = vmatpush1.msra.mxu0 %v690
  %1501 = vmatprep.subr.mxu0 %v695
  %1502 = vmatpush1.msra.mxu0 %v694
  %1503 = vmatprep.subr.mxu0 %v699
  %1504 = vmatpush1.msra.mxu0 %v698
  %1505 = vmatprep.subr.mxu0 %v703
  %1506 = vmatpush1.msra.mxu0 %v702
  %1507 = vmatprep.subr.mxu0 %v707
  %1508 = vmatpush1.msra.mxu0 %v706
  %1509 = vmatprep.subr.mxu0 %v711
  %1510 = vmatpush1.msra.mxu0 %v710
  %1511 = vmatprep.subr.mxu0 %v715
  %1512 = vmatpush1.msra.mxu0 %v714
  %1513 = vmatprep.subr.mxu0 %v719
  %1514 = vmatpush1.msra.mxu0 %v718
  %1515 = vmatprep.subr.mxu0 %v723
  %1516 = vmatpush1.msra.mxu0 %v722
  %1517 = vmatprep.subr.mxu0 %v727
  %1518 = vmatpush1.msra.mxu0 %v726
  %1519 = vmatprep.mubr.f32.mxu0 %v1215
  %1520 = vmatmul.mubr.f32.gmra.mrb[0].mxu0 %v1383
  %v1521 = vpop.f32.mrb[0].mxu0
  %v1522 = vadd.f32 %v359, %v1521
  %v1523 = vpop.f32.mrb[0].mxu0
  %v1524 = vadd.f32 %v363, %v1523
  %1525 = vdwg.mxu0
  %v1526 = vmul.f32 %v1451, 0.5
  %v1527 = vtanh.pop %v1526
  %v1528 = vmul.f32 %v1527, 0.5
  %v1529 = vadd.f32 %v1528, 0.5
  %v1530 = vmul.f32 %v1453, 0.5
  %v1531 = vtanh.pop %v1530
  %v1532 = vmul.f32 %v1531, 0.5
  %v1533 = vadd.f32 %v1532, 0.5
  %v1534 = vtanh.pop %v1522
  %v1535 = vmul.f32 %v1524, 0.5
  %v1536 = vtanh.pop %v1535
  %v1537 = vmul.f32 %v1536, 0.5
  %v1538 = vadd.f32 %v1537, 0.5
  %v1539 = vmul.f32 %v1533, %v1213
  %v1540 = vmul.f32 %v1529, %v1534
  %v1541 = vadd.f32 %v1539, %v1540
  %v1542 = vtanh.pop %v1541
  %v1543 = vmul.f32 %v1538, %v1542
  %v1544 = vld [vmem:[#allocation2 + $0x60] sm:$0xff]
  %v1545 = vld [vmem:[#allocation2 + $0x68] sm:$0xff]
  %v1546 = vld [vmem:[#allocation2 + $0x70] sm:$0xff]
  %v1547 = vld [vmem:[#allocation2 + $0x78] sm:$0xff]
  %1548 = vmatprep.subr.mxu0 %v373
  %1549 = vmatpush1.msra.mxu0 %v372
  %1550 = vmatprep.subr.mxu0 %v377
  %1551 = vmatpush1.msra.mxu0 %v376
  %1552 = vmatprep.subr.mxu0 %v381
  %1553 = vmatpush1.msra.mxu0 %v380
  %1554 = vmatprep.subr.mxu0 %v385
  %1555 = vmatpush1.msra.mxu0 %v384
  %1556 = vmatprep.subr.mxu0 %v389
  %1557 = vmatpush1.msra.mxu0 %v388
  %1558 = vmatprep.subr.mxu0 %v393
  %1559 = vmatpush1.msra.mxu0 %v392
  %1560 = vmatprep.subr.mxu0 %v397
  %1561 = vmatpush1.msra.mxu0 %v396
  %1562 = vmatprep.subr.mxu0 %v401
  %1563 = vmatpush1.msra.mxu0 %v400
  %1564 = vmatprep.subr.mxu0 %v405
  %1565 = vmatpush1.msra.mxu0 %v404
  %1566 = vmatprep.subr.mxu0 %v409
  %1567 = vmatpush1.msra.mxu0 %v408
  %1568 = vmatprep.subr.mxu0 %v413
  %1569 = vmatpush1.msra.mxu0 %v412
  %1570 = vmatprep.subr.mxu0 %v417
  %1571 = vmatpush1.msra.mxu0 %v416
  %1572 = vmatprep.subr.mxu0 %v421
  %1573 = vmatpush1.msra.mxu0 %v420
  %1574 = vmatprep.subr.mxu0 %v425
  %1575 = vmatpush1.msra.mxu0 %v424
  %1576 = vmatprep.subr.mxu0 %v429
  %1577 = vmatpush1.msra.mxu0 %v428
  %1578 = vmatprep.subr.mxu0 %v433
  %1579 = vmatpush1.msra.mxu0 %v432
  %1580 = vmatprep.subr.mxu0 0.0
  %1581 = vmatpush1.msra.mxu0 0.0
  %1582 = vmatprep.subr.mxu0 0.0
  %1583 = vmatpush1.msra.mxu0 0.0
  %1584 = vmatprep.subr.mxu0 0.0
  %1585 = vmatpush1.msra.mxu0 0.0
  %1586 = vmatprep.subr.mxu0 0.0
  %1587 = vmatpush1.msra.mxu0 0.0
  %1588 = vmatprep.subr.mxu0 0.0
  %1589 = vmatpush1.msra.mxu0 0.0
  %1590 = vmatprep.subr.mxu0 0.0
  %1591 = vmatpush1.msra.mxu0 0.0
  %1592 = vmatprep.subr.mxu0 0.0
  %1593 = vmatpush1.msra.mxu0 0.0
  %1594 = vmatprep.subr.mxu0 0.0
  %1595 = vmatpush1.msra.mxu0 0.0
  %1596 = vmatprep.subr.mxu0 0.0
  %1597 = vmatpush1.msra.mxu0 0.0
  %1598 = vmatprep.subr.mxu0 0.0
  %1599 = vmatpush1.msra.mxu0 0.0
  %1600 = vmatprep.subr.mxu0 0.0
  %1601 = vmatpush1.msra.mxu0 0.0
  %1602 = vmatprep.subr.mxu0 0.0
  %1603 = vmatpush1.msra.mxu0 0.0
  %1604 = vmatprep.subr.mxu0 0.0
  %1605 = vmatpush1.msra.mxu0 0.0
  %1606 = vmatprep.subr.mxu0 0.0
  %1607 = vmatpush1.msra.mxu0 0.0
  %1608 = vmatprep.subr.mxu0 0.0
  %1609 = vmatpush1.msra.mxu0 0.0
  %1610 = vmatprep.subr.mxu0 0.0
  %1611 = vmatpush1.msra.mxu0 0.0
  %1612 = vmatprep.mubr.f32.mxu0 0.0
  %1613 = vmatmul.mubr.f32.gmra.mrb[0].mxu0 %v1383
  %v1614 = vpop.f32.mrb[0].mxu0
  %v1615 = vadd.f32 0.0, %v1614
  %v1616 = vpop.f32.mrb[0].mxu0
  %v1617 = vadd.f32 0.0, %v1616
  %1618 = vdwg.mxu0
  %1619 = vmatprep.subr.mxu0 %v375
  %1620 = vmatpush1.msra.mxu0 %v374
  %1621 = vmatprep.subr.mxu0 %v379
  %1622 = vmatpush1.msra.mxu0 %v378
  %1623 = vmatprep.subr.mxu0 %v383
  %1624 = vmatpush1.msra.mxu0 %v382
  %1625 = vmatprep.subr.mxu0 %v387
  %1626 = vmatpush1.msra.mxu0 %v386
  %1627 = vmatprep.subr.mxu0 %v391
  %1628 = vmatpush1.msra.mxu0 %v390
  %1629 = vmatprep.subr.mxu0 %v395
  %1630 = vmatpush1.msra.mxu0 %v394
  %1631 = vmatprep.subr.mxu0 %v399
  %1632 = vmatpush1.msra.mxu0 %v398
  %1633 = vmatprep.subr.mxu0 %v403
  %1634 = vmatpush1.msra.mxu0 %v402
  %1635 = vmatprep.subr.mxu0 %v407
  %1636 = vmatpush1.msra.mxu0 %v406
  %1637 = vmatprep.subr.mxu0 %v411
  %1638 = vmatpush1.msra.mxu0 %v410
  %1639 = vmatprep.subr.mxu0 %v415
  %1640 = vmatpush1.msra.mxu0 %v414
  %1641 = vmatprep.subr.mxu0 %v419
  %1642 = vmatpush1.msra.mxu0 %v418
  %1643 = vmatprep.subr.mxu0 %v423
  %1644 = vmatpush1.msra.mxu0 %v422
  %1645 = vmatprep.subr.mxu0 %v427
  %1646 = vmatpush1.msra.mxu0 %v426
  %1647 = vmatprep.subr.mxu0 %v431
  %1648 = vmatpush1.msra.mxu0 %v430
  %1649 = vmatprep.subr.mxu0 %v435
  %1650 = vmatpush1.msra.mxu0 %v434
  %1651 = vmatprep.subr.mxu0 0.0
  %1652 = vmatpush1.msra.mxu0 0.0
  %1653 = vmatprep.subr.mxu0 0.0
  %1654 = vmatpush1.msra.mxu0 0.0
  %1655 = vmatprep.subr.mxu0 0.0
  %1656 = vmatpush1.msra.mxu0 0.0
  %1657 = vmatprep.subr.mxu0 0.0
  %1658 = vmatpush1.msra.mxu0 0.0
  %1659 = vmatprep.subr.mxu0 0.0
  %1660 = vmatpush1.msra.mxu0 0.0
  %1661 = vmatprep.subr.mxu0 0.0
  %1662 = vmatpush1.msra.mxu0 0.0
  %1663 = vmatprep.subr.mxu0 0.0
  %1664 = vmatpush1.msra.mxu0 0.0
  %1665 = vmatprep.subr.mxu0 0.0
  %1666 = vmatpush1.msra.mxu0 0.0
  %1667 = vmatprep.subr.mxu0 0.0
  %1668 = vmatpush1.msra.mxu0 0.0
  %1669 = vmatprep.subr.mxu0 0.0
  %1670 = vmatpush1.msra.mxu0 0.0
  %1671 = vmatprep.subr.mxu0 0.0
  %1672 = vmatpush1.msra.mxu0 0.0
  %1673 = vmatprep.subr.mxu0 0.0
  %1674 = vmatpush1.msra.mxu0 0.0
  %1675 = vmatprep.subr.mxu0 0.0
  %1676 = vmatpush1.msra.mxu0 0.0
  %1677 = vmatprep.subr.mxu0 0.0
  %1678 = vmatpush1.msra.mxu0 0.0
  %1679 = vmatprep.subr.mxu0 0.0
  %1680 = vmatpush1.msra.mxu0 0.0
  %1681 = vmatprep.subr.mxu0 0.0
  %1682 = vmatpush1.msra.mxu0 0.0
  %1683 = vmatprep.mubr.f32.mxu0 0.0
  %1684 = vmatmul.mubr.f32.gmra.mrb[0].mxu0 %v1383
  %v1685 = vpop.f32.mrb[0].mxu0
  %v1686 = vadd.f32 0.0, %v1685
  %v1687 = vpop.f32.mrb[0].mxu0
  %v1688 = vadd.f32 0.0, %v1687
  %1689 = vdwg.mxu0
  %v1690 = vadd.f32 %v1544, %v1615
  %v1691 = vadd.f32 %v1545, %v1617
  %v1692 = vadd.f32 %v1546, %v1686
  %v1693 = vadd.f32 %v1547, %v1688
  %v1694 = vmul.f32 %v1690, 0.5
  %v1695 = vtanh.pop %v1694
  %v1696 = vmul.f32 %v1695, 0.5
  %v1697 = vadd.f32 %v1696, 0.5
  %v1698 = vmul.f32 %v1691, 0.5
  %v1699 = vtanh.pop %v1698
  %v1700 = vmul.f32 %v1699, 0.5
  %v1701 = vadd.f32 %v1700, 0.5
  %v1702 = vtanh.pop %v1692
  %v1703 = vmul.f32 %v1693, 0.5
  %v1704 = vtanh.pop %v1703
  %v1705 = vmul.f32 %v1704, 0.5
  %v1706 = vadd.f32 %v1705, 0.5
  %v1707 = vmul.f32 %v1701, %v1381
  %v1708 = vmul.f32 %v1697, %v1702
  %v1709 = vadd.f32 %v1707, %v1708
  %v1710 = vtanh.pop %v1709
  %v1711 = vmul.f32 %v1706, %v1710
  %1712 = vmatprep.subr.mxu0 %v601
  %1713 = vmatpush1.msra.mxu0 %v600
  %1714 = vmatprep.subr.mxu0 %v605
  %1715 = vmatpush1.msra.mxu0 %v604
  %1716 = vmatprep.subr.mxu0 %v609
  %1717 = vmatpush1.msra.mxu0 %v608
  %1718 = vmatprep.subr.mxu0 %v613
  %1719 = vmatpush1.msra.mxu0 %v612
  %1720 = vmatprep.subr.mxu0 %v617
  %1721 = vmatpush1.msra.mxu0 %v616
  %1722 = vmatprep.subr.mxu0 %v621
  %1723 = vmatpush1.msra.mxu0 %v620
  %1724 = vmatprep.subr.mxu0 %v625
  %1725 = vmatpush1.msra.mxu0 %v624
  %1726 = vmatprep.subr.mxu0 %v629
  %1727 = vmatpush1.msra.mxu0 %v628
  %1728 = vmatprep.subr.mxu0 %v633
  %1729 = vmatpush1.msra.mxu0 %v632
  %1730 = vmatprep.subr.mxu0 %v637
  %1731 = vmatpush1.msra.mxu0 %v636
  %1732 = vmatprep.subr.mxu0 %v641
  %1733 = vmatpush1.msra.mxu0 %v640
  %1734 = vmatprep.subr.mxu0 %v645
  %1735 = vmatpush1.msra.mxu0 %v644
  %1736 = vmatprep.subr.mxu0 %v649
  %1737 = vmatpush1.msra.mxu0 %v648
  %1738 = vmatprep.subr.mxu0 %v653
  %1739 = vmatpush1.msra.mxu0 %v652
  %1740 = vmatprep.subr.mxu0 %v657
  %1741 = vmatpush1.msra.mxu0 %v656
  %1742 = vmatprep.subr.mxu0 %v661
  %1743 = vmatpush1.msra.mxu0 %v660
  %1744 = vmatprep.subr.mxu0 %v665
  %1745 = vmatpush1.msra.mxu0 %v664
  %1746 = vmatprep.subr.mxu0 %v669
  %1747 = vmatpush1.msra.mxu0 %v668
  %1748 = vmatprep.subr.mxu0 %v673
  %1749 = vmatpush1.msra.mxu0 %v672
  %1750 = vmatprep.subr.mxu0 %v677
  %1751 = vmatpush1.msra.mxu0 %v676
  %1752 = vmatprep.subr.mxu0 %v681
  %1753 = vmatpush1.msra.mxu0 %v680
  %1754 = vmatprep.subr.mxu0 %v685
  %1755 = vmatpush1.msra.mxu0 %v684
  %1756 = vmatprep.subr.mxu0 %v689
  %1757 = vmatpush1.msra.mxu0 %v688
  %1758 = vmatprep.subr.mxu0 %v693
  %1759 = vmatpush1.msra.mxu0 %v692
  %1760 = vmatprep.subr.mxu0 %v697
  %1761 = vmatpush1.msra.mxu0 %v696
  %1762 = vmatprep.subr.mxu0 %v701
  %1763 = vmatpush1.msra.mxu0 %v700
  %1764 = vmatprep.subr.mxu0 %v705
  %1765 = vmatpush1.msra.mxu0 %v704
  %1766 = vmatprep.subr.mxu0 %v709
  %1767 = vmatpush1.msra.mxu0 %v708
  %1768 = vmatprep.subr.mxu0 %v713
  %1769 = vmatpush1.msra.mxu0 %v712
  %1770 = vmatprep.subr.mxu0 %v717
  %1771 = vmatpush1.msra.mxu0 %v716
  %1772 = vmatprep.subr.mxu0 %v721
  %1773 = vmatpush1.msra.mxu0 %v720
  %1774 = vmatprep.subr.mxu0 %v725
  %1775 = vmatpush1.msra.mxu0 %v724
  %1776 = vmatprep.mubr.f32.mxu0 %v1543
  %1777 = vmatmul.mubr.f32.gmra.mrb[0].mxu0 %v1711
  %v1778 = vpop.f32.mrb[0].mxu0
  %v1779 = vadd.f32 %v351, %v1778
  %v1780 = vpop.f32.mrb[0].mxu0
  %v1781 = vadd.f32 %v355, %v1780
  %1782 = vdwg.mxu0
  %1783 = vmatprep.subr.mxu0 %v603
  %1784 = vmatpush1.msra.mxu0 %v602
  %1785 = vmatprep.subr.mxu0 %v607
  %1786 = vmatpush1.msra.mxu0 %v606
  %1787 = vmatprep.subr.mxu0 %v611
  %1788 = vmatpush1.msra.mxu0 %v610
  %1789 = vmatprep.subr.mxu0 %v615
  %1790 = vmatpush1.msra.mxu0 %v614
  %1791 = vmatprep.subr.mxu0 %v619
  %1792 = vmatpush1.msra.mxu0 %v618
  %1793 = vmatprep.subr.mxu0 %v623
  %1794 = vmatpush1.msra.mxu0 %v622
  %1795 = vmatprep.subr.mxu0 %v627
  %1796 = vmatpush1.msra.mxu0 %v626
  %1797 = vmatprep.subr.mxu0 %v631
  %1798 = vmatpush1.msra.mxu0 %v630
  %1799 = vmatprep.subr.mxu0 %v635
  %1800 = vmatpush1.msra.mxu0 %v634
  %1801 = vmatprep.subr.mxu0 %v639
  %1802 = vmatpush1.msra.mxu0 %v638
  %1803 = vmatprep.subr.mxu0 %v643
  %1804 = vmatpush1.msra.mxu0 %v642
  %1805 = vmatprep.subr.mxu0 %v647
  %1806 = vmatpush1.msra.mxu0 %v646
  %1807 = vmatprep.subr.mxu0 %v651
  %1808 = vmatpush1.msra.mxu0 %v650
  %1809 = vmatprep.subr.mxu0 %v655
  %1810 = vmatpush1.msra.mxu0 %v654
  %1811 = vmatprep.subr.mxu0 %v659
  %1812 = vmatpush1.msra.mxu0 %v658
  %1813 = vmatprep.subr.mxu0 %v663
  %1814 = vmatpush1.msra.mxu0 %v662
  %1815 = vmatprep.subr.mxu0 %v667
  %1816 = vmatpush1.msra.mxu0 %v666
  %1817 = vmatprep.subr.mxu0 %v671
  %1818 = vmatpush1.msra.mxu0 %v670
  %1819 = vmatprep.subr.mxu0 %v675
  %1820 = vmatpush1.msra.mxu0 %v674
  %1821 = vmatprep.subr.mxu0 %v679
  %1822 = vmatpush1.msra.mxu0 %v678
  %1823 = vmatprep.subr.mxu0 %v683
  %1824 = vmatpush1.msra.mxu0 %v682
  %1825 = vmatprep.subr.mxu0 %v687
  %1826 = vmatpush1.msra.mxu0 %v686
  %1827 = vmatprep.subr.mxu0 %v691
  %1828 = vmatpush1.msra.mxu0 %v690
  %1829 = vmatprep.subr.mxu0 %v695
  %1830 = vmatpush1.msra.mxu0 %v694
  %1831 = vmatprep.subr.mxu0 %v699
  %1832 = vmatpush1.msra.mxu0 %v698
  %1833 = vmatprep.subr.mxu0 %v703
  %1834 = vmatpush1.msra.mxu0 %v702
  %1835 = vmatprep.subr.mxu0 %v707
  %1836 = vmatpush1.msra.mxu0 %v706
  %1837 = vmatprep.subr.mxu0 %v711
  %1838 = vmatpush1.msra.mxu0 %v710
  %1839 = vmatprep.subr.mxu0 %v715
  %1840 = vmatpush1.msra.mxu0 %v714
  %1841 = vmatprep.subr.mxu0 %v719
  %1842 = vmatpush1.msra.mxu0 %v718
  %1843 = vmatprep.subr.mxu0 %v723
  %1844 = vmatpush1.msra.mxu0 %v722
  %1845 = vmatprep.subr.mxu0 %v727
  %1846 = vmatpush1.msra.mxu0 %v726
  %1847 = vmatprep.mubr.f32.mxu0 %v1543
  %1848 = vmatmul.mubr.f32.gmra.mrb[0].mxu0 %v1711
  %v1849 = vpop.f32.mrb[0].mxu0
  %v1850 = vadd.f32 %v359, %v1849
  %v1851 = vpop.f32.mrb[0].mxu0
  %v1852 = vadd.f32 %v363, %v1851
  %1853 = vdwg.mxu0
  %v1854 = vmul.f32 %v1779, 0.5
  %v1855 = vtanh.pop %v1854
  %v1856 = vmul.f32 %v1855, 0.5
  %v1857 = vadd.f32 %v1856, 0.5
  %v1858 = vmul.f32 %v1781, 0.5
  %v1859 = vtanh.pop %v1858
  %v1860 = vmul.f32 %v1859, 0.5
  %v1861 = vadd.f32 %v1860, 0.5
  %v1862 = vtanh.pop %v1850
  %v1863 = vmul.f32 %v1852, 0.5
  %v1864 = vtanh.pop %v1863
  %v1865 = vmul.f32 %v1864, 0.5
  %v1866 = vadd.f32 %v1865, 0.5
  %v1867 = vmul.f32 %v1861, %v1541
  %v1868 = vmul.f32 %v1857, %v1862
  %v1869 = vadd.f32 %v1867, %v1868
  %v1870 = vtanh.pop %v1869
  %v1871 = vmul.f32 %v1866, %v1870
  %v1872 = vld [vmem:[#allocation2 + $0x80] sm:$0xff]
  %v1873 = vld [vmem:[#allocation2 + $0x88] sm:$0xff]
  %v1874 = vld [vmem:[#allocation2 + $0x90] sm:$0xff]
  %v1875 = vld [vmem:[#allocation2 + $0x98] sm:$0xff]
  %1876 = vmatprep.subr.mxu0 %v373
  %1877 = vmatpush1.msra.mxu0 %v372
  %1878 = vmatprep.subr.mxu0 %v377
  %1879 = vmatpush1.msra.mxu0 %v376
  %1880 = vmatprep.subr.mxu0 %v381
  %1881 = vmatpush1.msra.mxu0 %v380
  %1882 = vmatprep.subr.mxu0 %v385
  %1883 = vmatpush1.msra.mxu0 %v384
  %1884 = vmatprep.subr.mxu0 %v389
  %1885 = vmatpush1.msra.mxu0 %v388
  %1886 = vmatprep.subr.mxu0 %v393
  %1887 = vmatpush1.msra.mxu0 %v392
  %1888 = vmatprep.subr.mxu0 %v397
  %1889 = vmatpush1.msra.mxu0 %v396
  %1890 = vmatprep.subr.mxu0 %v401
  %1891 = vmatpush1.msra.mxu0 %v400
  %1892 = vmatprep.subr.mxu0 %v405
  %1893 = vmatpush1.msra.mxu0 %v404
  %1894 = vmatprep.subr.mxu0 %v409
  %1895 = vmatpush1.msra.mxu0 %v408
  %1896 = vmatprep.subr.mxu0 %v413
  %1897 = vmatpush1.msra.mxu0 %v412
  %1898 = vmatprep.subr.mxu0 %v417
  %1899 = vmatpush1.msra.mxu0 %v416
  %1900 = vmatprep.subr.mxu0 %v421
  %1901 = vmatpush1.msra.mxu0 %v420
  %1902 = vmatprep.subr.mxu0 %v425
  %1903 = vmatpush1.msra.mxu0 %v424
  %1904 = vmatprep.subr.mxu0 %v429
  %1905 = vmatpush1.msra.mxu0 %v428
  %1906 = vmatprep.subr.mxu0 %v433
  %1907 = vmatpush1.msra.mxu0 %v432
  %1908 = vmatprep.subr.mxu0 0.0
  %1909 = vmatpush1.msra.mxu0 0.0
  %1910 = vmatprep.subr.mxu0 0.0
  %1911 = vmatpush1.msra.mxu0 0.0
  %1912 = vmatprep.subr.mxu0 0.0
  %1913 = vmatpush1.msra.mxu0 0.0
  %1914 = vmatprep.subr.mxu0 0.0
  %1915 = vmatpush1.msra.mxu0 0.0
  %1916 = vmatprep.subr.mxu0 0.0
  %1917 = vmatpush1.msra.mxu0 0.0
  %1918 = vmatprep.subr.mxu0 0.0
  %1919 = vmatpush1.msra.mxu0 0.0
  %1920 = vmatprep.subr.mxu0 0.0
  %1921 = vmatpush1.msra.mxu0 0.0
  %1922 = vmatprep.subr.mxu0 0.0
  %1923 = vmatpush1.msra.mxu0 0.0
  %1924 = vmatprep.subr.mxu0 0.0
  %1925 = vmatpush1.msra.mxu0 0.0
  %1926 = vmatprep.subr.mxu0 0.0
  %1927 = vmatpush1.msra.mxu0 0.0
  %1928 = vmatprep.subr.mxu0 0.0
  %1929 = vmatpush1.msra.mxu0 0.0
  %1930 = vmatprep.subr.mxu0 0.0
  %1931 = vmatpush1.msra.mxu0 0.0
  %1932 = vmatprep.subr.mxu0 0.0
  %1933 = vmatpush1.msra.mxu0 0.0
  %1934 = vmatprep.subr.mxu0 0.0
  %1935 = vmatpush1.msra.mxu0 0.0
  %1936 = vmatprep.subr.mxu0 0.0
  %1937 = vmatpush1.msra.mxu0 0.0
  %1938 = vmatprep.subr.mxu0 0.0
  %1939 = vmatpush1.msra.mxu0 0.0
  %1940 = vmatprep.mubr.f32.mxu0 0.0
  %1941 = vmatmul.mubr.f32.gmra.mrb[0].mxu0 %v1711
  %v1942 = vpop.f32.mrb[0].mxu0
  %v1943 = vadd.f32 0.0, %v1942
  %v1944 = vpop.f32.mrb[0].mxu0
  %v1945 = vadd.f32 0.0, %v1944
  %1946 = vdwg.mxu0
  %1947 = vmatprep.subr.mxu0 %v375
  %1948 = vmatpush1.msra.mxu0 %v374
  %1949 = vmatprep.subr.mxu0 %v379
  %1950 = vmatpush1.msra.mxu0 %v378
  %1951 = vmatprep.subr.mxu0 %v383
  %1952 = vmatpush1.msra.mxu0 %v382
  %1953 = vmatprep.subr.mxu0 %v387
  %1954 = vmatpush1.msra.mxu0 %v386
  %1955 = vmatprep.subr.mxu0 %v391
  %1956 = vmatpush1.msra.mxu0 %v390
  %1957 = vmatprep.subr.mxu0 %v395
  %1958 = vmatpush1.msra.mxu0 %v394
  %1959 = vmatprep.subr.mxu0 %v399
  %1960 = vmatpush1.msra.mxu0 %v398
  %1961 = vmatprep.subr.mxu0 %v403
  %1962 = vmatpush1.msra.mxu0 %v402
  %1963 = vmatprep.subr.mxu0 %v407
  %1964 = vmatpush1.msra.mxu0 %v406
  %1965 = vmatprep.subr.mxu0 %v411
  %1966 = vmatpush1.msra.mxu0 %v410
  %1967 = vmatprep.subr.mxu0 %v415
  %1968 = vmatpush1.msra.mxu0 %v414
  %1969 = vmatprep.subr.mxu0 %v419
  %1970 = vmatpush1.msra.mxu0 %v418
  %1971 = vmatprep.subr.mxu0 %v423
  %1972 = vmatpush1.msra.mxu0 %v422
  %1973 = vmatprep.subr.mxu0 %v427
  %1974 = vmatpush1.msra.mxu0 %v426
  %1975 = vmatprep.subr.mxu0 %v431
  %1976 = vmatpush1.msra.mxu0 %v430
  %1977 = vmatprep.subr.mxu0 %v435
  %1978 = vmatpush1.msra.mxu0 %v434
  %1979 = vmatprep.subr.mxu0 0.0
  %1980 = vmatpush1.msra.mxu0 0.0
  %1981 = vmatprep.subr.mxu0 0.0
  %1982 = vmatpush1.msra.mxu0 0.0
  %1983 = vmatprep.subr.mxu0 0.0
  %1984 = vmatpush1.msra.mxu0 0.0
  %1985 = vmatprep.subr.mxu0 0.0
  %1986 = vmatpush1.msra.mxu0 0.0
  %1987 = vmatprep.subr.mxu0 0.0
  %1988 = vmatpush1.msra.mxu0 0.0
  %1989 = vmatprep.subr.mxu0 0.0
  %1990 = vmatpush1.msra.mxu0 0.0
  %1991 = vmatprep.subr.mxu0 0.0
  %1992 = vmatpush1.msra.mxu0 0.0
  %1993 = vmatprep.subr.mxu0 0.0
  %1994 = vmatpush1.msra.mxu0 0.0
  %1995 = vmatprep.subr.mxu0 0.0
  %1996 = vmatpush1.msra.mxu0 0.0
  %1997 = vmatprep.subr.mxu0 0.0
  %1998 = vmatpush1.msra.mxu0 0.0
  %1999 = vmatprep.subr.mxu0 0.0
  %2000 = vmatpush1.msra.mxu0 0.0
  %2001 = vmatprep.subr.mxu0 0.0
  %2002 = vmatpush1.msra.mxu0 0.0
  %2003 = vmatprep.subr.mxu0 0.0
  %2004 = vmatpush1.msra.mxu0 0.0
  %2005 = vmatprep.subr.mxu0 0.0
  %2006 = vmatpush1.msra.mxu0 0.0
  %2007 = vmatprep.subr.mxu0 0.0
  %2008 = vmatpush1.msra.mxu0 0.0
  %2009 = vmatprep.subr.mxu0 0.0
  %2010 = vmatpush1.msra.mxu0 0.0
  %2011 = vmatprep.mubr.f32.mxu0 0.0
  %2012 = vmatmul.mubr.f32.gmra.mrb[0].mxu0 %v1711
  %v2013 = vpop.f32.mrb[0].mxu0
  %v2014 = vadd.f32 0.0, %v2013
  %v2015 = vpop.f32.mrb[0].mxu0
  %v2016 = vadd.f32 0.0, %v2015
  %2017 = vdwg.mxu0
  %v2018 = vadd.f32 %v1872, %v1943
  %v2019 = vadd.f32 %v1873, %v1945
  %v2020 = vadd.f32 %v1874, %v2014
  %v2021 = vadd.f32 %v1875, %v2016
  %v2022 = vmul.f32 %v2018, 0.5
  %v2023 = vtanh.pop %v2022
  %v2024 = vmul.f32 %v2023, 0.5
  %v2025 = vadd.f32 %v2024, 0.5
  %v2026 = vmul.f32 %v2019, 0.5
  %v2027 = vtanh.pop %v2026
  %v2028 = vmul.f32 %v2027, 0.5
  %v2029 = vadd.f32 %v2028, 0.5
  %v2030 = vtanh.pop %v2020
  %v2031 = vmul.f32 %v2021, 0.5
  %v2032 = vtanh.pop %v2031
  %v2033 = vmul.f32 %v2032, 0.5
  %v2034 = vadd.f32 %v2033, 0.5
  %v2035 = vmul.f32 %v2029, %v1709
  %v2036 = vmul.f32 %v2025, %v2030
  %v2037 = vadd.f32 %v2035, %v2036
  %v2038 = vtanh.pop %v2037
  %v2039 = vmul.f32 %v2034, %v2038
  %2040 = vmatprep.subr.mxu0 %v601
  %2041 = vmatpush1.msra.mxu0 %v600
  %2042 = vmatprep.subr.mxu0 %v605
  %2043 = vmatpush1.msra.mxu0 %v604
  %2044 = vmatprep.subr.mxu0 %v609
  %2045 = vmatpush1.msra.mxu0 %v608
  %2046 = vmatprep.subr.mxu0 %v613
  %2047 = vmatpush1.msra.mxu0 %v612
  %2048 = vmatprep.subr.mxu0 %v617
  %2049 = vmatpush1.msra.mxu0 %v616
  %2050 = vmatprep.subr.mxu0 %v621
  %2051 = vmatpush1.msra.mxu0 %v620
  %2052 = vmatprep.subr.mxu0 %v625
  %2053 = vmatpush1.msra.mxu0 %v624
  %2054 = vmatprep.subr.mxu0 %v629
  %2055 = vmatpush1.msra.mxu0 %v628
  %2056 = vmatprep.subr.mxu0 %v633
  %2057 = vmatpush1.msra.mxu0 %v632
  %2058 = vmatprep.subr.mxu0 %v637
  %2059 = vmatpush1.msra.mxu0 %v636
  %2060 = vmatprep.subr.mxu0 %v641
  %2061 = vmatpush1.msra.mxu0 %v640
  %2062 = vmatprep.subr.mxu0 %v645
  %2063 = vmatpush1.msra.mxu0 %v644
  %2064 = vmatprep.subr.mxu0 %v649
  %2065 = vmatpush1.msra.mxu0 %v648
  %2066 = vmatprep.subr.mxu0 %v653
  %2067 = vmatpush1.msra.mxu0 %v652
  %2068 = vmatprep.subr.mxu0 %v657
  %2069 = vmatpush1.msra.mxu0 %v656
  %2070 = vmatprep.subr.mxu0 %v661
  %2071 = vmatpush1.msra.mxu0 %v660
  %2072 = vmatprep.subr.mxu0 %v665
  %2073 = vmatpush1.msra.mxu0 %v664
  %2074 = vmatprep.subr.mxu0 %v669
  %2075 = vmatpush1.msra.mxu0 %v668
  %2076 = vmatprep.subr.mxu0 %v673
  %2077 = vmatpush1.msra.mxu0 %v672
  %2078 = vmatprep.subr.mxu0 %v677
  %2079 = vmatpush1.msra.mxu0 %v676
  %2080 = vmatprep.subr.mxu0 %v681
  %2081 = vmatpush1.msra.mxu0 %v680
  %2082 = vmatprep.subr.mxu0 %v685
  %2083 = vmatpush1.msra.mxu0 %v684
  %2084 = vmatprep.subr.mxu0 %v689
  %2085 = vmatpush1.msra.mxu0 %v688
  %2086 = vmatprep.subr.mxu0 %v693
  %2087 = vmatpush1.msra.mxu0 %v692
  %2088 = vmatprep.subr.mxu0 %v697
  %2089 = vmatpush1.msra.mxu0 %v696
  %2090 = vmatprep.subr.mxu0 %v701
  %2091 = vmatpush1.msra.mxu0 %v700
  %2092 = vmatprep.subr.mxu0 %v705
  %2093 = vmatpush1.msra.mxu0 %v704
  %2094 = vmatprep.subr.mxu0 %v709
  %2095 = vmatpush1.msra.mxu0 %v708
  %2096 = vmatprep.subr.mxu0 %v713
  %2097 = vmatpush1.msra.mxu0 %v712
  %2098 = vmatprep.subr.mxu0 %v717
  %2099 = vmatpush1.msra.mxu0 %v716
  %2100 = vmatprep.subr.mxu0 %v721
  %2101 = vmatpush1.msra.mxu0 %v720
  %2102 = vmatprep.subr.mxu0 %v725
  %2103 = vmatpush1.msra.mxu0 %v724
  %2104 = vmatprep.mubr.f32.mxu0 %v1871
  %2105 = vmatmul.mubr.f32.gmra.mrb[0].mxu0 %v2039
  %v2106 = vpop.f32.mrb[0].mxu0
  %v2107 = vadd.f32 %v351, %v2106
  %v2108 = vpop.f32.mrb[0].mxu0
  %v2109 = vadd.f32 %v355, %v2108
  %2110 = vdwg.mxu0
  %2111 = vmatprep.subr.mxu0 %v603
  %2112 = vmatpush1.msra.mxu0 %v602
  %2113 = vmatprep.subr.mxu0 %v607
  %2114 = vmatpush1.msra.mxu0 %v606
  %2115 = vmatprep.subr.mxu0 %v611
  %2116 = vmatpush1.msra.mxu0 %v610
  %2117 = vmatprep.subr.mxu0 %v615
  %2118 = vmatpush1.msra.mxu0 %v614
  %2119 = vmatprep.subr.mxu0 %v619
  %2120 = vmatpush1.msra.mxu0 %v618
  %2121 = vmatprep.subr.mxu0 %v623
  %2122 = vmatpush1.msra.mxu0 %v622
  %2123 = vmatprep.subr.mxu0 %v627
  %2124 = vmatpush1.msra.mxu0 %v626
  %2125 = vmatprep.subr.mxu0 %v631
  %2126 = vmatpush1.msra.mxu0 %v630
  %2127 = vmatprep.subr.mxu0 %v635
  %2128 = vmatpush1.msra.mxu0 %v634
  %2129 = vmatprep.subr.mxu0 %v639
  %2130 = vmatpush1.msra.mxu0 %v638
  %2131 = vmatprep.subr.mxu0 %v643
  %2132 = vmatpush1.msra.mxu0 %v642
  %2133 = vmatprep.subr.mxu0 %v647
  %2134 = vmatpush1.msra.mxu0 %v646
  %2135 = vmatprep.subr.mxu0 %v651
  %2136 = vmatpush1.msra.mxu0 %v650
  %2137 = vmatprep.subr.mxu0 %v655
  %2138 = vmatpush1.msra.mxu0 %v654
  %2139 = vmatprep.subr.mxu0 %v659
  %2140 = vmatpush1.msra.mxu0 %v658
  %2141 = vmatprep.subr.mxu0 %v663
  %2142 = vmatpush1.msra.mxu0 %v662
  %2143 = vmatprep.subr.mxu0 %v667
  %2144 = vmatpush1.msra.mxu0 %v666
  %2145 = vmatprep.subr.mxu0 %v671
  %2146 = vmatpush1.msra.mxu0 %v670
  %2147 = vmatprep.subr.mxu0 %v675
  %2148 = vmatpush1.msra.mxu0 %v674
  %2149 = vmatprep.subr.mxu0 %v679
  %2150 = vmatpush1.msra.mxu0 %v678
  %2151 = vmatprep.subr.mxu0 %v683
  %2152 = vmatpush1.msra.mxu0 %v682
  %2153 = vmatprep.subr.mxu0 %v687
  %2154 = vmatpush1.msra.mxu0 %v686
  %2155 = vmatprep.subr.mxu0 %v691
  %2156 = vmatpush1.msra.mxu0 %v690
  %2157 = vmatprep.subr.mxu0 %v695
  %2158 = vmatpush1.msra.mxu0 %v694
  %2159 = vmatprep.subr.mxu0 %v699
  %2160 = vmatpush1.msra.mxu0 %v698
  %2161 = vmatprep.subr.mxu0 %v703
  %2162 = vmatpush1.msra.mxu0 %v702
  %2163 = vmatprep.subr.mxu0 %v707
  %2164 = vmatpush1.msra.mxu0 %v706
  %2165 = vmatprep.subr.mxu0 %v711
  %2166 = vmatpush1.msra.mxu0 %v710
  %2167 = vmatprep.subr.mxu0 %v715
  %2168 = vmatpush1.msra.mxu0 %v714
  %2169 = vmatprep.subr.mxu0 %v719
  %2170 = vmatpush1.msra.mxu0 %v718
  %2171 = vmatprep.subr.mxu0 %v723
  %2172 = vmatpush1.msra.mxu0 %v722
  %2173 = vmatprep.subr.mxu0 %v727
  %2174 = vmatpush1.msra.mxu0 %v726
  %2175 = vmatprep.mubr.f32.mxu0 %v1871
  %2176 = vmatmul.mubr.f32.gmra.mrb[0].mxu0 %v2039
  %v2177 = vpop.f32.mrb[0].mxu0
  %v2178 = vadd.f32 %v359, %v2177
  %v2179 = vpop.f32.mrb[0].mxu0
  %v2180 = vadd.f32 %v363, %v2179
  %2181 = vdwg.mxu0
  %v2182 = vmul.f32 %v2107, 0.5
  %v2183 = vtanh.pop %v2182
  %v2184 = vmul.f32 %v2183, 0.5
  %v2185 = vadd.f32 %v2184, 0.5
  %v2186 = vmul.f32 %v2109, 0.5
  %v2187 = vtanh.pop %v2186
  %v2188 = vmul.f32 %v2187, 0.5
  %v2189 = vadd.f32 %v2188, 0.5
  %v2190 = vtanh.pop %v2178
  %v2191 = vmul.f32 %v2180, 0.5
  %v2192 = vtanh.pop %v2191
  %v2193 = vmul.f32 %v2192, 0.5
  %v2194 = vadd.f32 %v2193, 0.5
  %v2195 = vmul.f32 %v2189, %v1869
  %v2196 = vmul.f32 %v2185, %v2190
  %v2197 = vadd.f32 %v2195, %v2196
  %v2198 = vtanh.pop %v2197
  %v2199 = vmul.f32 %v2194, %v2198
  %v2200 = vld [vmem:[#allocation2 + $0xa0] sm:$0xff]
  %v2201 = vld [vmem:[#allocation2 + $0xa8] sm:$0xff]
  %v2202 = vld [vmem:[#allocation2 + $0xb0] sm:$0xff]
  %v2203 = vld [vmem:[#allocation2 + $0xb8] sm:$0xff]
  %2204 = vmatprep.subr.mxu0 %v373
  %2205 = vmatpush1.msra.mxu0 %v372
  %2206 = vmatprep.subr.mxu0 %v377
  %2207 = vmatpush1.msra.mxu0 %v376
  %2208 = vmatprep.subr.mxu0 %v381
  %2209 = vmatpush1.msra.mxu0 %v380
  %2210 = vmatprep.subr.mxu0 %v385
  %2211 = vmatpush1.msra.mxu0 %v384
  %2212 = vmatprep.subr.mxu0 %v389
  %2213 = vmatpush1.msra.mxu0 %v388
  %2214 = vmatprep.subr.mxu0 %v393
  %2215 = vmatpush1.msra.mxu0 %v392
  %2216 = vmatprep.subr.mxu0 %v397
  %2217 = vmatpush1.msra.mxu0 %v396
  %2218 = vmatprep.subr.mxu0 %v401
  %2219 = vmatpush1.msra.mxu0 %v400
  %2220 = vmatprep.subr.mxu0 %v405
  %2221 = vmatpush1.msra.mxu0 %v404
  %2222 = vmatprep.subr.mxu0 %v409
  %2223 = vmatpush1.msra.mxu0 %v408
  %2224 = vmatprep.subr.mxu0 %v413
  %2225 = vmatpush1.msra.mxu0 %v412
  %2226 = vmatprep.subr.mxu0 %v417
  %2227 = vmatpush1.msra.mxu0 %v416
  %2228 = vmatprep.subr.mxu0 %v421
  %2229 = vmatpush1.msra.mxu0 %v420
  %2230 = vmatprep.subr.mxu0 %v425
  %2231 = vmatpush1.msra.mxu0 %v424
  %2232 = vmatprep.subr.mxu0 %v429
  %2233 = vmatpush1.msra.mxu0 %v428
  %2234 = vmatprep.subr.mxu0 %v433
  %2235 = vmatpush1.msra.mxu0 %v432
  %2236 = vmatprep.subr.mxu0 0.0
  %2237 = vmatpush1.msra.mxu0 0.0
  %2238 = vmatprep.subr.mxu0 0.0
  %2239 = vmatpush1.msra.mxu0 0.0
  %2240 = vmatprep.subr.mxu0 0.0
  %2241 = vmatpush1.msra.mxu0 0.0
  %2242 = vmatprep.subr.mxu0 0.0
  %2243 = vmatpush1.msra.mxu0 0.0
  %2244 = vmatprep.subr.mxu0 0.0
  %2245 = vmatpush1.msra.mxu0 0.0
  %2246 = vmatprep.subr.mxu0 0.0
  %2247 = vmatpush1.msra.mxu0 0.0
  %2248 = vmatprep.subr.mxu0 0.0
  %2249 = vmatpush1.msra.mxu0 0.0
  %2250 = vmatprep.subr.mxu0 0.0
  %2251 = vmatpush1.msra.mxu0 0.0
  %2252 = vmatprep.subr.mxu0 0.0
  %2253 = vmatpush1.msra.mxu0 0.0
  %2254 = vmatprep.subr.mxu0 0.0
  %2255 = vmatpush1.msra.mxu0 0.0
  %2256 = vmatprep.subr.mxu0 0.0
  %2257 = vmatpush1.msra.mxu0 0.0
  %2258 = vmatprep.subr.mxu0 0.0
  %2259 = vmatpush1.msra.mxu0 0.0
  %2260 = vmatprep.subr.mxu0 0.0
  %2261 = vmatpush1.msra.mxu0 0.0
  %2262 = vmatprep.subr.mxu0 0.0
  %2263 = vmatpush1.msra.mxu0 0.0
  %2264 = vmatprep.subr.mxu0 0.0
  %2265 = vmatpush1.msra.mxu0 0.0
  %2266 = vmatprep.subr.mxu0 0.0
  %2267 = vmatpush1.msra.mxu0 0.0
  %2268 = vmatprep.mubr.f32.mxu0 0.0
  %2269 = vmatmul.mubr.f32.gmra.mrb[0].mxu0 %v2039
  %v2270 = vpop.f32.mrb[0].mxu0
  %v2271 = vadd.f32 0.0, %v2270
  %v2272 = vpop.f32.mrb[0].mxu0
  %v2273 = vadd.f32 0.0, %v2272
  %2274 = vdwg.mxu0
  %2275 = vmatprep.subr.mxu0 %v375
  %2276 = vmatpush1.msra.mxu0 %v374
  %2277 = vmatprep.subr.mxu0 %v379
  %2278 = vmatpush1.msra.mxu0 %v378
  %2279 = vmatprep.subr.mxu0 %v383
  %2280 = vmatpush1.msra.mxu0 %v382
  %2281 = vmatprep.subr.mxu0 %v387
  %2282 = vmatpush1.msra.mxu0 %v386
  %2283 = vmatprep.subr.mxu0 %v391
  %2284 = vmatpush1.msra.mxu0 %v390
  %2285 = vmatprep.subr.mxu0 %v395
  %2286 = vmatpush1.msra.mxu0 %v394
  %2287 = vmatprep.subr.mxu0 %v399
  %2288 = vmatpush1.msra.mxu0 %v398
  %2289 = vmatprep.subr.mxu0 %v403
  %2290 = vmatpush1.msra.mxu0 %v402
  %2291 = vmatprep.subr.mxu0 %v407
  %2292 = vmatpush1.msra.mxu0 %v406
  %2293 = vmatprep.subr.mxu0 %v411
  %2294 = vmatpush1.msra.mxu0 %v410
  %2295 = vmatprep.subr.mxu0 %v415
  %2296 = vmatpush1.msra.mxu0 %v414
  %2297 = vmatprep.subr.mxu0 %v419
  %2298 = vmatpush1.msra.mxu0 %v418
  %2299 = vmatprep.subr.mxu0 %v423
  %2300 = vmatpush1.msra.mxu0 %v422
  %2301 = vmatprep.subr.mxu0 %v427
  %2302 = vmatpush1.msra.mxu0 %v426
  %2303 = vmatprep.subr.mxu0 %v431
  %2304 = vmatpush1.msra.mxu0 %v430
  %2305 = vmatprep.subr.mxu0 %v435
  %2306 = vmatpush1.msra.mxu0 %v434
  %2307 = vmatprep.subr.mxu0 0.0
  %2308 = vmatpush1.msra.mxu0 0.0
  %2309 = vmatprep.subr.mxu0 0.0
  %2310 = vmatpush1.msra.mxu0 0.0
  %2311 = vmatprep.subr.mxu0 0.0
  %2312 = vmatpush1.msra.mxu0 0.0
  %2313 = vmatprep.subr.mxu0 0.0
  %2314 = vmatpush1.msra.mxu0 0.0
  %2315 = vmatprep.subr.mxu0 0.0
  %2316 = vmatpush1.msra.mxu0 0.0
  %2317 = vmatprep.subr.mxu0 0.0
  %2318 = vmatpush1.msra.mxu0 0.0
  %2319 = vmatprep.subr.mxu0 0.0
  %2320 = vmatpush1.msra.mxu0 0.0
  %2321 = vmatprep.subr.mxu0 0.0
  %2322 = vmatpush1.msra.mxu0 0.0
  %2323 = vmatprep.subr.mxu0 0.0
  %2324 = vmatpush1.msra.mxu0 0.0
  %2325 = vmatprep.subr.mxu0 0.0
  %2326 = vmatpush1.msra.mxu0 0.0
  %2327 = vmatprep.subr.mxu0 0.0
  %2328 = vmatpush1.msra.mxu0 0.0
  %2329 = vmatprep.subr.mxu0 0.0
  %2330 = vmatpush1.msra.mxu0 0.0
  %2331 = vmatprep.subr.mxu0 0.0
  %2332 = vmatpush1.msra.mxu0 0.0
  %2333 = vmatprep.subr.mxu0 0.0
  %2334 = vmatpush1.msra.mxu0 0.0
  %2335 = vmatprep.subr.mxu0 0.0
  %2336 = vmatpush1.msra.mxu0 0.0
  %2337 = vmatprep.subr.mxu0 0.0
  %2338 = vmatpush1.msra.mxu0 0.0
  %2339 = vmatprep.mubr.f32.mxu0 0.0
  %2340 = vmatmul.mubr.f32.gmra.mrb[0].mxu0 %v2039
  %v2341 = vpop.f32.mrb[0].mxu0
  %v2342 = vadd.f32 0.0, %v2341
  %v2343 = vpop.f32.mrb[0].mxu0
  %v2344 = vadd.f32 0.0, %v2343
  %2345 = vdwg.mxu0
  %v2346 = vadd.f32 %v2200, %v2271
  %v2347 = vadd.f32 %v2201, %v2273
  %v2348 = vadd.f32 %v2202, %v2342
  %v2349 = vadd.f32 %v2203, %v2344
  %v2350 = vmul.f32 %v2346, 0.5
  %v2351 = vtanh.pop %v2350
  %v2352 = vmul.f32 %v2351, 0.5
  %v2353 = vadd.f32 %v2352, 0.5
  %v2354 = vmul.f32 %v2347, 0.5
  %v2355 = vtanh.pop %v2354
  %v2356 = vmul.f32 %v2355, 0.5
  %v2357 = vadd.f32 %v2356, 0.5
  %v2358 = vtanh.pop %v2348
  %v2359 = vmul.f32 %v2349, 0.5
  %v2360 = vtanh.pop %v2359
  %v2361 = vmul.f32 %v2360, 0.5
  %v2362 = vadd.f32 %v2361, 0.5
  %v2363 = vmul.f32 %v2357, %v2037
  %v2364 = vmul.f32 %v2353, %v2358
  %v2365 = vadd.f32 %v2363, %v2364
  %v2366 = vtanh.pop %v2365
  %v2367 = vmul.f32 %v2362, %v2366
  %2368 = vmatprep.subr.mxu0 %v601
  %2369 = vmatpush1.msra.mxu0 %v600
  %2370 = vmatprep.subr.mxu0 %v605
  %2371 = vmatpush1.msra.mxu0 %v604
  %2372 = vmatprep.subr.mxu0 %v609
  %2373 = vmatpush1.msra.mxu0 %v608
  %2374 = vmatprep.subr.mxu0 %v613
  %2375 = vmatpush1.msra.mxu0 %v612
  %2376 = vmatprep.subr.mxu0 %v617
  %2377 = vmatpush1.msra.mxu0 %v616
  %2378 = vmatprep.subr.mxu0 %v621
  %2379 = vmatpush1.msra.mxu0 %v620
  %2380 = vmatprep.subr.mxu0 %v625
  %2381 = vmatpush1.msra.mxu0 %v624
  %2382 = vmatprep.subr.mxu0 %v629
  %2383 = vmatpush1.msra.mxu0 %v628
  %2384 = vmatprep.subr.mxu0 %v633
  %2385 = vmatpush1.msra.mxu0 %v632
  %2386 = vmatprep.subr.mxu0 %v637
  %2387 = vmatpush1.msra.mxu0 %v636
  %2388 = vmatprep.subr.mxu0 %v641
  %2389 = vmatpush1.msra.mxu0 %v640
  %2390 = vmatprep.subr.mxu0 %v645
  %2391 = vmatpush1.msra.mxu0 %v644
  %2392 = vmatprep.subr.mxu0 %v649
  %2393 = vmatpush1.msra.mxu0 %v648
  %2394 = vmatprep.subr.mxu0 %v653
  %2395 = vmatpush1.msra.mxu0 %v652
  %2396 = vmatprep.subr.mxu0 %v657
  %2397 = vmatpush1.msra.mxu0 %v656
  %2398 = vmatprep.subr.mxu0 %v661
  %2399 = vmatpush1.msra.mxu0 %v660
  %2400 = vmatprep.subr.mxu0 %v665
  %2401 = vmatpush1.msra.mxu0 %v664
  %2402 = vmatprep.subr.mxu0 %v669
  %2403 = vmatpush1.msra.mxu0 %v668
  %2404 = vmatprep.subr.mxu0 %v673
  %2405 = vmatpush1.msra.mxu0 %v672
  %2406 = vmatprep.subr.mxu0 %v677
  %2407 = vmatpush1.msra.mxu0 %v676
  %2408 = vmatprep.subr.mxu0 %v681
  %2409 = vmatpush1.msra.mxu0 %v680
  %2410 = vmatprep.subr.mxu0 %v685
  %2411 = vmatpush1.msra.mxu0 %v684
  %2412 = vmatprep.subr.mxu0 %v689
  %2413 = vmatpush1.msra.mxu0 %v688
  %2414 = vmatprep.subr.mxu0 %v693
  %2415 = vmatpush1.msra.mxu0 %v692
  %2416 = vmatprep.subr.mxu0 %v697
  %2417 = vmatpush1.msra.mxu0 %v696
  %2418 = vmatprep.subr.mxu0 %v701
  %2419 = vmatpush1.msra.mxu0 %v700
  %2420 = vmatprep.subr.mxu0 %v705
  %2421 = vmatpush1.msra.mxu0 %v704
  %2422 = vmatprep.subr.mxu0 %v709
  %2423 = vmatpush1.msra.mxu0 %v708
  %2424 = vmatprep.subr.mxu0 %v713
  %2425 = vmatpush1.msra.mxu0 %v712
  %2426 = vmatprep.subr.mxu0 %v717
  %2427 = vmatpush1.msra.mxu0 %v716
  %2428 = vmatprep.subr.mxu0 %v721
  %2429 = vmatpush1.msra.mxu0 %v720
  %2430 = vmatprep.subr.mxu0 %v725
  %2431 = vmatpush1.msra.mxu0 %v724
  %2432 = vmatprep.mubr.f32.mxu0 %v2199
  %2433 = vmatmul.mubr.f32.gmra.mrb[0].mxu0 %v2367
  %v2434 = vpop.f32.mrb[0].mxu0
  %v2435 = vadd.f32 %v351, %v2434
  %v2436 = vpop.f32.mrb[0].mxu0
  %v2437 = vadd.f32 %v355, %v2436
  %2438 = vdwg.mxu0
  %2439 = vmatprep.subr.mxu0 %v603
  %2440 = vmatpush1.msra.mxu0 %v602
  %2441 = vmatprep.subr.mxu0 %v607
  %2442 = vmatpush1.msra.mxu0 %v606
  %2443 = vmatprep.subr.mxu0 %v611
  %2444 = vmatpush1.msra.mxu0 %v610
  %2445 = vmatprep.subr.mxu0 %v615
  %2446 = vmatpush1.msra.mxu0 %v614
  %2447 = vmatprep.subr.mxu0 %v619
  %2448 = vmatpush1.msra.mxu0 %v618
  %2449 = vmatprep.subr.mxu0 %v623
  %2450 = vmatpush1.msra.mxu0 %v622
  %2451 = vmatprep.subr.mxu0 %v627
  %2452 = vmatpush1.msra.mxu0 %v626
  %2453 = vmatprep.subr.mxu0 %v631
  %2454 = vmatpush1.msra.mxu0 %v630
  %2455 = vmatprep.subr.mxu0 %v635
  %2456 = vmatpush1.msra.mxu0 %v634
  %2457 = vmatprep.subr.mxu0 %v639
  %2458 = vmatpush1.msra.mxu0 %v638
  %2459 = vmatprep.subr.mxu0 %v643
  %2460 = vmatpush1.msra.mxu0 %v642
  %2461 = vmatprep.subr.mxu0 %v647
  %2462 = vmatpush1.msra.mxu0 %v646
  %2463 = vmatprep.subr.mxu0 %v651
  %2464 = vmatpush1.msra.mxu0 %v650
  %2465 = vmatprep.subr.mxu0 %v655
  %2466 = vmatpush1.msra.mxu0 %v654
  %2467 = vmatprep.subr.mxu0 %v659
  %2468 = vmatpush1.msra.mxu0 %v658
  %2469 = vmatprep.subr.mxu0 %v663
  %2470 = vmatpush1.msra.mxu0 %v662
  %2471 = vmatprep.subr.mxu0 %v667
  %2472 = vmatpush1.msra.mxu0 %v666
  %2473 = vmatprep.subr.mxu0 %v671
  %2474 = vmatpush1.msra.mxu0 %v670
  %2475 = vmatprep.subr.mxu0 %v675
  %2476 = vmatpush1.msra.mxu0 %v674
  %2477 = vmatprep.subr.mxu0 %v679
  %2478 = vmatpush1.msra.mxu0 %v678
  %2479 = vmatprep.subr.mxu0 %v683
  %2480 = vmatpush1.msra.mxu0 %v682
  %2481 = vmatprep.subr.mxu0 %v687
  %2482 = vmatpush1.msra.mxu0 %v686
  %2483 = vmatprep.subr.mxu0 %v691
  %2484 = vmatpush1.msra.mxu0 %v690
  %2485 = vmatprep.subr.mxu0 %v695
  %2486 = vmatpush1.msra.mxu0 %v694
  %2487 = vmatprep.subr.mxu0 %v699
  %2488 = vmatpush1.msra.mxu0 %v698
  %2489 = vmatprep.subr.mxu0 %v703
  %2490 = vmatpush1.msra.mxu0 %v702
  %2491 = vmatprep.subr.mxu0 %v707
  %2492 = vmatpush1.msra.mxu0 %v706
  %2493 = vmatprep.subr.mxu0 %v711
  %2494 = vmatpush1.msra.mxu0 %v710
  %2495 = vmatprep.subr.mxu0 %v715
  %2496 = vmatpush1.msra.mxu0 %v714
  %2497 = vmatprep.subr.mxu0 %v719
  %2498 = vmatpush1.msra.mxu0 %v718
  %2499 = vmatprep.subr.mxu0 %v723
  %2500 = vmatpush1.msra.mxu0 %v722
  %2501 = vmatprep.subr.mxu0 %v727
  %2502 = vmatpush1.msra.mxu0 %v726
  %2503 = vmatprep.mubr.f32.mxu0 %v2199
  %2504 = vmatmul.mubr.f32.gmra.mrb[0].mxu0 %v2367
  %v2505 = vpop.f32.mrb[0].mxu0
  %v2506 = vadd.f32 %v359, %v2505
  %v2507 = vpop.f32.mrb[0].mxu0
  %v2508 = vadd.f32 %v363, %v2507
  %2509 = vdwg.mxu0
  %v2510 = vmul.f32 %v2435, 0.5
  %v2511 = vtanh.pop %v2510
  %v2512 = vmul.f32 %v2511, 0.5
  %v2513 = vadd.f32 %v2512, 0.5
  %v2514 = vmul.f32 %v2437, 0.5
  %v2515 = vtanh.pop %v2514
  %v2516 = vmul.f32 %v2515, 0.5
  %v2517 = vadd.f32 %v2516, 0.5
  %v2518 = vtanh.pop %v2506
  %v2519 = vmul.f32 %v2508, 0.5
  %v2520 = vtanh.pop %v2519
  %v2521 = vmul.f32 %v2520, 0.5
  %v2522 = vadd.f32 %v2521, 0.5
  %v2523 = vmul.f32 %v2517, %v2197
  %v2524 = vmul.f32 %v2513, %v2518
  %v2525 = vadd.f32 %v2523, %v2524
  %v2526 = vtanh.pop %v2525
  %v2527 = vmul.f32 %v2522, %v2526
  %v2528 = vld [vmem:[#allocation2 + $0xc0] sm:$0xff]
  %v2529 = vld [vmem:[#allocation2 + $0xc8] sm:$0xff]
  %v2530 = vld [vmem:[#allocation2 + $0xd0] sm:$0xff]
  %v2531 = vld [vmem:[#allocation2 + $0xd8] sm:$0xff]
  %2532 = vmatprep.subr.mxu0 %v373
  %2533 = vmatpush1.msra.mxu0 %v372
  %2534 = vmatprep.subr.mxu0 %v377
  %2535 = vmatpush1.msra.mxu0 %v376
  %2536 = vmatprep.subr.mxu0 %v381
  %2537 = vmatpush1.msra.mxu0 %v380
  %2538 = vmatprep.subr.mxu0 %v385
  %2539 = vmatpush1.msra.mxu0 %v384
  %2540 = vmatprep.subr.mxu0 %v389
  %2541 = vmatpush1.msra.mxu0 %v388
  %2542 = vmatprep.subr.mxu0 %v393
  %2543 = vmatpush1.msra.mxu0 %v392
  %2544 = vmatprep.subr.mxu0 %v397
  %2545 = vmatpush1.msra.mxu0 %v396
  %2546 = vmatprep.subr.mxu0 %v401
  %2547 = vmatpush1.msra.mxu0 %v400
  %2548 = vmatprep.subr.mxu0 %v405
  %2549 = vmatpush1.msra.mxu0 %v404
  %2550 = vmatprep.subr.mxu0 %v409
  %2551 = vmatpush1.msra.mxu0 %v408
  %2552 = vmatprep.subr.mxu0 %v413
  %2553 = vmatpush1.msra.mxu0 %v412
  %2554 = vmatprep.subr.mxu0 %v417
  %2555 = vmatpush1.msra.mxu0 %v416
  %2556 = vmatprep.subr.mxu0 %v421
  %2557 = vmatpush1.msra.mxu0 %v420
  %2558 = vmatprep.subr.mxu0 %v425
  %2559 = vmatpush1.msra.mxu0 %v424
  %2560 = vmatprep.subr.mxu0 %v429
  %2561 = vmatpush1.msra.mxu0 %v428
  %2562 = vmatprep.subr.mxu0 %v433
  %2563 = vmatpush1.msra.mxu0 %v432
  %2564 = vmatprep.subr.mxu0 0.0
  %2565 = vmatpush1.msra.mxu0 0.0
  %2566 = vmatprep.subr.mxu0 0.0
  %2567 = vmatpush1.msra.mxu0 0.0
  %2568 = vmatprep.subr.mxu0 0.0
  %2569 = vmatpush1.msra.mxu0 0.0
  %2570 = vmatprep.subr.mxu0 0.0
  %2571 = vmatpush1.msra.mxu0 0.0
  %2572 = vmatprep.subr.mxu0 0.0
  %2573 = vmatpush1.msra.mxu0 0.0
  %2574 = vmatprep.subr.mxu0 0.0
  %2575 = vmatpush1.msra.mxu0 0.0
  %2576 = vmatprep.subr.mxu0 0.0
  %2577 = vmatpush1.msra.mxu0 0.0
  %2578 = vmatprep.subr.mxu0 0.0
  %2579 = vmatpush1.msra.mxu0 0.0
  %2580 = vmatprep.subr.mxu0 0.0
  %2581 = vmatpush1.msra.mxu0 0.0
  %2582 = vmatprep.subr.mxu0 0.0
  %2583 = vmatpush1.msra.mxu0 0.0
  %2584 = vmatprep.subr.mxu0 0.0
  %2585 = vmatpush1.msra.mxu0 0.0
  %2586 = vmatprep.subr.mxu0 0.0
  %2587 = vmatpush1.msra.mxu0 0.0
  %2588 = vmatprep.subr.mxu0 0.0
  %2589 = vmatpush1.msra.mxu0 0.0
  %2590 = vmatprep.subr.mxu0 0.0
  %2591 = vmatpush1.msra.mxu0 0.0
  %2592 = vmatprep.subr.mxu0 0.0
  %2593 = vmatpush1.msra.mxu0 0.0
  %2594 = vmatprep.subr.mxu0 0.0
  %2595 = vmatpush1.msra.mxu0 0.0
  %2596 = vmatprep.mubr.f32.mxu0 0.0
  %2597 = vmatmul.mubr.f32.gmra.mrb[0].mxu0 %v2367
  %v2598 = vpop.f32.mrb[0].mxu0
  %v2599 = vadd.f32 0.0, %v2598
  %v2600 = vpop.f32.mrb[0].mxu0
  %v2601 = vadd.f32 0.0, %v2600
  %2602 = vdwg.mxu0
  %2603 = vmatprep.subr.mxu0 %v375
  %2604 = vmatpush1.msra.mxu0 %v374
  %2605 = vmatprep.subr.mxu0 %v379
  %2606 = vmatpush1.msra.mxu0 %v378
  %2607 = vmatprep.subr.mxu0 %v383
  %2608 = vmatpush1.msra.mxu0 %v382
  %2609 = vmatprep.subr.mxu0 %v387
  %2610 = vmatpush1.msra.mxu0 %v386
  %2611 = vmatprep.subr.mxu0 %v391
  %2612 = vmatpush1.msra.mxu0 %v390
  %2613 = vmatprep.subr.mxu0 %v395
  %2614 = vmatpush1.msra.mxu0 %v394
  %2615 = vmatprep.subr.mxu0 %v399
  %2616 = vmatpush1.msra.mxu0 %v398
  %2617 = vmatprep.subr.mxu0 %v403
  %2618 = vmatpush1.msra.mxu0 %v402
  %2619 = vmatprep.subr.mxu0 %v407
  %2620 = vmatpush1.msra.mxu0 %v406
  %2621 = vmatprep.subr.mxu0 %v411
  %2622 = vmatpush1.msra.mxu0 %v410
  %2623 = vmatprep.subr.mxu0 %v415
  %2624 = vmatpush1.msra.mxu0 %v414
  %2625 = vmatprep.subr.mxu0 %v419
  %2626 = vmatpush1.msra.mxu0 %v418
  %2627 = vmatprep.subr.mxu0 %v423
  %2628 = vmatpush1.msra.mxu0 %v422
  %2629 = vmatprep.subr.mxu0 %v427
  %2630 = vmatpush1.msra.mxu0 %v426
  %2631 = vmatprep.subr.mxu0 %v431
  %2632 = vmatpush1.msra.mxu0 %v430
  %2633 = vmatprep.subr.mxu0 %v435
  %2634 = vmatpush1.msra.mxu0 %v434
  %2635 = vmatprep.subr.mxu0 0.0
  %2636 = vmatpush1.msra.mxu0 0.0
  %2637 = vmatprep.subr.mxu0 0.0
  %2638 = vmatpush1.msra.mxu0 0.0
  %2639 = vmatprep.subr.mxu0 0.0
  %2640 = vmatpush1.msra.mxu0 0.0
  %2641 = vmatprep.subr.mxu0 0.0
  %2642 = vmatpush1.msra.mxu0 0.0
  %2643 = vmatprep.subr.mxu0 0.0
  %2644 = vmatpush1.msra.mxu0 0.0
  %2645 = vmatprep.subr.mxu0 0.0
  %2646 = vmatpush1.msra.mxu0 0.0
  %2647 = vmatprep.subr.mxu0 0.0
  %2648 = vmatpush1.msra.mxu0 0.0
  %2649 = vmatprep.subr.mxu0 0.0
  %2650 = vmatpush1.msra.mxu0 0.0
  %2651 = vmatprep.subr.mxu0 0.0
  %2652 = vmatpush1.msra.mxu0 0.0
  %2653 = vmatprep.subr.mxu0 0.0
  %2654 = vmatpush1.msra.mxu0 0.0
  %2655 = vmatprep.subr.mxu0 0.0
  %2656 = vmatpush1.msra.mxu0 0.0
  %2657 = vmatprep.subr.mxu0 0.0
  %2658 = vmatpush1.msra.mxu0 0.0
  %2659 = vmatprep.subr.mxu0 0.0
  %2660 = vmatpush1.msra.mxu0 0.0
  %2661 = vmatprep.subr.mxu0 0.0
  %2662 = vmatpush1.msra.mxu0 0.0
  %2663 = vmatprep.subr.mxu0 0.0
  %2664 = vmatpush1.msra.mxu0 0.0
  %2665 = vmatprep.subr.mxu0 0.0
  %2666 = vmatpush1.msra.mxu0 0.0
  %2667 = vmatprep.mubr.f32.mxu0 0.0
  %2668 = vmatmul.mubr.f32.gmra.mrb[0].mxu0 %v2367
  %v2669 = vpop.f32.mrb[0].mxu0
  %v2670 = vadd.f32 0.0, %v2669
  %v2671 = vpop.f32.mrb[0].mxu0
  %v2672 = vadd.f32 0.0, %v2671
  %2673 = vdwg.mxu0
  %v2674 = vadd.f32 %v2528, %v2599
  %v2675 = vadd.f32 %v2529, %v2601
  %v2676 = vadd.f32 %v2530, %v2670
  %v2677 = vadd.f32 %v2531, %v2672
  %v2678 = vmul.f32 %v2674, 0.5
  %v2679 = vtanh.pop %v2678
  %v2680 = vmul.f32 %v2679, 0.5
  %v2681 = vadd.f32 %v2680, 0.5
  %v2682 = vmul.f32 %v2675, 0.5
  %v2683 = vtanh.pop %v2682
  %v2684 = vmul.f32 %v2683, 0.5
  %v2685 = vadd.f32 %v2684, 0.5
  %v2686 = vtanh.pop %v2676
  %v2687 = vmul.f32 %v2677, 0.5
  %v2688 = vtanh.pop %v2687
  %v2689 = vmul.f32 %v2688, 0.5
  %v2690 = vadd.f32 %v2689, 0.5
  %v2691 = vmul.f32 %v2685, %v2365
  %v2692 = vmul.f32 %v2681, %v2686
  %v2693 = vadd.f32 %v2691, %v2692
  %v2694 = vtanh.pop %v2693
  %v2695 = vmul.f32 %v2690, %v2694
  %2696 = vmatprep.subr.mxu0 %v601
  %2697 = vmatpush1.msra.mxu0 %v600
  %2698 = vmatprep.subr.mxu0 %v605
  %2699 = vmatpush1.msra.mxu0 %v604
  %2700 = vmatprep.subr.mxu0 %v609
  %2701 = vmatpush1.msra.mxu0 %v608
  %2702 = vmatprep.subr.mxu0 %v613
  %2703 = vmatpush1.msra.mxu0 %v612
  %2704 = vmatprep.subr.mxu0 %v617
  %2705 = vmatpush1.msra.mxu0 %v616
  %2706 = vmatprep.subr.mxu0 %v621
  %2707 = vmatpush1.msra.mxu0 %v620
  %2708 = vmatprep.subr.mxu0 %v625
  %2709 = vmatpush1.msra.mxu0 %v624
  %2710 = vmatprep.subr.mxu0 %v629
  %2711 = vmatpush1.msra.mxu0 %v628
  %2712 = vmatprep.subr.mxu0 %v633
  %2713 = vmatpush1.msra.mxu0 %v632
  %2714 = vmatprep.subr.mxu0 %v637
  %2715 = vmatpush1.msra.mxu0 %v636
  %2716 = vmatprep.subr.mxu0 %v641
  %2717 = vmatpush1.msra.mxu0 %v640
  %2718 = vmatprep.subr.mxu0 %v645
  %2719 = vmatpush1.msra.mxu0 %v644
  %2720 = vmatprep.subr.mxu0 %v649
  %2721 = vmatpush1.msra.mxu0 %v648
  %2722 = vmatprep.subr.mxu0 %v653
  %2723 = vmatpush1.msra.mxu0 %v652
  %2724 = vmatprep.subr.mxu0 %v657
  %2725 = vmatpush1.msra.mxu0 %v656
  %2726 = vmatprep.subr.mxu0 %v661
  %2727 = vmatpush1.msra.mxu0 %v660
  %2728 = vmatprep.subr.mxu0 %v665
  %2729 = vmatpush1.msra.mxu0 %v664
  %2730 = vmatprep.subr.mxu0 %v669
  %2731 = vmatpush1.msra.mxu0 %v668
  %2732 = vmatprep.subr.mxu0 %v673
  %2733 = vmatpush1.msra.mxu0 %v672
  %2734 = vmatprep.subr.mxu0 %v677
  %2735 = vmatpush1.msra.mxu0 %v676
  %2736 = vmatprep.subr.mxu0 %v681
  %2737 = vmatpush1.msra.mxu0 %v680
  %2738 = vmatprep.subr.mxu0 %v685
  %2739 = vmatpush1.msra.mxu0 %v684
  %2740 = vmatprep.subr.mxu0 %v689
  %2741 = vmatpush1.msra.mxu0 %v688
  %2742 = vmatprep.subr.mxu0 %v693
  %2743 = vmatpush1.msra.mxu0 %v692
  %2744 = vmatprep.subr.mxu0 %v697
  %2745 = vmatpush1.msra.mxu0 %v696
  %2746 = vmatprep.subr.mxu0 %v701
  %2747 = vmatpush1.msra.mxu0 %v700
  %2748 = vmatprep.subr.mxu0 %v705
  %2749 = vmatpush1.msra.mxu0 %v704
  %2750 = vmatprep.subr.mxu0 %v709
  %2751 = vmatpush1.msra.mxu0 %v708
  %2752 = vmatprep.subr.mxu0 %v713
  %2753 = vmatpush1.msra.mxu0 %v712
  %2754 = vmatprep.subr.mxu0 %v717
  %2755 = vmatpush1.msra.mxu0 %v716
  %2756 = vmatprep.subr.mxu0 %v721
  %2757 = vmatpush1.msra.mxu0 %v720
  %2758 = vmatprep.subr.mxu0 %v725
  %2759 = vmatpush1.msra.mxu0 %v724
  %2760 = vmatprep.mubr.f32.mxu0 %v2527
  %2761 = vmatmul.mubr.f32.gmra.mrb[0].mxu0 %v2695
  %v2762 = vpop.f32.mrb[0].mxu0
  %v2763 = vadd.f32 %v351, %v2762
  %v2764 = vpop.f32.mrb[0].mxu0
  %v2765 = vadd.f32 %v355, %v2764
  %2766 = vdwg.mxu0
  %2767 = vmatprep.subr.mxu0 %v603
  %2768 = vmatpush1.msra.mxu0 %v602
  %2769 = vmatprep.subr.mxu0 %v607
  %2770 = vmatpush1.msra.mxu0 %v606
  %2771 = vmatprep.subr.mxu0 %v611
  %2772 = vmatpush1.msra.mxu0 %v610
  %2773 = vmatprep.subr.mxu0 %v615
  %2774 = vmatpush1.msra.mxu0 %v614
  %2775 = vmatprep.subr.mxu0 %v619
  %2776 = vmatpush1.msra.mxu0 %v618
  %2777 = vmatprep.subr.mxu0 %v623
  %2778 = vmatpush1.msra.mxu0 %v622
  %2779 = vmatprep.subr.mxu0 %v627
  %2780 = vmatpush1.msra.mxu0 %v626
  %2781 = vmatprep.subr.mxu0 %v631
  %2782 = vmatpush1.msra.mxu0 %v630
  %2783 = vmatprep.subr.mxu0 %v635
  %2784 = vmatpush1.msra.mxu0 %v634
  %2785 = vmatprep.subr.mxu0 %v639
  %2786 = vmatpush1.msra.mxu0 %v638
  %2787 = vmatprep.subr.mxu0 %v643
  %2788 = vmatpush1.msra.mxu0 %v642
  %2789 = vmatprep.subr.mxu0 %v647
  %2790 = vmatpush1.msra.mxu0 %v646
  %2791 = vmatprep.subr.mxu0 %v651
  %2792 = vmatpush1.msra.mxu0 %v650
  %2793 = vmatprep.subr.mxu0 %v655
  %2794 = vmatpush1.msra.mxu0 %v654
  %2795 = vmatprep.subr.mxu0 %v659
  %2796 = vmatpush1.msra.mxu0 %v658
  %2797 = vmatprep.subr.mxu0 %v663
  %2798 = vmatpush1.msra.mxu0 %v662
  %2799 = vmatprep.subr.mxu0 %v667
  %2800 = vmatpush1.msra.mxu0 %v666
  %2801 = vmatprep.subr.mxu0 %v671
  %2802 = vmatpush1.msra.mxu0 %v670
  %2803 = vmatprep.subr.mxu0 %v675
  %2804 = vmatpush1.msra.mxu0 %v674
  %2805 = vmatprep.subr.mxu0 %v679
  %2806 = vmatpush1.msra.mxu0 %v678
  %2807 = vmatprep.subr.mxu0 %v683
  %2808 = vmatpush1.msra.mxu0 %v682
  %2809 = vmatprep.subr.mxu0 %v687
  %2810 = vmatpush1.msra.mxu0 %v686
  %2811 = vmatprep.subr.mxu0 %v691
  %2812 = vmatpush1.msra.mxu0 %v690
  %2813 = vmatprep.subr.mxu0 %v695
  %2814 = vmatpush1.msra.mxu0 %v694
  %2815 = vmatprep.subr.mxu0 %v699
  %2816 = vmatpush1.msra.mxu0 %v698
  %2817 = vmatprep.subr.mxu0 %v703
  %2818 = vmatpush1.msra.mxu0 %v702
  %2819 = vmatprep.subr.mxu0 %v707
  %2820 = vmatpush1.msra.mxu0 %v706
  %2821 = vmatprep.subr.mxu0 %v711
  %2822 = vmatpush1.msra.mxu0 %v710
  %2823 = vmatprep.subr.mxu0 %v715
  %2824 = vmatpush1.msra.mxu0 %v714
  %2825 = vmatprep.subr.mxu0 %v719
  %2826 = vmatpush1.msra.mxu0 %v718
  %2827 = vmatprep.subr.mxu0 %v723
  %2828 = vmatpush1.msra.mxu0 %v722
  %2829 = vmatprep.subr.mxu0 %v727
  %2830 = vmatpush1.msra.mxu0 %v726
  %2831 = vmatprep.mubr.f32.mxu0 %v2527
  %2832 = vmatmul.mubr.f32.gmra.mrb[0].mxu0 %v2695
  %v2833 = vpop.f32.mrb[0].mxu0
  %v2834 = vadd.f32 %v359, %v2833
  %v2835 = vpop.f32.mrb[0].mxu0
  %v2836 = vadd.f32 %v363, %v2835
  %2837 = vdwg.mxu0
  %v2838 = vmul.f32 %v2763, 0.5
  %v2839 = vtanh.pop %v2838
  %v2840 = vmul.f32 %v2839, 0.5
  %v2841 = vadd.f32 %v2840, 0.5
  %v2842 = vmul.f32 %v2765, 0.5
  %v2843 = vtanh.pop %v2842
  %v2844 = vmul.f32 %v2843, 0.5
  %v2845 = vadd.f32 %v2844, 0.5
  %v2846 = vtanh.pop %v2834
  %v2847 = vmul.f32 %v2836, 0.5
  %v2848 = vtanh.pop %v2847
  %v2849 = vmul.f32 %v2848, 0.5
  %v2850 = vadd.f32 %v2849, 0.5
  %v2851 = vmul.f32 %v2845, %v2525
  %v2852 = vmul.f32 %v2841, %v2846
  %v2853 = vadd.f32 %v2851, %v2852
  %v2854 = vtanh.pop %v2853
  %v2855 = vmul.f32 %v2850, %v2854
  %v2856 = vld [vmem:[#allocation2 + $0xe0] sm:$0xff]
  %v2857 = vld [vmem:[#allocation2 + $0xe8] sm:$0xff]
  %v2858 = vld [vmem:[#allocation2 + $0xf0] sm:$0xff]
  %v2859 = vld [vmem:[#allocation2 + $0xf8] sm:$0xff]
  %2860 = vmatprep.subr.mxu0 %v373
  %2861 = vmatpush1.msra.mxu0 %v372
  %2862 = vmatprep.subr.mxu0 %v377
  %2863 = vmatpush1.msra.mxu0 %v376
  %2864 = vmatprep.subr.mxu0 %v381
  %2865 = vmatpush1.msra.mxu0 %v380
  %2866 = vmatprep.subr.mxu0 %v385
  %2867 = vmatpush1.msra.mxu0 %v384
  %2868 = vmatprep.subr.mxu0 %v389
  %2869 = vmatpush1.msra.mxu0 %v388
  %2870 = vmatprep.subr.mxu0 %v393
  %2871 = vmatpush1.msra.mxu0 %v392
  %2872 = vmatprep.subr.mxu0 %v397
  %2873 = vmatpush1.msra.mxu0 %v396
  %2874 = vmatprep.subr.mxu0 %v401
  %2875 = vmatpush1.msra.mxu0 %v400
  %2876 = vmatprep.subr.mxu0 %v405
  %2877 = vmatpush1.msra.mxu0 %v404
  %2878 = vmatprep.subr.mxu0 %v409
  %2879 = vmatpush1.msra.mxu0 %v408
  %2880 = vmatprep.subr.mxu0 %v413
  %2881 = vmatpush1.msra.mxu0 %v412
  %2882 = vmatprep.subr.mxu0 %v417
  %2883 = vmatpush1.msra.mxu0 %v416
  %2884 = vmatprep.subr.mxu0 %v421
  %2885 = vmatpush1.msra.mxu0 %v420
  %2886 = vmatprep.subr.mxu0 %v425
  %2887 = vmatpush1.msra.mxu0 %v424
  %2888 = vmatprep.subr.mxu0 %v429
  %2889 = vmatpush1.msra.mxu0 %v428
  %2890 = vmatprep.subr.mxu0 %v433
  %2891 = vmatpush1.msra.mxu0 %v432
  %2892 = vmatprep.subr.mxu0 0.0
  %2893 = vmatpush1.msra.mxu0 0.0
  %2894 = vmatprep.subr.mxu0 0.0
  %2895 = vmatpush1.msra.mxu0 0.0
  %2896 = vmatprep.subr.mxu0 0.0
  %2897 = vmatpush1.msra.mxu0 0.0
  %2898 = vmatprep.subr.mxu0 0.0
  %2899 = vmatpush1.msra.mxu0 0.0
  %2900 = vmatprep.subr.mxu0 0.0
  %2901 = vmatpush1.msra.mxu0 0.0
  %2902 = vmatprep.subr.mxu0 0.0
  %2903 = vmatpush1.msra.mxu0 0.0
  %2904 = vmatprep.subr.mxu0 0.0
  %2905 = vmatpush1.msra.mxu0 0.0
  %2906 = vmatprep.subr.mxu0 0.0
  %2907 = vmatpush1.msra.mxu0 0.0
  %2908 = vmatprep.subr.mxu0 0.0
  %2909 = vmatpush1.msra.mxu0 0.0
  %2910 = vmatprep.subr.mxu0 0.0
  %2911 = vmatpush1.msra.mxu0 0.0
  %2912 = vmatprep.subr.mxu0 0.0
  %2913 = vmatpush1.msra.mxu0 0.0
  %2914 = vmatprep.subr.mxu0 0.0
  %2915 = vmatpush1.msra.mxu0 0.0
  %2916 = vmatprep.subr.mxu0 0.0
  %2917 = vmatpush1.msra.mxu0 0.0
  %2918 = vmatprep.subr.mxu0 0.0
  %2919 = vmatpush1.msra.mxu0 0.0
  %2920 = vmatprep.subr.mxu0 0.0
  %2921 = vmatpush1.msra.mxu0 0.0
  %2922 = vmatprep.subr.mxu0 0.0
  %2923 = vmatpush1.msra.mxu0 0.0
  %2924 = vmatprep.mubr.f32.mxu0 0.0
  %2925 = vmatmul.mubr.f32.gmra.mrb[0].mxu0 %v2695
  %v2926 = vpop.f32.mrb[0].mxu0
  %v2927 = vadd.f32 0.0, %v2926
  %v2928 = vpop.f32.mrb[0].mxu0
  %v2929 = vadd.f32 0.0, %v2928
  %2930 = vdwg.mxu0
  %2931 = vmatprep.subr.mxu0 %v375
  %2932 = vmatpush1.msra.mxu0 %v374
  %2933 = vmatprep.subr.mxu0 %v379
  %2934 = vmatpush1.msra.mxu0 %v378
  %2935 = vmatprep.subr.mxu0 %v383
  %2936 = vmatpush1.msra.mxu0 %v382
  %2937 = vmatprep.subr.mxu0 %v387
  %2938 = vmatpush1.msra.mxu0 %v386
  %2939 = vmatprep.subr.mxu0 %v391
  %2940 = vmatpush1.msra.mxu0 %v390
  %2941 = vmatprep.subr.mxu0 %v395
  %2942 = vmatpush1.msra.mxu0 %v394
  %2943 = vmatprep.subr.mxu0 %v399
  %2944 = vmatpush1.msra.mxu0 %v398
  %2945 = vmatprep.subr.mxu0 %v403
  %2946 = vmatpush1.msra.mxu0 %v402
  %2947 = vmatprep.subr.mxu0 %v407
  %2948 = vmatpush1.msra.mxu0 %v406
  %2949 = vmatprep.subr.mxu0 %v411
  %2950 = vmatpush1.msra.mxu0 %v410
  %2951 = vmatprep.subr.mxu0 %v415
  %2952 = vmatpush1.msra.mxu0 %v414
  %2953 = vmatprep.subr.mxu0 %v419
  %2954 = vmatpush1.msra.mxu0 %v418
  %2955 = vmatprep.subr.mxu0 %v423
  %2956 = vmatpush1.msra.mxu0 %v422
  %2957 = vmatprep.subr.mxu0 %v427
  %2958 = vmatpush1.msra.mxu0 %v426
  %2959 = vmatprep.subr.mxu0 %v431
  %2960 = vmatpush1.msra.mxu0 %v430
  %2961 = vmatprep.subr.mxu0 %v435
  %2962 = vmatpush1.msra.mxu0 %v434
  %2963 = vmatprep.subr.mxu0 0.0
  %2964 = vmatpush1.msra.mxu0 0.0
  %2965 = vmatprep.subr.mxu0 0.0
  %2966 = vmatpush1.msra.mxu0 0.0
  %2967 = vmatprep.subr.mxu0 0.0
  %2968 = vmatpush1.msra.mxu0 0.0
  %2969 = vmatprep.subr.mxu0 0.0
  %2970 = vmatpush1.msra.mxu0 0.0
  %2971 = vmatprep.subr.mxu0 0.0
  %2972 = vmatpush1.msra.mxu0 0.0
  %2973 = vmatprep.subr.mxu0 0.0
  %2974 = vmatpush1.msra.mxu0 0.0
  %2975 = vmatprep.subr.mxu0 0.0
  %2976 = vmatpush1.msra.mxu0 0.0
  %2977 = vmatprep.subr.mxu0 0.0
  %2978 = vmatpush1.msra.mxu0 0.0
  %2979 = vmatprep.subr.mxu0 0.0
  %2980 = vmatpush1.msra.mxu0 0.0
  %2981 = vmatprep.subr.mxu0 0.0
  %2982 = vmatpush1.msra.mxu0 0.0
  %2983 = vmatprep.subr.mxu0 0.0
  %2984 = vmatpush1.msra.mxu0 0.0
  %2985 = vmatprep.subr.mxu0 0.0
  %2986 = vmatpush1.msra.mxu0 0.0
  %2987 = vmatprep.subr.mxu0 0.0
  %2988 = vmatpush1.msra.mxu0 0.0
  %2989 = vmatprep.subr.mxu0 0.0
  %2990 = vmatpush1.msra.mxu0 0.0
  %2991 = vmatprep.subr.mxu0 0.0
  %2992 = vmatpush1.msra.mxu0 0.0
  %2993 = vmatprep.subr.mxu0 0.0
  %2994 = vmatpush1.msra.mxu0 0.0
  %2995 = vmatprep.mubr.f32.mxu0 0.0
  %2996 = vmatmul.mubr.f32.gmra.mrb[0].mxu0 %v2695
  %v2997 = vpop.f32.mrb[0].mxu0
  %v2998 = vadd.f32 0.0, %v2997
  %v2999 = vpop.f32.mrb[0].mxu0
  %v3000 = vadd.f32 0.0, %v2999
  %3001 = vdwg.mxu0
  %v3002 = vadd.f32 %v2856, %v2927
  %v3003 = vadd.f32 %v2857, %v2929
  %v3004 = vadd.f32 %v2858, %v2998
  %v3005 = vadd.f32 %v2859, %v3000
  %v3006 = vmul.f32 %v3002, 0.5
  %v3007 = vtanh.pop %v3006
  %v3008 = vmul.f32 %v3007, 0.5
  %v3009 = vadd.f32 %v3008, 0.5
  %v3010 = vmul.f32 %v3003, 0.5
  %v3011 = vtanh.pop %v3010
  %v3012 = vmul.f32 %v3011, 0.5
  %v3013 = vadd.f32 %v3012, 0.5
  %v3014 = vtanh.pop %v3004
  %v3015 = vmul.f32 %v3005, 0.5
  %v3016 = vtanh.pop %v3015
  %v3017 = vmul.f32 %v3016, 0.5
  %v3018 = vadd.f32 %v3017, 0.5
  %v3019 = vmul.f32 %v3013, %v2693
  %v3020 = vmul.f32 %v3009, %v3014
  %v3021 = vadd.f32 %v3019, %v3020
  %v3022 = vtanh.pop %v3021
  %v3023 = vmul.f32 %v3018, %v3022
  %3024 = vmatprep.subr.mxu0 %v601
  %3025 = vmatpush1.msra.mxu0 %v600
  %3026 = vmatprep.subr.mxu0 %v605
  %3027 = vmatpush1.msra.mxu0 %v604
  %3028 = vmatprep.subr.mxu0 %v609
  %3029 = vmatpush1.msra.mxu0 %v608
  %3030 = vmatprep.subr.mxu0 %v613
  %3031 = vmatpush1.msra.mxu0 %v612
  %3032 = vmatprep.subr.mxu0 %v617
  %3033 = vmatpush1.msra.mxu0 %v616
  %3034 = vmatprep.subr.mxu0 %v621
  %3035 = vmatpush1.msra.mxu0 %v620
  %3036 = vmatprep.subr.mxu0 %v625
  %3037 = vmatpush1.msra.mxu0 %v624
  %3038 = vmatprep.subr.mxu0 %v629
  %3039 = vmatpush1.msra.mxu0 %v628
  %3040 = vmatprep.subr.mxu0 %v633
  %3041 = vmatpush1.msra.mxu0 %v632
  %3042 = vmatprep.subr.mxu0 %v637
  %3043 = vmatpush1.msra.mxu0 %v636
  %3044 = vmatprep.subr.mxu0 %v641
  %3045 = vmatpush1.msra.mxu0 %v640
  %3046 = vmatprep.subr.mxu0 %v645
  %3047 = vmatpush1.msra.mxu0 %v644
  %3048 = vmatprep.subr.mxu0 %v649
  %3049 = vmatpush1.msra.mxu0 %v648
  %3050 = vmatprep.subr.mxu0 %v653
  %3051 = vmatpush1.msra.mxu0 %v652
  %3052 = vmatprep.subr.mxu0 %v657
  %3053 = vmatpush1.msra.mxu0 %v656
  %3054 = vmatprep.subr.mxu0 %v661
  %3055 = vmatpush1.msra.mxu0 %v660
  %3056 = vmatprep.subr.mxu0 %v665
  %3057 = vmatpush1.msra.mxu0 %v664
  %3058 = vmatprep.subr.mxu0 %v669
  %3059 = vmatpush1.msra.mxu0 %v668
  %3060 = vmatprep.subr.mxu0 %v673
  %3061 = vmatpush1.msra.mxu0 %v672
  %3062 = vmatprep.subr.mxu0 %v677
  %3063 = vmatpush1.msra.mxu0 %v676
  %3064 = vmatprep.subr.mxu0 %v681
  %3065 = vmatpush1.msra.mxu0 %v680
  %3066 = vmatprep.subr.mxu0 %v685
  %3067 = vmatpush1.msra.mxu0 %v684
  %3068 = vmatprep.subr.mxu0 %v689
  %3069 = vmatpush1.msra.mxu0 %v688
  %3070 = vmatprep.subr.mxu0 %v693
  %3071 = vmatpush1.msra.mxu0 %v692
  %3072 = vmatprep.subr.mxu0 %v697
  %3073 = vmatpush1.msra.mxu0 %v696
  %3074 = vmatprep.subr.mxu0 %v701
  %3075 = vmatpush1.msra.mxu0 %v700
  %3076 = vmatprep.subr.mxu0 %v705
  %3077 = vmatpush1.msra.mxu0 %v704
  %3078 = vmatprep.subr.mxu0 %v709
  %3079 = vmatpush1.msra.mxu0 %v708
  %3080 = vmatprep.subr.mxu0 %v713
  %3081 = vmatpush1.msra.mxu0 %v712
  %3082 = vmatprep.subr.mxu0 %v717
  %3083 = vmatpush1.msra.mxu0 %v716
  %3084 = vmatprep.subr.mxu0 %v721
  %3085 = vmatpush1.msra.mxu0 %v720
  %3086 = vmatprep.subr.mxu0 %v725
  %3087 = vmatpush1.msra.mxu0 %v724
  %3088 = vmatprep.mubr.f32.mxu0 %v2855
  %3089 = vmatmul.mubr.f32.gmra.mrb[0].mxu0 %v3023
  %v3090 = vpop.f32.mrb[0].mxu0
  %v3091 = vadd.f32 %v351, %v3090
  %v3092 = vpop.f32.mrb[0].mxu0
  %v3093 = vadd.f32 %v355, %v3092
  %3094 = vdwg.mxu0
  %3095 = vmatprep.subr.mxu0 %v603
  %3096 = vmatpush1.msra.mxu0 %v602
  %3097 = vmatprep.subr.mxu0 %v607
  %3098 = vmatpush1.msra.mxu0 %v606
  %3099 = vmatprep.subr.mxu0 %v611
  %3100 = vmatpush1.msra.mxu0 %v610
  %3101 = vmatprep.subr.mxu0 %v615
  %3102 = vmatpush1.msra.mxu0 %v614
  %3103 = vmatprep.subr.mxu0 %v619
  %3104 = vmatpush1.msra.mxu0 %v618
  %3105 = vmatprep.subr.mxu0 %v623
  %3106 = vmatpush1.msra.mxu0 %v622
  %3107 = vmatprep.subr.mxu0 %v627
  %3108 = vmatpush1.msra.mxu0 %v626
  %3109 = vmatprep.subr.mxu0 %v631
  %3110 = vmatpush1.msra.mxu0 %v630
  %3111 = vmatprep.subr.mxu0 %v635
  %3112 = vmatpush1.msra.mxu0 %v634
  %3113 = vmatprep.subr.mxu0 %v639
  %3114 = vmatpush1.msra.mxu0 %v638
  %3115 = vmatprep.subr.mxu0 %v643
  %3116 = vmatpush1.msra.mxu0 %v642
  %3117 = vmatprep.subr.mxu0 %v647
  %3118 = vmatpush1.msra.mxu0 %v646
  %3119 = vmatprep.subr.mxu0 %v651
  %3120 = vmatpush1.msra.mxu0 %v650
  %3121 = vmatprep.subr.mxu0 %v655
  %3122 = vmatpush1.msra.mxu0 %v654
  %3123 = vmatprep.subr.mxu0 %v659
  %3124 = vmatpush1.msra.mxu0 %v658
  %3125 = vmatprep.subr.mxu0 %v663
  %3126 = vmatpush1.msra.mxu0 %v662
  %3127 = vmatprep.subr.mxu0 %v667
  %3128 = vmatpush1.msra.mxu0 %v666
  %3129 = vmatprep.subr.mxu0 %v671
  %3130 = vmatpush1.msra.mxu0 %v670
  %3131 = vmatprep.subr.mxu0 %v675
  %3132 = vmatpush1.msra.mxu0 %v674
  %3133 = vmatprep.subr.mxu0 %v679
  %3134 = vmatpush1.msra.mxu0 %v678
  %3135 = vmatprep.subr.mxu0 %v683
  %3136 = vmatpush1.msra.mxu0 %v682
  %3137 = vmatprep.subr.mxu0 %v687
  %3138 = vmatpush1.msra.mxu0 %v686
  %3139 = vmatprep.subr.mxu0 %v691
  %3140 = vmatpush1.msra.mxu0 %v690
  %3141 = vmatprep.subr.mxu0 %v695
  %3142 = vmatpush1.msra.mxu0 %v694
  %3143 = vmatprep.subr.mxu0 %v699
  %3144 = vmatpush1.msra.mxu0 %v698
  %3145 = vmatprep.subr.mxu0 %v703
  %3146 = vmatpush1.msra.mxu0 %v702
  %3147 = vmatprep.subr.mxu0 %v707
  %3148 = vmatpush1.msra.mxu0 %v706
  %3149 = vmatprep.subr.mxu0 %v711
  %3150 = vmatpush1.msra.mxu0 %v710
  %3151 = vmatprep.subr.mxu0 %v715
  %3152 = vmatpush1.msra.mxu0 %v714
  %3153 = vmatprep.subr.mxu0 %v719
  %3154 = vmatpush1.msra.mxu0 %v718
  %3155 = vmatprep.subr.mxu0 %v723
  %3156 = vmatpush1.msra.mxu0 %v722
  %3157 = vmatprep.subr.mxu0 %v727
  %3158 = vmatpush1.msra.mxu0 %v726
  %3159 = vmatprep.mubr.f32.mxu0 %v2855
  %3160 = vmatmul.mubr.f32.gmra.mrb[0].mxu0 %v3023
  %v3161 = vpop.f32.mrb[0].mxu0
  %v3162 = vadd.f32 %v359, %v3161
  %v3163 = vpop.f32.mrb[0].mxu0
  %v3164 = vadd.f32 %v363, %v3163
  %3165 = vdwg.mxu0
  %v3166 = vmul.f32 %v3091, 0.5
  %v3167 = vtanh.pop %v3166
  %v3168 = vmul.f32 %v3167, 0.5
  %v3169 = vadd.f32 %v3168, 0.5
  %v3170 = vmul.f32 %v3093, 0.5
  %v3171 = vtanh.pop %v3170
  %v3172 = vmul.f32 %v3171, 0.5
  %v3173 = vadd.f32 %v3172, 0.5
  %v3174 = vtanh.pop %v3162
  %v3175 = vmul.f32 %v3164, 0.5
  %v3176 = vtanh.pop %v3175
  %v3177 = vmul.f32 %v3176, 0.5
  %v3178 = vadd.f32 %v3177, 0.5
  %v3179 = vmul.f32 %v3173, %v2853
  %v3180 = vmul.f32 %v3169, %v3174
  %v3181 = vadd.f32 %v3179, %v3180
  %v3182 = vtanh.pop %v3181
  %v3183 = vmul.f32 %v3178, %v3182
  %v3184 = vld [vmem:[%s6] sm:$0xff]
  %v3185 = vld [vmem:[%s6 + $0x8] sm:$0xff]
  %v3186 = vld [vmem:[%s6 + $0x10] sm:$0xff]
  %v3187 = vld [vmem:[%s6 + $0x18] sm:$0xff]
  %v3188 = vld [vmem:[%s6 + $0x20] sm:$0xff]
  %v3189 = vld [vmem:[%s6 + $0x28] sm:$0xff]
  %v3190 = vld [vmem:[%s6 + $0x30] sm:$0xff]
  %v3191 = vld [vmem:[%s6 + $0x38] sm:$0xff]
  %v3192 = vld [vmem:[%s6 + $0x40] sm:$0xff]
  %v3193 = vld [vmem:[%s6 + $0x48] sm:$0xff]
  %v3194 = vld [vmem:[%s6 + $0x50] sm:$0xff]
  %v3195 = vld [vmem:[%s6 + $0x58] sm:$0xff]
  %v3196 = vld [vmem:[%s6 + $0x60] sm:$0xff]
  %v3197 = vld [vmem:[%s6 + $0x68] sm:$0xff]
  %v3198 = vld [vmem:[%s6 + $0x70] sm:$0xff]
  %v3199 = vld [vmem:[%s6 + $0x78] sm:$0xff]
  %v3200 = vld [vmem:[%s7] sm:$0x1]
  %v3202 = vlaneseq
  %v3203 = vshrl.u32 %v3202, 7
  %v3204 = vsub.s32 0, %v3203
  %v3205 = vrot.slane %v3200, %v3204
  %3207 = vmatprep.subr.mxu0 0.0
  %3208 = vmatpush1.msra.mxu0 %v3184
  %3209 = vmatprep.subr.mxu0 0.0
  %3210 = vmatpush1.msra.mxu0 %v3185
  %3211 = vmatprep.subr.mxu0 0.0
  %3212 = vmatpush1.msra.mxu0 %v3186
  %3213 = vmatprep.subr.mxu0 0.0
  %3214 = vmatpush1.msra.mxu0 %v3187
  %3215 = vmatprep.subr.mxu0 0.0
  %3216 = vmatpush1.msra.mxu0 %v3188
  %3217 = vmatprep.subr.mxu0 0.0
  %3218 = vmatpush1.msra.mxu0 %v3189
  %3219 = vmatprep.subr.mxu0 0.0
  %3220 = vmatpush1.msra.mxu0 %v3190
  %3221 = vmatprep.subr.mxu0 0.0
  %3222 = vmatpush1.msra.mxu0 %v3191
  %3223 = vmatprep.subr.mxu0 0.0
  %3224 = vmatpush1.msra.mxu0 %v3192
  %3225 = vmatprep.subr.mxu0 0.0
  %3226 = vmatpush1.msra.mxu0 %v3193
  %3227 = vmatprep.subr.mxu0 0.0
  %3228 = vmatpush1.msra.mxu0 %v3194
  %3229 = vmatprep.subr.mxu0 0.0
  %3230 = vmatpush1.msra.mxu0 %v3195
  %3231 = vmatprep.subr.mxu0 0.0
  %3232 = vmatpush1.msra.mxu0 %v3196
  %3233 = vmatprep.subr.mxu0 0.0
  %3234 = vmatpush1.msra.mxu0 %v3197
  %3235 = vmatprep.subr.mxu0 0.0
  %3236 = vmatpush1.msra.mxu0 %v3198
  %3237 = vmatprep.subr.mxu0 0.0
  %3238 = vmatpush1.msra.mxu0 %v3199
  %3239 = vmatprep.subr.mxu0 0.0
  %3240 = vmatpush1.msra.mxu0 0.0
  %3241 = vmatprep.subr.mxu0 0.0
  %3242 = vmatpush1.msra.mxu0 0.0
  %3243 = vmatprep.subr.mxu0 0.0
  %3244 = vmatpush1.msra.mxu0 0.0
  %3245 = vmatprep.subr.mxu0 0.0
  %3246 = vmatpush1.msra.mxu0 0.0
  %3247 = vmatprep.subr.mxu0 0.0
  %3248 = vmatpush1.msra.mxu0 0.0
  %3249 = vmatprep.subr.mxu0 0.0
  %3250 = vmatpush1.msra.mxu0 0.0
  %3251 = vmatprep.subr.mxu0 0.0
  %3252 = vmatpush1.msra.mxu0 0.0
  %3253 = vmatprep.subr.mxu0 0.0
  %3254 = vmatpush1.msra.mxu0 0.0
  %3255 = vmatprep.subr.mxu0 0.0
  %3256 = vmatpush1.msra.mxu0 0.0
  %3257 = vmatprep.subr.mxu0 0.0
  %3258 = vmatpush1.msra.mxu0 0.0
  %3259 = vmatprep.subr.mxu0 0.0
  %3260 = vmatpush1.msra.mxu0 0.0
  %3261 = vmatprep.subr.mxu0 0.0
  %3262 = vmatpush1.msra.mxu0 0.0
  %3263 = vmatprep.subr.mxu0 0.0
  %3264 = vmatpush1.msra.mxu0 0.0
  %3265 = vmatprep.subr.mxu0 0.0
  %3266 = vmatpush1.msra.mxu0 0.0
  %3267 = vmatprep.subr.mxu0 0.0
  %3268 = vmatpush1.msra.mxu0 0.0
  %3269 = vmatprep.subr.mxu0 0.0
  %3270 = vmatpush1.msra.mxu0 0.0
  %3271 = vmatprep.mubr.f32.mxu0 0.0
  %3272 = vmatmul.mubr.f32.gmra.mrb[0].mxu0 %v3183
  %v3273 = vpop.f32.mrb[0].mxu0
  %v3274 = vadd.f32 %v3205, %v3273
  %v3275 = vpop.f32.mrb[0].mxu0
  %3276 = vdwg.mxu0
  %3277 = vst [vmem:[%s8] sm:$0xff] %v3274
  // Predicated region
  $region34: #{_forward.1} parent=0 // pred_check
    _
  $region35: #{_forward.1} parent=0 // pred_check_branch
    %3279 = sbr.rel (0) target = $region37
  $region36: #{_forward.1} parent=0 // pred_region
    _
  $region37: #{_forward.1} parent=0 // pred_fallthru
    _
  // Predicated region
  $region38: #{_forward.1} parent=0 // pred_check
    _
  $region39: #{_forward.1} parent=0 // pred_check_branch
    %3281 = sbr.rel (0) target = $region41
  $region40: #{_forward.1} parent=0 // pred_region
    _
  $region41: #{_forward.1} parent=0 // pred_fallthru
    _

</llo_original>
